<compile_context>
chip_gen: v7x
topology: tpu7x:2x2x1
jax: 0.10.0
libtpu: 0.0.40
codegen_flags: <defaults>
</compile_context>

<pallas_src>
import numpy as np
import jax
import jax.numpy as jnp
from jax.experimental import pallas as pl
from jax.experimental.pallas import tpu as pltpu


def _ceil8(n):
    return -(-n // 8) * 8


# ------------------------------- kernel -------------------------------------

def _make_kernel(B, L, Lf, Rp, o64, o128, bi):
    """All shapes / slab offsets are static and baked in at trace time."""
    BF = jnp.bfloat16

    def kernel(x_ref, pool_ref, roi_ref, w64_ref, w128_ref, bias_ref,
               fc1_hbm, out_ref, fc1_vmem, fc1_sem):
        # Overlap the largest (header) weight DMA with the backbone compute.
        fc1_cp = pltpu.make_async_copy(fc1_hbm, fc1_vmem, fc1_sem)
        fc1_cp.start()

        def mm(a, b):
            return jnp.dot(a.astype(BF), b.astype(BF),
                           preferred_element_type=jnp.float32)

        def leaky(v, s):
            return jnp.where(v >= 0, v, s * v)

        def w64(name, n):
            off = o64[name]
            return w64_ref[off:off + n, :]

        def w128(name, n):
            off = o128[name]
            return w128_ref[off:off + n, :]

        def bias(name, width):
            r = bi[name]
            return bias_ref[r:r + 1, 0:width]

        # Boundary masks for the k=3 convs over the folded (batch*seq) rows:
        # the sublane roll wraps across batch boundaries, so those rows are
        # zeroed -- which is also exactly Conv1d's zero padding.  Computed once
        # (hoisted) and reused by every conv3 call.
        ia = jax.lax.broadcasted_iota(jnp.int32, (B * L, 1), 0)
        ib = jax.lax.broadcasted_iota(jnp.int32, (B * Lf, 1), 0)
        keep_pa = (ia % L) != 0
        keep_na = (ia % L) != (L - 1)
        keep_pb = (ib % Lf) != 0
        keep_nb = (ib % Lf) != (Lf - 1)

        def conv3(x, w_stacked, b, keep_p, keep_n):
            # Conv1d(k=3, padding=1) in (rows, channels) layout: sublane rolls
            # (XLU) + boundary masks (VPU) + ONE fused-tap matmul (K = 3*C).
            n = x.shape[0]
            xp = jnp.where(keep_p, pltpu.roll(x, shift=1, axis=0), 0.0)
            xn = jnp.where(keep_n, pltpu.roll(x, shift=n - 1, axis=0), 0.0)
            xin = jnp.concatenate([xp, x, xn], axis=1)
            return mm(xin, w_stacked) + b

        # ------------------------------ backbone ----------------------------
        x = x_ref[...]                                   # (B*L, 8), cols 6:8 zero
        h = mm(x, w64('c12', 8)) + bias('c12', 64)       # fused conv1+conv2: 6->64

        def stage1(h, k):                                # Block_Stage_1 (dropout = id)
            y = leaky(conv3(h, w64(k + '_c3a', 192), bias(k + '_c3a', 64),
                            keep_pa, keep_na), 0.05)
            y = leaky(mm(y, w64(k + '_c1', 64)) + bias(k + '_c1', 64), 0.05)
            return conv3(y, w64(k + '_c3b', 192), bias(k + '_c3b', 64),
                         keep_pa, keep_na)

        def stage2(h, k):                                # Block_Stage_2 (dropout = id)
            y = leaky(conv3(h, w128(k + '_c3a', 384), bias(k + '_c3a', 128),
                            keep_pb, keep_nb), 0.05)
            y = leaky(mm(y, w128(k + '_c1', 128)) + bias(k + '_c1', 128), 0.05)
            return leaky(conv3(y, w128(k + '_c3b', 384), bias(k + '_c3b', 128),
                               keep_pb, keep_nb), 0.05)

        h = stage1(h, 'b1') + h                          # block_1 + skip
        h = stage1(h, 'b2') + h                          # block_2 + skip
        # AvgPool1d(2) commutes with the 1x1 block_cross conv -> pool first so
        # the 64->128 widening matmul runs on B*Lf rows instead of B*L.
        h = mm(pool_ref[...], h)                         # (B*Lf, 64)
        h = mm(h, w128('cross', 64)) + bias('cross', 128)
        h = stage2(h, 'b3') + h                          # block_3 + skip
        h = stage2(h, 'b4') + h                          # block_4 + skip
        feat = mm(h, w128('conv5', 128)) + bias('conv5', 128)   # (B*Lf, 128)

        # ------------------------------ header ------------------------------
        # AdaptiveAvgPool1d(5) for every (proposal, batch) pair at once; rows
        # of `roi` are bin-major (bin*Rp + roi).
        roi = mm(roi_ref[...], feat)                     # (5*Rp, 128)
        # (5*Rp,128) -> (Rp, 640): 8-aligned sublane slices + lane concat.
        flat = jnp.concatenate([roi[o * Rp:(o + 1) * Rp, :] for o in range(5)],
                               axis=1)

        # The three bias-only header k=3 convs were composed into fc1 on the
        # host, so the header tail is just fc1 -> leaky(0.1) -> fc2 -> fc3
        # (loc/cls heads fused; block-diagonal fc2/fc3; lane-dense output).
        fc1_cp.wait()
        z = leaky(mm(flat, fc1_vmem[...]) + bias('fc1', 256), 0.1)   # (Rp, 256)
        z = mm(z, w64('fc2', 256)) + bias('fc2', 64)                 # (Rp, 64)
        out_ref[...] = mm(z, w128('fc3', 64)) + bias('fc3', 128)     # (Rp, 128)

    return kernel


# --------------------------- host-side packing -------------------------------

def _pack_slab(entries, lane_width):
    """Stack 2-D matrices row-wise at 8-aligned offsets into one slab."""
    offs, rows = {}, 0
    for name, m in entries:
        offs[name] = rows
        rows += _ceil8(m.shape[0])
    slab = np.zeros((rows, lane_width), np.float32)
    for name, m in entries:
        o = offs[name]
        slab[o:o + m.shape[0], :m.shape[1]] = m
    return slab, offs


def build_model(p):
    """Fuse activation-free linear segments and pack everything into slabs."""
    # conv1 + conv2 (both 1x1, no activation between them).
    w12 = p['c1_w'] @ p['c2_w']                                  # (6, 64)
    b12 = p['c1_b'] @ p['c2_w'] + p['c2_b']                      # (1, 64)

    # loc/cls FC heads fused: fc1 concatenated, fc2/fc3 block-diagonal, fc3
    # output lane-padded to 128 so the kernel writes one lane-dense slab.
    fc1w = np.concatenate([p['loc_w1'], p['cls_w1']], axis=1)    # (640, 256)
    fc1b = np.concatenate([p['loc_b1'], p['cls_b1']], axis=1)    # (1, 256)
    fc2w = np.zeros((256, 64), np.float32)
    fc2w[:128, :32] = p['loc_w2']
    fc2w[128:, 32:] = p['cls_w2']
    fc2b = np.concatenate([p['loc_b2'], p['cls_b2']], axis=1)    # (1, 64)
    fc3w = np.zeros((64, 128), np.float32)
    fc3w[:32, 0:4] = p['loc_w3']
    fc3w[32:, 4:5] = p['cls_w3']
    fc3b = np.zeros((1, 128), np.float32)
    fc3b[:, 0:4] = p['loc_b3']
    fc3b[:, 4:5] = p['cls_b3']

    # Compose header_conv1..3 (bias-only k=3 convs over the 5 bins) + bin-major
    # flatten (col = bin*128 + channel) + fc1 into ONE (640, 256) affine map.
    M = np.eye(640, dtype=np.float64)
    Bv = np.zeros((1, 640), np.float64)
    for i in (1, 2, 3):
        hw = np.asarray(p['h%d_w' % i], np.float64)              # (3, 128, 128)
        hb = np.asarray(p['h%d_b' % i], np.float64)              # (1, 128)
        Mk = np.zeros((640, 640), np.float64)
        Bk = np.zeros((1, 640), np.float64)
        for lo in range(5):
            Bk[0, lo * 128:(lo + 1) * 128] = hb[0]
            for k in range(3):
                li = lo + k - 1
                if 0 <= li < 5:
                    Mk[li * 128:(li + 1) * 128, lo * 128:(lo + 1) * 128] = hw[k]
        M = M @ Mk
        Bv = Bv @ Mk + Bk
    fc1w_fused = (M @ fc1w).astype(np.float32)                   # (640, 256)
    fc1b_fused = (Bv @ fc1w + fc1b).astype(np.float32)           # (1, 256)

    # conv3 tap stacking: [w_prev ; w_center ; w_next] -> (3C, C).
    def stack3(w):
        return np.concatenate([w[0], w[1], w[2]], axis=0)

    w64_entries = [('c12', w12)]
    for k in ('b1', 'b2'):
        w64_entries += [(k + '_c3a', stack3(p[k + '_c3a_w'])),
                        (k + '_c1', p[k + '_c1_w']),
                        (k + '_c3b', stack3(p[k + '_c3b_w']))]
    w64_entries += [('fc2', fc2w)]
    w64_slab, o64 = _pack_slab(w64_entries, 64)

    w128_entries = [('cross', p['cross_w'])]
    for k in ('b3', 'b4'):
        w128_entries += [(k + '_c3a', stack3(p[k + '_c3a_w'])),
                         (k + '_c1', p[k + '_c1_w']),
                         (k + '_c3b', stack3(p[k + '_c3b_w']))]
    w128_entries += [('conv5', p['conv5_w']), ('fc3', fc3w)]
    w128_slab, o128 = _pack_slab(w128_entries, 128)

    bias_entries = [('c12', b12)]
    for k in ('b1', 'b2', 'b3', 'b4'):
        bias_entries += [(k + '_c3a', p[k + '_c3a_b']),
                         (k + '_c1', p[k + '_c1_b']),
                         (k + '_c3b', p[k + '_c3b_b'])]
    bias_entries += [('cross', p['cross_b']), ('conv5', p['conv5_b']),
                     ('fc1', fc1b_fused), ('fc2', fc2b), ('fc3', fc3b)]
    bi = {name: i for i, (name, _) in enumerate(bias_entries)}
    bias_slab = np.zeros((_ceil8(len(bias_entries)), 256), np.float32)
    for i, (name, v) in enumerate(bias_entries):
        bias_slab[i, :v.shape[1]] = v[0]

    return dict(
        w64=jnp.asarray(w64_slab, jnp.bfloat16),      # bf16 MXU operands
        w128=jnp.asarray(w128_slab, jnp.bfloat16),
        fc1=jnp.asarray(fc1w_fused, jnp.bfloat16),
        bias=jnp.asarray(bias_slab, jnp.float32),     # biases stay f32
        o64=o64, o128=o128, bi=bi)


# ------------------------------- forward -------------------------------------

def vehicle_detection_forward(input_ncl, proposals, model):
    # PyTorch NCL -> (B, L, C); fold batch into the matmul M rows; pad the 6
    # input channels to 8 lanes (the packed conv12 weight is zero there).
    x = jnp.transpose(jnp.asarray(input_ncl, jnp.float32), (0, 2, 1))
    B, L, Cin = x.shape
    Lf = L // 2
    x2d = jnp.zeros((B * L, 8), jnp.float32).at[:, :Cin].set(x.reshape(B * L, Cin))

    # AvgPool1d(2) over the folded rows as a tiny (B*Lf, B*L) matrix.
    pool_half = np.zeros((B * Lf, B * L), np.float32)
    for b in range(B):
        for t in range(Lf):
            pool_half[b * Lf + t, b * L + 2 * t] = 0.5
            pool_half[b * Lf + t, b * L + 2 * t + 1] = 0.5

    # ROI index math (mirrors the module's .cpu().numpy() path, including the
    # end-inclusive feature_map[:, :, s : idxs_end + 1] window).
    props = np.asarray(proposals).reshape(-1, 5)
    P = props.shape[0]
    R = P * B                                   # output rows, ordered p*B + b
    Rp = max(8, _ceil8(R))
    # TODO(synk): Rp / roi_pool depend on the proposal count, so each distinct
    # count recompiles the kernel; pad P to fixed buckets for serving.
    idxs_start = np.floor(props[:, 0] / props[:, 2] * Lf).astype(np.int16)
    idxs_end = np.floor(props[:, 1] / props[:, 2] * Lf).astype(np.int16) + 1

    # AdaptiveAvgPool1d(5) for every proposal as one (5*Rp, B*Lf) matrix,
    # rows bin-major (bin*Rp + roi).
    roi_pool = np.zeros((5 * Rp, B * Lf), np.float32)
    for pi in range(P):
        s = max(int(idxs_start[pi]), 0)
        e_excl = min(int(idxs_end[pi]) + 1, Lf)
        e_excl = max(e_excl, s + 1)
        Lin = e_excl - s
        for b in range(B):
            r = pi * B + b
            for o in range(5):
                a = (o * Lin) // 5
                bnd = -(-((o + 1) * Lin) // 5)
                roi_pool[o * Rp + r,
                         b * Lf + s + a: b * Lf + s + bnd] = 1.0 / (bnd - a)

    kernel = _make_kernel(B, L, Lf, Rp, model['o64'], model['o128'], model['bi'])

    def full_spec(shape):
        nd = len(shape)
        return pl.BlockSpec(shape, lambda i, nd=nd: (0,) * nd)

    inputs = [x2d,
              jnp.asarray(pool_half, jnp.bfloat16),
              jnp.asarray(roi_pool, jnp.bfloat16),
              model['w64'], model['w128'], model['bias'], model['fc1']]
    in_specs = [full_spec(tuple(a.shape)) for a in inputs[:-1]]
    in_specs.append(pl.BlockSpec(memory_space=pl.ANY))   # fc1: manual async DMA

    # TODO(synk): on v7x, add a leading "parallel" grid axis over batched
    # independent requests so the second TensorCore is used.
    out = pl.pallas_call(
        kernel,
        grid=(1,),
        in_specs=in_specs,
        out_specs=pl.BlockSpec((Rp, 128), lambda i: (0, 0)),
        out_shape=jax.ShapeDtypeStruct((Rp, 128), jnp.float32),
        scratch_shapes=[pltpu.VMEM((640, 256), jnp.bfloat16),
                        pltpu.SemaphoreType.DMA(())],
        compiler_params=pltpu.CompilerParams(
            dimension_semantics=("arbitrary",)),
    )(*inputs)

    # Lane-dense output slab -> (R,1,4) loc and (R,1,1) cls.
    loc_pred = out[:R, 0:4].reshape(R, 1, 4)
    cls_pred = out[:R, 4:5].reshape(R, 1, 1)
    return loc_pred, cls_pred


# --------------------------- parameter creation ------------------------------

def make_params(seed=0):
    state = [jax.random.PRNGKey(seed)]

    def nxt():
        state[0], sub = jax.random.split(state[0])
        return sub

    def w(shape, scale=0.05):
        return np.asarray(jax.random.normal(nxt(), shape, jnp.float32)) * scale

    p = {}
    p['c1_w'], p['c1_b'] = w((6, 24)), w((1, 24))          # conv1 (1x1)
    p['c2_w'], p['c2_b'] = w((24, 64)), w((1, 64))         # conv2 (1x1)
    for name, c in [('b1', 64), ('b2', 64), ('b3', 128), ('b4', 128)]:
        p[name + '_c3a_w'], p[name + '_c3a_b'] = w((3, c, c)), w((1, c))
        p[name + '_c1_w'], p[name + '_c1_b'] = w((c, c)), w((1, c))
        p[name + '_c3b_w'], p[name + '_c3b_b'] = w((3, c, c)), w((1, c))
    p['cross_w'], p['cross_b'] = w((64, 128)), w((1, 128))
    p['conv5_w'], p['conv5_b'] = w((128, 128)), w((1, 128))
    for i in (1, 2, 3):                                    # header convs (k=3)
        p['h%d_w' % i], p['h%d_b' % i] = w((3, 128, 128)), w((1, 128))
    p['loc_w1'], p['loc_b1'] = w((640, 128)), w((1, 128))
    p['cls_w1'], p['cls_b1'] = w((640, 128)), w((1, 128))
    p['loc_w2'], p['loc_b2'] = w((128, 32)), w((1, 32))
    p['cls_w2'], p['cls_b2'] = w((128, 32)), w((1, 32))
    p['loc_w3'], p['loc_b3'] = w((32, 4)), w((1, 4))
    p['cls_w3'], p['cls_b3'] = w((32, 1)), w((1, 1))
    return p


# ---------------------------------- main --------------------------------------

if __name__ == "__main__":
    key = jax.random.PRNGKey(0)
    B, C_IN, L = 2, 6, 16
    input_data = jax.random.normal(key, (B, C_IN, L), jnp.float32)   # NCL like torch
    # proposals: (num_props, 5); cols 0/1 = start/end, col 2 = total extent.
    proposals = jnp.array([[0.0, 4.0, 16.0, 0.0, 0.0],
                           [2.0, 10.0, 16.0, 0.0, 0.0],
                           [5.0, 15.0, 16.0, 0.0, 0.0]], jnp.float32)

    params = make_params()
    model = build_model(params)
    loc_pred, cls_pred = vehicle_detection_forward(input_data, proposals, model)
    jax.block_until_ready((loc_pred, cls_pred))
    assert loc_pred.shape == (proposals.shape[0] * B, 1, 4)
    assert cls_pred.shape == (proposals.shape[0] * B, 1, 1)
    print("KERNEL_OK")
</pallas_src>

<mosaic_0001>
module attributes {stable_mosaic.version = 11 : i64} {
  func.func @kernel(%arg0: i32, %arg1: memref<32x8xf32, #tpu.memory_space<vmem>>, %arg2: memref<16x32xbf16, #tpu.memory_space<vmem>>, %arg3: memref<40x16xbf16, #tpu.memory_space<vmem>>, %arg4: memref<1160x64xbf16, #tpu.memory_space<vmem>>, %arg5: memref<2048x128xbf16, #tpu.memory_space<vmem>>, %arg6: memref<24x256xf32, #tpu.memory_space<vmem>>, %arg7: memref<640x256xbf16, #tpu.memory_space<any>>, %arg8: memref<8x128xf32, #tpu.memory_space<vmem>>, %arg9: memref<640x256xbf16, #tpu.memory_space<vmem>>, %arg10: memref<!tpu.dma_semaphore, #tpu.memory_space<semaphore_mem>>) attributes {dimension_semantics = [#tpu.dimension_semantics<arbitrary>], iteration_bounds = array<i64: 1>, scalar_prefetch = 0 : i64, scratch_operands = 2 : i64, tpu.core_type = #tpu.core_type<tc>, window_params = [{pipeline_mode = #tpu.pipeline_mode<synchronous>, transform_indices = @transform_0, window_bounds = array<i64: 32, 8>}, {pipeline_mode = #tpu.pipeline_mode<synchronous>, transform_indices = @transform_1, window_bounds = array<i64: 16, 32>}, {pipeline_mode = #tpu.pipeline_mode<synchronous>, transform_indices = @transform_2, window_bounds = array<i64: 40, 16>}, {pipeline_mode = #tpu.pipeline_mode<synchronous>, transform_indices = @transform_3, window_bounds = array<i64: 1160, 64>}, {pipeline_mode = #tpu.pipeline_mode<synchronous>, transform_indices = @transform_4, window_bounds = array<i64: 2048, 128>}, {pipeline_mode = #tpu.pipeline_mode<synchronous>, transform_indices = @transform_5, window_bounds = array<i64: 24, 256>}, {}, {pipeline_mode = #tpu.pipeline_mode<synchronous>, transform_indices = @transform_7, window_bounds = array<i64: 8, 128>}]} {
    tpu.enqueue_dma source(%arg7 : memref<640x256xbf16, #tpu.memory_space<any>>) target(%arg9 : memref<640x256xbf16, #tpu.memory_space<vmem>>) target_semaphore(%arg10 : memref<!tpu.dma_semaphore, #tpu.memory_space<semaphore_mem>>)
    %0 = tpu.iota {dimensions = array<i32: 0>} : vector<32x1xi32>
    %1 = tpu.iota {dimensions = array<i32: 0>} : vector<16x1xi32>
    %c16_i32 = arith.constant 16 : i32
    %c0_i32 = arith.constant 0 : i32
    %2 = arith.cmpi eq, %c16_i32, %c0_i32 : i32
    %c1_i32 = arith.constant 1 : i32
    %3 = arith.select %2, %c1_i32, %c16_i32 : i32
    %4 = vector.broadcast %3 : i32 to vector<32x1xi32>
    %5 = arith.remsi %0, %4 : vector<32x1xi32>
    %c0_i32_0 = arith.constant 0 : i32
    %6 = vector.broadcast %c0_i32_0 : i32 to vector<32x1xi32>
    %7 = arith.cmpi ne, %5, %6 : vector<32x1xi32>
    %c0_i32_1 = arith.constant 0 : i32
    %8 = vector.broadcast %c0_i32_1 : i32 to vector<32x1xi32>
    %9 = arith.cmpi slt, %5, %8 : vector<32x1xi32>
    %c0_i32_2 = arith.constant 0 : i32
    %10 = arith.cmpi slt, %3, %c0_i32_2 : i32
    %11 = vector.broadcast %10 : i1 to vector<32x1xi1>
    %12 = vector.broadcast %11 : vector<32x1xi1> to vector<32x1xi1>
    %13 = arith.xori %9, %12 : vector<32x1xi1>
    %14 = arith.andi %13, %7 : vector<32x1xi1>
    %15 = vector.broadcast %3 : i32 to vector<32x1xi32>
    %16 = arith.addi %5, %15 : vector<32x1xi32>
    %17 = arith.select %14, %16, %5 : vector<32x1xi1>, vector<32x1xi32>
    %c0_i32_3 = arith.constant 0 : i32
    %18 = vector.broadcast %c0_i32_3 : i32 to vector<32x1xi32>
    %19 = arith.cmpi ne, %17, %18 : vector<32x1xi32>
    %c16_i32_4 = arith.constant 16 : i32
    %c0_i32_5 = arith.constant 0 : i32
    %20 = arith.cmpi eq, %c16_i32_4, %c0_i32_5 : i32
    %c1_i32_6 = arith.constant 1 : i32
    %21 = arith.select %20, %c1_i32_6, %c16_i32_4 : i32
    %22 = vector.broadcast %21 : i32 to vector<32x1xi32>
    %23 = arith.remsi %0, %22 : vector<32x1xi32>
    %c0_i32_7 = arith.constant 0 : i32
    %24 = vector.broadcast %c0_i32_7 : i32 to vector<32x1xi32>
    %25 = arith.cmpi ne, %23, %24 : vector<32x1xi32>
    %c0_i32_8 = arith.constant 0 : i32
    %26 = vector.broadcast %c0_i32_8 : i32 to vector<32x1xi32>
    %27 = arith.cmpi slt, %23, %26 : vector<32x1xi32>
    %c0_i32_9 = arith.constant 0 : i32
    %28 = arith.cmpi slt, %21, %c0_i32_9 : i32
    %29 = vector.broadcast %28 : i1 to vector<32x1xi1>
    %30 = vector.broadcast %29 : vector<32x1xi1> to vector<32x1xi1>
    %31 = arith.xori %27, %30 : vector<32x1xi1>
    %32 = arith.andi %31, %25 : vector<32x1xi1>
    %33 = vector.broadcast %21 : i32 to vector<32x1xi32>
    %34 = arith.addi %23, %33 : vector<32x1xi32>
    %35 = arith.select %32, %34, %23 : vector<32x1xi1>, vector<32x1xi32>
    %c15_i32 = arith.constant 15 : i32
    %36 = vector.broadcast %c15_i32 : i32 to vector<32x1xi32>
    %37 = arith.cmpi ne, %35, %36 : vector<32x1xi32>
    %c8_i32 = arith.constant 8 : i32
    %c0_i32_10 = arith.constant 0 : i32
    %38 = arith.cmpi eq, %c8_i32, %c0_i32_10 : i32
    %c1_i32_11 = arith.constant 1 : i32
    %39 = arith.select %38, %c1_i32_11, %c8_i32 : i32
    %40 = vector.broadcast %39 : i32 to vector<16x1xi32>
    %41 = arith.remsi %1, %40 : vector<16x1xi32>
    %c0_i32_12 = arith.constant 0 : i32
    %42 = vector.broadcast %c0_i32_12 : i32 to vector<16x1xi32>
    %43 = arith.cmpi ne, %41, %42 : vector<16x1xi32>
    %c0_i32_13 = arith.constant 0 : i32
    %44 = vector.broadcast %c0_i32_13 : i32 to vector<16x1xi32>
    %45 = arith.cmpi slt, %41, %44 : vector<16x1xi32>
    %c0_i32_14 = arith.constant 0 : i32
    %46 = arith.cmpi slt, %39, %c0_i32_14 : i32
    %47 = vector.broadcast %46 : i1 to vector<16x1xi1>
    %48 = vector.broadcast %47 : vector<16x1xi1> to vector<16x1xi1>
    %49 = arith.xori %45, %48 : vector<16x1xi1>
    %50 = arith.andi %49, %43 : vector<16x1xi1>
    %51 = vector.broadcast %39 : i32 to vector<16x1xi32>
    %52 = arith.addi %41, %51 : vector<16x1xi32>
    %53 = arith.select %50, %52, %41 : vector<16x1xi1>, vector<16x1xi32>
    %c0_i32_15 = arith.constant 0 : i32
    %54 = vector.broadcast %c0_i32_15 : i32 to vector<16x1xi32>
    %55 = arith.cmpi ne, %53, %54 : vector<16x1xi32>
    %c8_i32_16 = arith.constant 8 : i32
    %c0_i32_17 = arith.constant 0 : i32
    %56 = arith.cmpi eq, %c8_i32_16, %c0_i32_17 : i32
    %c1_i32_18 = arith.constant 1 : i32
    %57 = arith.select %56, %c1_i32_18, %c8_i32_16 : i32
    %58 = vector.broadcast %57 : i32 to vector<16x1xi32>
    %59 = arith.remsi %1, %58 : vector<16x1xi32>
    %c0_i32_19 = arith.constant 0 : i32
    %60 = vector.broadcast %c0_i32_19 : i32 to vector<16x1xi32>
    %61 = arith.cmpi ne, %59, %60 : vector<16x1xi32>
    %c0_i32_20 = arith.constant 0 : i32
    %62 = vector.broadcast %c0_i32_20 : i32 to vector<16x1xi32>
    %63 = arith.cmpi slt, %59, %62 : vector<16x1xi32>
    %c0_i32_21 = arith.constant 0 : i32
    %64 = arith.cmpi slt, %57, %c0_i32_21 : i32
    %65 = vector.broadcast %64 : i1 to vector<16x1xi1>
    %66 = vector.broadcast %65 : vector<16x1xi1> to vector<16x1xi1>
    %67 = arith.xori %63, %66 : vector<16x1xi1>
    %68 = arith.andi %67, %61 : vector<16x1xi1>
    %69 = vector.broadcast %57 : i32 to vector<16x1xi32>
    %70 = arith.addi %59, %69 : vector<16x1xi32>
    %71 = arith.select %68, %70, %59 : vector<16x1xi1>, vector<16x1xi32>
    %c7_i32 = arith.constant 7 : i32
    %72 = vector.broadcast %c7_i32 : i32 to vector<16x1xi32>
    %73 = arith.cmpi ne, %71, %72 : vector<16x1xi32>
    %c0 = arith.constant 0 : index
    %c0_22 = arith.constant 0 : index
    %74 = vector.load %arg1[%c0, %c0_22] : memref<32x8xf32, #tpu.memory_space<vmem>>, vector<32x8xf32>
    %c0_23 = arith.constant 0 : index
    %c0_24 = arith.constant 0 : index
    %75 = vector.load %arg4[%c0_23, %c0_24] : memref<1160x64xbf16, #tpu.memory_space<vmem>>, vector<8x64xbf16>
    %76 = arith.truncf %74 : vector<32x8xf32> to vector<32x8xbf16>
    %cst = arith.constant dense<0.000000e+00> : vector<32x64xf32>
    %77 = tpu.matmul %76, %75, %cst {dimension_numbers = #tpu.dot_dimension_numbers<[1], [0], [0], [1], [0, 0, 1, 1], [], []>} : vector<32x8xbf16>, vector<8x64xbf16>, vector<32x64xf32> -> vector<32x64xf32>
    %c0_25 = arith.constant 0 : index
    %c0_26 = arith.constant 0 : index
    %78 = vector.load %arg6[%c0_25, %c0_26] : memref<24x256xf32, #tpu.memory_space<vmem>>, vector<1x64xf32>
    %79 = vector.broadcast %78 : vector<1x64xf32> to vector<32x64xf32>
    %80 = arith.addf %77, %79 : vector<32x64xf32>
    %c8 = arith.constant 8 : index
    %c0_27 = arith.constant 0 : index
    %81 = vector.load %arg4[%c8, %c0_27] : memref<1160x64xbf16, #tpu.memory_space<vmem>>, vector<192x64xbf16>
    %c1 = arith.constant 1 : index
    %c0_28 = arith.constant 0 : index
    %82 = vector.load %arg6[%c1, %c0_28] : memref<24x256xf32, #tpu.memory_space<vmem>>, vector<1x64xf32>
    %c1_i32_29 = arith.constant 1 : i32
    %83 = tpu.dynamic_rotate %80 by %c1_i32_29 dim 0 : vector<32x64xf32>, i32 -> vector<32x64xf32>
    %cst_30 = arith.constant 0.000000e+00 : f32
    %84 = vector.shape_cast %19 : vector<32x1xi1> to vector<32x1xi1>
    %85 = vector.broadcast %84 : vector<32x1xi1> to vector<32x64xi1>
    %86 = vector.broadcast %cst_30 : f32 to vector<32x64xf32>
    %87 = arith.select %85, %83, %86 : vector<32x64xi1>, vector<32x64xf32>
    %c31_i32 = arith.constant 31 : i32
    %88 = tpu.dynamic_rotate %80 by %c31_i32 dim 0 : vector<32x64xf32>, i32 -> vector<32x64xf32>
    %cst_31 = arith.constant 0.000000e+00 : f32
    %89 = vector.shape_cast %37 : vector<32x1xi1> to vector<32x1xi1>
    %90 = vector.broadcast %89 : vector<32x1xi1> to vector<32x64xi1>
    %91 = vector.broadcast %cst_31 : f32 to vector<32x64xf32>
    %92 = arith.select %90, %88, %91 : vector<32x64xi1>, vector<32x64xf32>
    %93 = tpu.concatenate %87, %80, %92 in 1 : vector<32x64xf32>, vector<32x64xf32>, vector<32x64xf32> -> vector<32x192xf32>
    %94 = arith.truncf %93 : vector<32x192xf32> to vector<32x192xbf16>
    %cst_32 = arith.constant dense<0.000000e+00> : vector<32x64xf32>
    %95 = tpu.matmul %94, %81, %cst_32 {dimension_numbers = #tpu.dot_dimension_numbers<[1], [0], [0], [1], [0, 0, 1, 1], [], []>} : vector<32x192xbf16>, vector<192x64xbf16>, vector<32x64xf32> -> vector<32x64xf32>
    %96 = vector.broadcast %82 : vector<1x64xf32> to vector<32x64xf32>
    %97 = arith.addf %95, %96 : vector<32x64xf32>
    %cst_33 = arith.constant 0.000000e+00 : f32
    %98 = vector.broadcast %cst_33 : f32 to vector<32x64xf32>
    %99 = arith.cmpf oge, %97, %98 : vector<32x64xf32>
    %cst_34 = arith.constant 5.000000e-02 : f32
    %100 = vector.broadcast %cst_34 : f32 to vector<32x64xf32>
    %101 = arith.mulf %100, %97 : vector<32x64xf32>
    %102 = arith.select %99, %97, %101 : vector<32x64xi1>, vector<32x64xf32>
    %c200 = arith.constant 200 : index
    %c0_35 = arith.constant 0 : index
    %103 = vector.load %arg4[%c200, %c0_35] : memref<1160x64xbf16, #tpu.memory_space<vmem>>, vector<64x64xbf16>
    %104 = arith.truncf %102 : vector<32x64xf32> to vector<32x64xbf16>
    %cst_36 = arith.constant dense<0.000000e+00> : vector<32x64xf32>
    %105 = tpu.matmul %104, %103, %cst_36 {dimension_numbers = #tpu.dot_dimension_numbers<[1], [0], [0], [1], [0, 0, 1, 1], [], []>} : vector<32x64xbf16>, vector<64x64xbf16>, vector<32x64xf32> -> vector<32x64xf32>
    %c2 = arith.constant 2 : index
    %c0_37 = arith.constant 0 : index
    %106 = vector.load %arg6[%c2, %c0_37] : memref<24x256xf32, #tpu.memory_space<vmem>>, vector<1x64xf32>
    %107 = vector.broadcast %106 : vector<1x64xf32> to vector<32x64xf32>
    %108 = arith.addf %105, %107 : vector<32x64xf32>
    %cst_38 = arith.constant 0.000000e+00 : f32
    %109 = vector.broadcast %cst_38 : f32 to vector<32x64xf32>
    %110 = arith.cmpf oge, %108, %109 : vector<32x64xf32>
    %cst_39 = arith.constant 5.000000e-02 : f32
    %111 = vector.broadcast %cst_39 : f32 to vector<32x64xf32>
    %112 = arith.mulf %111, %108 : vector<32x64xf32>
    %113 = arith.select %110, %108, %112 : vector<32x64xi1>, vector<32x64xf32>
    %c264 = arith.constant 264 : index
    %c0_40 = arith.constant 0 : index
    %114 = vector.load %arg4[%c264, %c0_40] : memref<1160x64xbf16, #tpu.memory_space<vmem>>, vector<192x64xbf16>
    %c3 = arith.constant 3 : index
    %c0_41 = arith.constant 0 : index
    %115 = vector.load %arg6[%c3, %c0_41] : memref<24x256xf32, #tpu.memory_space<vmem>>, vector<1x64xf32>
    %c1_i32_42 = arith.constant 1 : i32
    %116 = tpu.dynamic_rotate %113 by %c1_i32_42 dim 0 : vector<32x64xf32>, i32 -> vector<32x64xf32>
    %cst_43 = arith.constant 0.000000e+00 : f32
    %117 = vector.shape_cast %19 : vector<32x1xi1> to vector<32x1xi1>
    %118 = vector.broadcast %117 : vector<32x1xi1> to vector<32x64xi1>
    %119 = vector.broadcast %cst_43 : f32 to vector<32x64xf32>
    %120 = arith.select %118, %116, %119 : vector<32x64xi1>, vector<32x64xf32>
    %c31_i32_44 = arith.constant 31 : i32
    %121 = tpu.dynamic_rotate %113 by %c31_i32_44 dim 0 : vector<32x64xf32>, i32 -> vector<32x64xf32>
    %cst_45 = arith.constant 0.000000e+00 : f32
    %122 = vector.shape_cast %37 : vector<32x1xi1> to vector<32x1xi1>
    %123 = vector.broadcast %122 : vector<32x1xi1> to vector<32x64xi1>
    %124 = vector.broadcast %cst_45 : f32 to vector<32x64xf32>
    %125 = arith.select %123, %121, %124 : vector<32x64xi1>, vector<32x64xf32>
    %126 = tpu.concatenate %120, %113, %125 in 1 : vector<32x64xf32>, vector<32x64xf32>, vector<32x64xf32> -> vector<32x192xf32>
    %127 = arith.truncf %126 : vector<32x192xf32> to vector<32x192xbf16>
    %cst_46 = arith.constant dense<0.000000e+00> : vector<32x64xf32>
    %128 = tpu.matmul %127, %114, %cst_46 {dimension_numbers = #tpu.dot_dimension_numbers<[1], [0], [0], [1], [0, 0, 1, 1], [], []>} : vector<32x192xbf16>, vector<192x64xbf16>, vector<32x64xf32> -> vector<32x64xf32>
    %129 = vector.broadcast %115 : vector<1x64xf32> to vector<32x64xf32>
    %130 = arith.addf %128, %129 : vector<32x64xf32>
    %131 = arith.addf %130, %80 : vector<32x64xf32>
    %c456 = arith.constant 456 : index
    %c0_47 = arith.constant 0 : index
    %132 = vector.load %arg4[%c456, %c0_47] : memref<1160x64xbf16, #tpu.memory_space<vmem>>, vector<192x64xbf16>
    %c4 = arith.constant 4 : index
    %c0_48 = arith.constant 0 : index
    %133 = vector.load %arg6[%c4, %c0_48] : memref<24x256xf32, #tpu.memory_space<vmem>>, vector<1x64xf32>
    %c1_i32_49 = arith.constant 1 : i32
    %134 = tpu.dynamic_rotate %131 by %c1_i32_49 dim 0 : vector<32x64xf32>, i32 -> vector<32x64xf32>
    %cst_50 = arith.constant 0.000000e+00 : f32
    %135 = vector.shape_cast %19 : vector<32x1xi1> to vector<32x1xi1>
    %136 = vector.broadcast %135 : vector<32x1xi1> to vector<32x64xi1>
    %137 = vector.broadcast %cst_50 : f32 to vector<32x64xf32>
    %138 = arith.select %136, %134, %137 : vector<32x64xi1>, vector<32x64xf32>
    %c31_i32_51 = arith.constant 31 : i32
    %139 = tpu.dynamic_rotate %131 by %c31_i32_51 dim 0 : vector<32x64xf32>, i32 -> vector<32x64xf32>
    %cst_52 = arith.constant 0.000000e+00 : f32
    %140 = vector.shape_cast %37 : vector<32x1xi1> to vector<32x1xi1>
    %141 = vector.broadcast %140 : vector<32x1xi1> to vector<32x64xi1>
    %142 = vector.broadcast %cst_52 : f32 to vector<32x64xf32>
    %143 = arith.select %141, %139, %142 : vector<32x64xi1>, vector<32x64xf32>
    %144 = tpu.concatenate %138, %131, %143 in 1 : vector<32x64xf32>, vector<32x64xf32>, vector<32x64xf32> -> vector<32x192xf32>
    %145 = arith.truncf %144 : vector<32x192xf32> to vector<32x192xbf16>
    %cst_53 = arith.constant dense<0.000000e+00> : vector<32x64xf32>
    %146 = tpu.matmul %145, %132, %cst_53 {dimension_numbers = #tpu.dot_dimension_numbers<[1], [0], [0], [1], [0, 0, 1, 1], [], []>} : vector<32x192xbf16>, vector<192x64xbf16>, vector<32x64xf32> -> vector<32x64xf32>
    %147 = vector.broadcast %133 : vector<1x64xf32> to vector<32x64xf32>
    %148 = arith.addf %146, %147 : vector<32x64xf32>
    %cst_54 = arith.constant 0.000000e+00 : f32
    %149 = vector.broadcast %cst_54 : f32 to vector<32x64xf32>
    %150 = arith.cmpf oge, %148, %149 : vector<32x64xf32>
    %cst_55 = arith.constant 5.000000e-02 : f32
    %151 = vector.broadcast %cst_55 : f32 to vector<32x64xf32>
    %152 = arith.mulf %151, %148 : vector<32x64xf32>
    %153 = arith.select %150, %148, %152 : vector<32x64xi1>, vector<32x64xf32>
    %c648 = arith.constant 648 : index
    %c0_56 = arith.constant 0 : index
    %154 = vector.load %arg4[%c648, %c0_56] : memref<1160x64xbf16, #tpu.memory_space<vmem>>, vector<64x64xbf16>
    %155 = arith.truncf %153 : vector<32x64xf32> to vector<32x64xbf16>
    %cst_57 = arith.constant dense<0.000000e+00> : vector<32x64xf32>
    %156 = tpu.matmul %155, %154, %cst_57 {dimension_numbers = #tpu.dot_dimension_numbers<[1], [0], [0], [1], [0, 0, 1, 1], [], []>} : vector<32x64xbf16>, vector<64x64xbf16>, vector<32x64xf32> -> vector<32x64xf32>
    %c5 = arith.constant 5 : index
    %c0_58 = arith.constant 0 : index
    %157 = vector.load %arg6[%c5, %c0_58] : memref<24x256xf32, #tpu.memory_space<vmem>>, vector<1x64xf32>
    %158 = vector.broadcast %157 : vector<1x64xf32> to vector<32x64xf32>
    %159 = arith.addf %156, %158 : vector<32x64xf32>
    %cst_59 = arith.constant 0.000000e+00 : f32
    %160 = vector.broadcast %cst_59 : f32 to vector<32x64xf32>
    %161 = arith.cmpf oge, %159, %160 : vector<32x64xf32>
    %cst_60 = arith.constant 5.000000e-02 : f32
    %162 = vector.broadcast %cst_60 : f32 to vector<32x64xf32>
    %163 = arith.mulf %162, %159 : vector<32x64xf32>
    %164 = arith.select %161, %159, %163 : vector<32x64xi1>, vector<32x64xf32>
    %c712 = arith.constant 712 : index
    %c0_61 = arith.constant 0 : index
    %165 = vector.load %arg4[%c712, %c0_61] : memref<1160x64xbf16, #tpu.memory_space<vmem>>, vector<192x64xbf16>
    %c6 = arith.constant 6 : index
    %c0_62 = arith.constant 0 : index
    %166 = vector.load %arg6[%c6, %c0_62] : memref<24x256xf32, #tpu.memory_space<vmem>>, vector<1x64xf32>
    %c1_i32_63 = arith.constant 1 : i32
    %167 = tpu.dynamic_rotate %164 by %c1_i32_63 dim 0 : vector<32x64xf32>, i32 -> vector<32x64xf32>
    %cst_64 = arith.constant 0.000000e+00 : f32
    %168 = vector.shape_cast %19 : vector<32x1xi1> to vector<32x1xi1>
    %169 = vector.broadcast %168 : vector<32x1xi1> to vector<32x64xi1>
    %170 = vector.broadcast %cst_64 : f32 to vector<32x64xf32>
    %171 = arith.select %169, %167, %170 : vector<32x64xi1>, vector<32x64xf32>
    %c31_i32_65 = arith.constant 31 : i32
    %172 = tpu.dynamic_rotate %164 by %c31_i32_65 dim 0 : vector<32x64xf32>, i32 -> vector<32x64xf32>
    %cst_66 = arith.constant 0.000000e+00 : f32
    %173 = vector.shape_cast %37 : vector<32x1xi1> to vector<32x1xi1>
    %174 = vector.broadcast %173 : vector<32x1xi1> to vector<32x64xi1>
    %175 = vector.broadcast %cst_66 : f32 to vector<32x64xf32>
    %176 = arith.select %174, %172, %175 : vector<32x64xi1>, vector<32x64xf32>
    %177 = tpu.concatenate %171, %164, %176 in 1 : vector<32x64xf32>, vector<32x64xf32>, vector<32x64xf32> -> vector<32x192xf32>
    %178 = arith.truncf %177 : vector<32x192xf32> to vector<32x192xbf16>
    %cst_67 = arith.constant dense<0.000000e+00> : vector<32x64xf32>
    %179 = tpu.matmul %178, %165, %cst_67 {dimension_numbers = #tpu.dot_dimension_numbers<[1], [0], [0], [1], [0, 0, 1, 1], [], []>} : vector<32x192xbf16>, vector<192x64xbf16>, vector<32x64xf32> -> vector<32x64xf32>
    %180 = vector.broadcast %166 : vector<1x64xf32> to vector<32x64xf32>
    %181 = arith.addf %179, %180 : vector<32x64xf32>
    %182 = arith.addf %181, %131 : vector<32x64xf32>
    %c0_68 = arith.constant 0 : index
    %c0_69 = arith.constant 0 : index
    %183 = vector.load %arg2[%c0_68, %c0_69] : memref<16x32xbf16, #tpu.memory_space<vmem>>, vector<16x32xbf16>
    %184 = arith.truncf %182 : vector<32x64xf32> to vector<32x64xbf16>
    %cst_70 = arith.constant dense<0.000000e+00> : vector<16x64xf32>
    %185 = tpu.matmul %183, %184, %cst_70 {dimension_numbers = #tpu.dot_dimension_numbers<[1], [0], [0], [1], [0, 0, 1, 1], [], []>} : vector<16x32xbf16>, vector<32x64xbf16>, vector<16x64xf32> -> vector<16x64xf32>
    %c0_71 = arith.constant 0 : index
    %c0_72 = arith.constant 0 : index
    %186 = vector.load %arg5[%c0_71, %c0_72] : memref<2048x128xbf16, #tpu.memory_space<vmem>>, vector<64x128xbf16>
    %187 = arith.truncf %185 : vector<16x64xf32> to vector<16x64xbf16>
    %cst_73 = arith.constant dense<0.000000e+00> : vector<16x128xf32>
    %188 = tpu.matmul %187, %186, %cst_73 {dimension_numbers = #tpu.dot_dimension_numbers<[1], [0], [0], [1], [0, 0, 1, 1], [], []>} : vector<16x64xbf16>, vector<64x128xbf16>, vector<16x128xf32> -> vector<16x128xf32>
    %c13 = arith.constant 13 : index
    %c0_74 = arith.constant 0 : index
    %189 = vector.load %arg6[%c13, %c0_74] : memref<24x256xf32, #tpu.memory_space<vmem>>, vector<1x128xf32>
    %190 = vector.broadcast %189 : vector<1x128xf32> to vector<16x128xf32>
    %191 = arith.addf %188, %190 : vector<16x128xf32>
    %c64 = arith.constant 64 : index
    %c0_75 = arith.constant 0 : index
    %192 = vector.load %arg5[%c64, %c0_75] : memref<2048x128xbf16, #tpu.memory_space<vmem>>, vector<384x128xbf16>
    %c7 = arith.constant 7 : index
    %c0_76 = arith.constant 0 : index
    %193 = vector.load %arg6[%c7, %c0_76] : memref<24x256xf32, #tpu.memory_space<vmem>>, vector<1x128xf32>
    %c1_i32_77 = arith.constant 1 : i32
    %194 = tpu.dynamic_rotate %191 by %c1_i32_77 dim 0 : vector<16x128xf32>, i32 -> vector<16x128xf32>
    %cst_78 = arith.constant 0.000000e+00 : f32
    %195 = vector.shape_cast %55 : vector<16x1xi1> to vector<16x1xi1>
    %196 = vector.broadcast %195 : vector<16x1xi1> to vector<16x128xi1>
    %197 = vector.broadcast %cst_78 : f32 to vector<16x128xf32>
    %198 = arith.select %196, %194, %197 : vector<16x128xi1>, vector<16x128xf32>
    %c15_i32_79 = arith.constant 15 : i32
    %199 = tpu.dynamic_rotate %191 by %c15_i32_79 dim 0 : vector<16x128xf32>, i32 -> vector<16x128xf32>
    %cst_80 = arith.constant 0.000000e+00 : f32
    %200 = vector.shape_cast %73 : vector<16x1xi1> to vector<16x1xi1>
    %201 = vector.broadcast %200 : vector<16x1xi1> to vector<16x128xi1>
    %202 = vector.broadcast %cst_80 : f32 to vector<16x128xf32>
    %203 = arith.select %201, %199, %202 : vector<16x128xi1>, vector<16x128xf32>
    %204 = tpu.concatenate %198, %191, %203 in 1 : vector<16x128xf32>, vector<16x128xf32>, vector<16x128xf32> -> vector<16x384xf32>
    %205 = arith.truncf %204 : vector<16x384xf32> to vector<16x384xbf16>
    %cst_81 = arith.constant dense<0.000000e+00> : vector<16x128xf32>
    %206 = tpu.matmul %205, %192, %cst_81 {dimension_numbers = #tpu.dot_dimension_numbers<[1], [0], [0], [1], [0, 0, 1, 1], [], []>} : vector<16x384xbf16>, vector<384x128xbf16>, vector<16x128xf32> -> vector<16x128xf32>
    %207 = vector.broadcast %193 : vector<1x128xf32> to vector<16x128xf32>
    %208 = arith.addf %206, %207 : vector<16x128xf32>
    %cst_82 = arith.constant 0.000000e+00 : f32
    %209 = vector.broadcast %cst_82 : f32 to vector<16x128xf32>
    %210 = arith.cmpf oge, %208, %209 : vector<16x128xf32>
    %cst_83 = arith.constant 5.000000e-02 : f32
    %211 = vector.broadcast %cst_83 : f32 to vector<16x128xf32>
    %212 = arith.mulf %211, %208 : vector<16x128xf32>
    %213 = arith.select %210, %208, %212 : vector<16x128xi1>, vector<16x128xf32>
    %c448 = arith.constant 448 : index
    %c0_84 = arith.constant 0 : index
    %214 = vector.load %arg5[%c448, %c0_84] : memref<2048x128xbf16, #tpu.memory_space<vmem>>, vector<128x128xbf16>
    %215 = arith.truncf %213 : vector<16x128xf32> to vector<16x128xbf16>
    %cst_85 = arith.constant dense<0.000000e+00> : vector<16x128xf32>
    %216 = tpu.matmul %215, %214, %cst_85 {dimension_numbers = #tpu.dot_dimension_numbers<[1], [0], [0], [1], [0, 0, 1, 1], [], []>} : vector<16x128xbf16>, vector<128x128xbf16>, vector<16x128xf32> -> vector<16x128xf32>
    %c8_86 = arith.constant 8 : index
    %c0_87 = arith.constant 0 : index
    %217 = vector.load %arg6[%c8_86, %c0_87] : memref<24x256xf32, #tpu.memory_space<vmem>>, vector<1x128xf32>
    %218 = vector.broadcast %217 : vector<1x128xf32> to vector<16x128xf32>
    %219 = arith.addf %216, %218 : vector<16x128xf32>
    %cst_88 = arith.constant 0.000000e+00 : f32
    %220 = vector.broadcast %cst_88 : f32 to vector<16x128xf32>
    %221 = arith.cmpf oge, %219, %220 : vector<16x128xf32>
    %cst_89 = arith.constant 5.000000e-02 : f32
    %222 = vector.broadcast %cst_89 : f32 to vector<16x128xf32>
    %223 = arith.mulf %222, %219 : vector<16x128xf32>
    %224 = arith.select %221, %219, %223 : vector<16x128xi1>, vector<16x128xf32>
    %c576 = arith.constant 576 : index
    %c0_90 = arith.constant 0 : index
    %225 = vector.load %arg5[%c576, %c0_90] : memref<2048x128xbf16, #tpu.memory_space<vmem>>, vector<384x128xbf16>
    %c9 = arith.constant 9 : index
    %c0_91 = arith.constant 0 : index
    %226 = vector.load %arg6[%c9, %c0_91] : memref<24x256xf32, #tpu.memory_space<vmem>>, vector<1x128xf32>
    %c1_i32_92 = arith.constant 1 : i32
    %227 = tpu.dynamic_rotate %224 by %c1_i32_92 dim 0 : vector<16x128xf32>, i32 -> vector<16x128xf32>
    %cst_93 = arith.constant 0.000000e+00 : f32
    %228 = vector.shape_cast %55 : vector<16x1xi1> to vector<16x1xi1>
    %229 = vector.broadcast %228 : vector<16x1xi1> to vector<16x128xi1>
    %230 = vector.broadcast %cst_93 : f32 to vector<16x128xf32>
    %231 = arith.select %229, %227, %230 : vector<16x128xi1>, vector<16x128xf32>
    %c15_i32_94 = arith.constant 15 : i32
    %232 = tpu.dynamic_rotate %224 by %c15_i32_94 dim 0 : vector<16x128xf32>, i32 -> vector<16x128xf32>
    %cst_95 = arith.constant 0.000000e+00 : f32
    %233 = vector.shape_cast %73 : vector<16x1xi1> to vector<16x1xi1>
    %234 = vector.broadcast %233 : vector<16x1xi1> to vector<16x128xi1>
    %235 = vector.broadcast %cst_95 : f32 to vector<16x128xf32>
    %236 = arith.select %234, %232, %235 : vector<16x128xi1>, vector<16x128xf32>
    %237 = tpu.concatenate %231, %224, %236 in 1 : vector<16x128xf32>, vector<16x128xf32>, vector<16x128xf32> -> vector<16x384xf32>
    %238 = arith.truncf %237 : vector<16x384xf32> to vector<16x384xbf16>
    %cst_96 = arith.constant dense<0.000000e+00> : vector<16x128xf32>
    %239 = tpu.matmul %238, %225, %cst_96 {dimension_numbers = #tpu.dot_dimension_numbers<[1], [0], [0], [1], [0, 0, 1, 1], [], []>} : vector<16x384xbf16>, vector<384x128xbf16>, vector<16x128xf32> -> vector<16x128xf32>
    %240 = vector.broadcast %226 : vector<1x128xf32> to vector<16x128xf32>
    %241 = arith.addf %239, %240 : vector<16x128xf32>
    %cst_97 = arith.constant 0.000000e+00 : f32
    %242 = vector.broadcast %cst_97 : f32 to vector<16x128xf32>
    %243 = arith.cmpf oge, %241, %242 : vector<16x128xf32>
    %cst_98 = arith.constant 5.000000e-02 : f32
    %244 = vector.broadcast %cst_98 : f32 to vector<16x128xf32>
    %245 = arith.mulf %244, %241 : vector<16x128xf32>
    %246 = arith.select %243, %241, %245 : vector<16x128xi1>, vector<16x128xf32>
    %247 = arith.addf %246, %191 : vector<16x128xf32>
    %c960 = arith.constant 960 : index
    %c0_99 = arith.constant 0 : index
    %248 = vector.load %arg5[%c960, %c0_99] : memref<2048x128xbf16, #tpu.memory_space<vmem>>, vector<384x128xbf16>
    %c10 = arith.constant 10 : index
    %c0_100 = arith.constant 0 : index
    %249 = vector.load %arg6[%c10, %c0_100] : memref<24x256xf32, #tpu.memory_space<vmem>>, vector<1x128xf32>
    %c1_i32_101 = arith.constant 1 : i32
    %250 = tpu.dynamic_rotate %247 by %c1_i32_101 dim 0 : vector<16x128xf32>, i32 -> vector<16x128xf32>
    %cst_102 = arith.constant 0.000000e+00 : f32
    %251 = vector.shape_cast %55 : vector<16x1xi1> to vector<16x1xi1>
    %252 = vector.broadcast %251 : vector<16x1xi1> to vector<16x128xi1>
    %253 = vector.broadcast %cst_102 : f32 to vector<16x128xf32>
    %254 = arith.select %252, %250, %253 : vector<16x128xi1>, vector<16x128xf32>
    %c15_i32_103 = arith.constant 15 : i32
    %255 = tpu.dynamic_rotate %247 by %c15_i32_103 dim 0 : vector<16x128xf32>, i32 -> vector<16x128xf32>
    %cst_104 = arith.constant 0.000000e+00 : f32
    %256 = vector.shape_cast %73 : vector<16x1xi1> to vector<16x1xi1>
    %257 = vector.broadcast %256 : vector<16x1xi1> to vector<16x128xi1>
    %258 = vector.broadcast %cst_104 : f32 to vector<16x128xf32>
    %259 = arith.select %257, %255, %258 : vector<16x128xi1>, vector<16x128xf32>
    %260 = tpu.concatenate %254, %247, %259 in 1 : vector<16x128xf32>, vector<16x128xf32>, vector<16x128xf32> -> vector<16x384xf32>
    %261 = arith.truncf %260 : vector<16x384xf32> to vector<16x384xbf16>
    %cst_105 = arith.constant dense<0.000000e+00> : vector<16x128xf32>
    %262 = tpu.matmul %261, %248, %cst_105 {dimension_numbers = #tpu.dot_dimension_numbers<[1], [0], [0], [1], [0, 0, 1, 1], [], []>} : vector<16x384xbf16>, vector<384x128xbf16>, vector<16x128xf32> -> vector<16x128xf32>
    %263 = vector.broadcast %249 : vector<1x128xf32> to vector<16x128xf32>
    %264 = arith.addf %262, %263 : vector<16x128xf32>
    %cst_106 = arith.constant 0.000000e+00 : f32
    %265 = vector.broadcast %cst_106 : f32 to vector<16x128xf32>
    %266 = arith.cmpf oge, %264, %265 : vector<16x128xf32>
    %cst_107 = arith.constant 5.000000e-02 : f32
    %267 = vector.broadcast %cst_107 : f32 to vector<16x128xf32>
    %268 = arith.mulf %267, %264 : vector<16x128xf32>
    %269 = arith.select %266, %264, %268 : vector<16x128xi1>, vector<16x128xf32>
    %c1344 = arith.constant 1344 : index
    %c0_108 = arith.constant 0 : index
    %270 = vector.load %arg5[%c1344, %c0_108] : memref<2048x128xbf16, #tpu.memory_space<vmem>>, vector<128x128xbf16>
    %271 = arith.truncf %269 : vector<16x128xf32> to vector<16x128xbf16>
    %cst_109 = arith.constant dense<0.000000e+00> : vector<16x128xf32>
    %272 = tpu.matmul %271, %270, %cst_109 {dimension_numbers = #tpu.dot_dimension_numbers<[1], [0], [0], [1], [0, 0, 1, 1], [], []>} : vector<16x128xbf16>, vector<128x128xbf16>, vector<16x128xf32> -> vector<16x128xf32>
    %c11 = arith.constant 11 : index
    %c0_110 = arith.constant 0 : index
    %273 = vector.load %arg6[%c11, %c0_110] : memref<24x256xf32, #tpu.memory_space<vmem>>, vector<1x128xf32>
    %274 = vector.broadcast %273 : vector<1x128xf32> to vector<16x128xf32>
    %275 = arith.addf %272, %274 : vector<16x128xf32>
    %cst_111 = arith.constant 0.000000e+00 : f32
    %276 = vector.broadcast %cst_111 : f32 to vector<16x128xf32>
    %277 = arith.cmpf oge, %275, %276 : vector<16x128xf32>
    %cst_112 = arith.constant 5.000000e-02 : f32
    %278 = vector.broadcast %cst_112 : f32 to vector<16x128xf32>
    %279 = arith.mulf %278, %275 : vector<16x128xf32>
    %280 = arith.select %277, %275, %279 : vector<16x128xi1>, vector<16x128xf32>
    %c1472 = arith.constant 1472 : index
    %c0_113 = arith.constant 0 : index
    %281 = vector.load %arg5[%c1472, %c0_113] : memref<2048x128xbf16, #tpu.memory_space<vmem>>, vector<384x128xbf16>
    %c12 = arith.constant 12 : index
    %c0_114 = arith.constant 0 : index
    %282 = vector.load %arg6[%c12, %c0_114] : memref<24x256xf32, #tpu.memory_space<vmem>>, vector<1x128xf32>
    %c1_i32_115 = arith.constant 1 : i32
    %283 = tpu.dynamic_rotate %280 by %c1_i32_115 dim 0 : vector<16x128xf32>, i32 -> vector<16x128xf32>
    %cst_116 = arith.constant 0.000000e+00 : f32
    %284 = vector.shape_cast %55 : vector<16x1xi1> to vector<16x1xi1>
    %285 = vector.broadcast %284 : vector<16x1xi1> to vector<16x128xi1>
    %286 = vector.broadcast %cst_116 : f32 to vector<16x128xf32>
    %287 = arith.select %285, %283, %286 : vector<16x128xi1>, vector<16x128xf32>
    %c15_i32_117 = arith.constant 15 : i32
    %288 = tpu.dynamic_rotate %280 by %c15_i32_117 dim 0 : vector<16x128xf32>, i32 -> vector<16x128xf32>
    %cst_118 = arith.constant 0.000000e+00 : f32
    %289 = vector.shape_cast %73 : vector<16x1xi1> to vector<16x1xi1>
    %290 = vector.broadcast %289 : vector<16x1xi1> to vector<16x128xi1>
    %291 = vector.broadcast %cst_118 : f32 to vector<16x128xf32>
    %292 = arith.select %290, %288, %291 : vector<16x128xi1>, vector<16x128xf32>
    %293 = tpu.concatenate %287, %280, %292 in 1 : vector<16x128xf32>, vector<16x128xf32>, vector<16x128xf32> -> vector<16x384xf32>
    %294 = arith.truncf %293 : vector<16x384xf32> to vector<16x384xbf16>
    %cst_119 = arith.constant dense<0.000000e+00> : vector<16x128xf32>
    %295 = tpu.matmul %294, %281, %cst_119 {dimension_numbers = #tpu.dot_dimension_numbers<[1], [0], [0], [1], [0, 0, 1, 1], [], []>} : vector<16x384xbf16>, vector<384x128xbf16>, vector<16x128xf32> -> vector<16x128xf32>
    %296 = vector.broadcast %282 : vector<1x128xf32> to vector<16x128xf32>
    %297 = arith.addf %295, %296 : vector<16x128xf32>
    %cst_120 = arith.constant 0.000000e+00 : f32
    %298 = vector.broadcast %cst_120 : f32 to vector<16x128xf32>
    %299 = arith.cmpf oge, %297, %298 : vector<16x128xf32>
    %cst_121 = arith.constant 5.000000e-02 : f32
    %300 = vector.broadcast %cst_121 : f32 to vector<16x128xf32>
    %301 = arith.mulf %300, %297 : vector<16x128xf32>
    %302 = arith.select %299, %297, %301 : vector<16x128xi1>, vector<16x128xf32>
    %303 = arith.addf %302, %247 : vector<16x128xf32>
    %c1856 = arith.constant 1856 : index
    %c0_122 = arith.constant 0 : index
    %304 = vector.load %arg5[%c1856, %c0_122] : memref<2048x128xbf16, #tpu.memory_space<vmem>>, vector<128x128xbf16>
    %305 = arith.truncf %303 : vector<16x128xf32> to vector<16x128xbf16>
    %cst_123 = arith.constant dense<0.000000e+00> : vector<16x128xf32>
    %306 = tpu.matmul %305, %304, %cst_123 {dimension_numbers = #tpu.dot_dimension_numbers<[1], [0], [0], [1], [0, 0, 1, 1], [], []>} : vector<16x128xbf16>, vector<128x128xbf16>, vector<16x128xf32> -> vector<16x128xf32>
    %c14 = arith.constant 14 : index
    %c0_124 = arith.constant 0 : index
    %307 = vector.load %arg6[%c14, %c0_124] : memref<24x256xf32, #tpu.memory_space<vmem>>, vector<1x128xf32>
    %308 = vector.broadcast %307 : vector<1x128xf32> to vector<16x128xf32>
    %309 = arith.addf %306, %308 : vector<16x128xf32>
    %c0_125 = arith.constant 0 : index
    %c0_126 = arith.constant 0 : index
    %310 = vector.load %arg3[%c0_125, %c0_126] : memref<40x16xbf16, #tpu.memory_space<vmem>>, vector<40x16xbf16>
    %311 = arith.truncf %309 : vector<16x128xf32> to vector<16x128xbf16>
    %cst_127 = arith.constant dense<0.000000e+00> : vector<40x128xf32>
    %312 = tpu.matmul %310, %311, %cst_127 {dimension_numbers = #tpu.dot_dimension_numbers<[1], [0], [0], [1], [0, 0, 1, 1], [], []>} : vector<40x16xbf16>, vector<16x128xbf16>, vector<40x128xf32> -> vector<40x128xf32>
    %313 = vector.extract_strided_slice %312 {offsets = [0, 0], sizes = [8, 128], strides = [1, 1]} : vector<40x128xf32> to vector<8x128xf32>
    %314 = vector.extract_strided_slice %312 {offsets = [8, 0], sizes = [8, 128], strides = [1, 1]} : vector<40x128xf32> to vector<8x128xf32>
    %315 = vector.extract_strided_slice %312 {offsets = [16, 0], sizes = [8, 128], strides = [1, 1]} : vector<40x128xf32> to vector<8x128xf32>
    %316 = vector.extract_strided_slice %312 {offsets = [24, 0], sizes = [8, 128], strides = [1, 1]} : vector<40x128xf32> to vector<8x128xf32>
    %317 = vector.extract_strided_slice %312 {offsets = [32, 0], sizes = [8, 128], strides = [1, 1]} : vector<40x128xf32> to vector<8x128xf32>
    %318 = tpu.concatenate %313, %314, %315, %316, %317 in 1 : vector<8x128xf32>, vector<8x128xf32>, vector<8x128xf32>, vector<8x128xf32>, vector<8x128xf32> -> vector<8x640xf32>
    tpu.wait_dma2 semaphore(%arg10 : memref<!tpu.dma_semaphore, #tpu.memory_space<semaphore_mem>>) src(%arg7 : memref<640x256xbf16, #tpu.memory_space<any>>) dst(%arg9 : memref<640x256xbf16, #tpu.memory_space<vmem>>)
    %c0_128 = arith.constant 0 : index
    %c0_129 = arith.constant 0 : index
    %319 = vector.load %arg9[%c0_128, %c0_129] : memref<640x256xbf16, #tpu.memory_space<vmem>>, vector<640x256xbf16>
    %320 = arith.truncf %318 : vector<8x640xf32> to vector<8x640xbf16>
    %cst_130 = arith.constant dense<0.000000e+00> : vector<8x256xf32>
    %321 = tpu.matmul %320, %319, %cst_130 {dimension_numbers = #tpu.dot_dimension_numbers<[1], [0], [0], [1], [0, 0, 1, 1], [], []>} : vector<8x640xbf16>, vector<640x256xbf16>, vector<8x256xf32> -> vector<8x256xf32>
    %c15 = arith.constant 15 : index
    %c0_131 = arith.constant 0 : index
    %322 = vector.load %arg6[%c15, %c0_131] : memref<24x256xf32, #tpu.memory_space<vmem>>, vector<1x256xf32>
    %323 = vector.broadcast %322 : vector<1x256xf32> to vector<8x256xf32>
    %324 = arith.addf %321, %323 : vector<8x256xf32>
    %cst_132 = arith.constant 0.000000e+00 : f32
    %325 = vector.broadcast %cst_132 : f32 to vector<8x256xf32>
    %326 = arith.cmpf oge, %324, %325 : vector<8x256xf32>
    %cst_133 = arith.constant 1.000000e-01 : f32
    %327 = vector.broadcast %cst_133 : f32 to vector<8x256xf32>
    %328 = arith.mulf %327, %324 : vector<8x256xf32>
    %329 = arith.select %326, %324, %328 : vector<8x256xi1>, vector<8x256xf32>
    %c904 = arith.constant 904 : index
    %c0_134 = arith.constant 0 : index
    %330 = vector.load %arg4[%c904, %c0_134] : memref<1160x64xbf16, #tpu.memory_space<vmem>>, vector<256x64xbf16>
    %331 = arith.truncf %329 : vector<8x256xf32> to vector<8x256xbf16>
    %cst_135 = arith.constant dense<0.000000e+00> : vector<8x64xf32>
    %332 = tpu.matmul %331, %330, %cst_135 {dimension_numbers = #tpu.dot_dimension_numbers<[1], [0], [0], [1], [0, 0, 1, 1], [], []>} : vector<8x256xbf16>, vector<256x64xbf16>, vector<8x64xf32> -> vector<8x64xf32>
    %c16 = arith.constant 16 : index
    %c0_136 = arith.constant 0 : index
    %333 = vector.load %arg6[%c16, %c0_136] : memref<24x256xf32, #tpu.memory_space<vmem>>, vector<1x64xf32>
    %334 = vector.broadcast %333 : vector<1x64xf32> to vector<8x64xf32>
    %335 = arith.addf %332, %334 : vector<8x64xf32>
    %c1984 = arith.constant 1984 : index
    %c0_137 = arith.constant 0 : index
    %336 = vector.load %arg5[%c1984, %c0_137] : memref<2048x128xbf16, #tpu.memory_space<vmem>>, vector<64x128xbf16>
    %337 = arith.truncf %335 : vector<8x64xf32> to vector<8x64xbf16>
    %cst_138 = arith.constant dense<0.000000e+00> : vector<8x128xf32>
    %338 = tpu.matmul %337, %336, %cst_138 {dimension_numbers = #tpu.dot_dimension_numbers<[1], [0], [0], [1], [0, 0, 1, 1], [], []>} : vector<8x64xbf16>, vector<64x128xbf16>, vector<8x128xf32> -> vector<8x128xf32>
    %c17 = arith.constant 17 : index
    %c0_139 = arith.constant 0 : index
    %339 = vector.load %arg6[%c17, %c0_139] : memref<24x256xf32, #tpu.memory_space<vmem>>, vector<1x128xf32>
    %340 = vector.broadcast %339 : vector<1x128xf32> to vector<8x128xf32>
    %341 = arith.addf %338, %340 : vector<8x128xf32>
    %c0_140 = arith.constant 0 : index
    %c0_141 = arith.constant 0 : index
    %342 = vector.load %arg8[%c0_140, %c0_141] : memref<8x128xf32, #tpu.memory_space<vmem>>, vector<8x128xf32>
    tpu.vector_store %arg8[%c0_140, %c0_141], %341 {strides = array<i32>} : memref<8x128xf32, #tpu.memory_space<vmem>>, vector<8x128xf32>,
    return
  }
  func.func @transform_0(%arg0: i32) -> (i32, i32) {
    %c0_i32 = arith.constant 0 : i32
    %c0_i32_0 = arith.constant 0 : i32
    %c0_i32_1 = arith.constant 0 : i32
    return %c0_i32, %c0_i32_0 : i32, i32
  }
  func.func @transform_1(%arg0: i32) -> (i32, i32) {
    %c0_i32 = arith.constant 0 : i32
    %c0_i32_0 = arith.constant 0 : i32
    %c0_i32_1 = arith.constant 0 : i32
    return %c0_i32, %c0_i32_0 : i32, i32
  }
  func.func @transform_2(%arg0: i32) -> (i32, i32) {
    %c0_i32 = arith.constant 0 : i32
    %c0_i32_0 = arith.constant 0 : i32
    %c0_i32_1 = arith.constant 0 : i32
    return %c0_i32, %c0_i32_0 : i32, i32
  }
  func.func @transform_3(%arg0: i32) -> (i32, i32) {
    %c0_i32 = arith.constant 0 : i32
    %c0_i32_0 = arith.constant 0 : i32
    %c0_i32_1 = arith.constant 0 : i32
    return %c0_i32, %c0_i32_0 : i32, i32
  }
  func.func @transform_4(%arg0: i32) -> (i32, i32) {
    %c0_i32 = arith.constant 0 : i32
    %c0_i32_0 = arith.constant 0 : i32
    %c0_i32_1 = arith.constant 0 : i32
    return %c0_i32, %c0_i32_0 : i32, i32
  }
  func.func @transform_5(%arg0: i32) -> (i32, i32) {
    %c0_i32 = arith.constant 0 : i32
    %c0_i32_0 = arith.constant 0 : i32
    %c0_i32_1 = arith.constant 0 : i32
    return %c0_i32, %c0_i32_0 : i32, i32
  }
  func.func @transform_7(%arg0: i32) -> (i32, i32) {
    %c0_i32 = arith.constant 0 : i32
    %c0_i32_0 = arith.constant 0 : i32
    %c0_i32_1 = arith.constant 0 : i32
    return %c0_i32, %c0_i32_0 : i32, i32
  }
}

</mosaic_0001>

<llo_original>
// kernel: tpu_custom_call.1
$region0: #{tpu_custom_call.1}
  #allocation0 [shape = 'u32[]', space=smem, size = 0x4, offset = 0x4, fixed_abs, tag = 'smem constant byte address 0x4 - core index']
  #allocation1 [shape = 'u32[144,128]{1,0:T(1,128)}', space=vmem, size = 0x12000, scoped, tag = 'internal scratch']
  #allocation2 [shape = 'bf16[640,256]{1,0:T(16,128)(2,1)}', space=vmem, size = 0x50000, scoped, tag = 'scratch operand']
  #allocation3 [shape = 's32[1]{0}', space=sflag, size = 0x4, scoped, tag = 'scratch operand']
  #allocation8 [shape = 's32[]', space=sflag, size = 0x4, offset = 0, fixed_abs, tag = 'sflag constant byte address 0x0 - dummy sync flag']
  %s0 = inlined_call_operand.vmem [shape: f32[32,8], index: 0, kind: input, shape index: {}]
  %s1 = inlined_call_operand.vmem [shape: bf16[16,32], index: 1, kind: input, shape index: {}]
  %s2 = inlined_call_operand.vmem [shape: bf16[40,16], index: 2, kind: input, shape index: {}]
  %s3 = inlined_call_operand.vmem [shape: bf16[1160,64], index: 3, kind: input, shape index: {}]
  %s4 = inlined_call_operand.hbm [shape: bf16[2048,128], index: 4, kind: input, shape index: {}]
  %s5 = inlined_call_operand.vmem [shape: f32[24,256], index: 5, kind: input, shape index: {}]
  %s6 = inlined_call_operand.vmem [shape: bf16[640,256], index: 6, kind: input, shape index: {}]
  %s7 = inlined_call_operand.hbm [shape: f32[8,128], index: 7, kind: output, shape index: {}]
  %s8 = sld [smem:[#allocation0]]
  $region75: #{tpu_custom_call.1} parent=0
    _
  %s10 = ssub.s32 1, %s8
  %s11 = scalar_select 0, %s10, %s8
  $region1: #{tpu_custom_call.1} parent=0
    #allocation4 [shape = 'u8[524288]{0}', space=vmem, size = 0x80000, scoped, tag = 'input window, operand 4, single buffered']
    #allocation5 [shape = 's32[1]{0}', space=sflag, size = 0x4, scoped, tag = 'scoped memory for tpu_custom_call.1']
    #allocation6 [shape = 's32[1]{0}', space=sflag, size = 0x4, scoped, tag = 'scoped memory for tpu_custom_call.1']
    #allocation7 [shape = 'u8[4096]{0}', space=vmem, size = 0x1000, scoped, tag = 'output window, operand 0, single buffered']
    %12 = vsyncpa [#allocation5], 0
    %13 = vsyncpa [#allocation6], 0
    // Predicated region
    $region2: #{tpu_custom_call.1} parent=1 // pred_check
      _
    $region3: #{tpu_custom_call.1} parent=1 // pred_check_branch
      %15 = sbr.rel (0) target = $region5
    $region4: #{tpu_custom_call.1} parent=1 // pred_region
      _
    $region5: #{tpu_custom_call.1} parent=1 // pred_fallthru
      _
    // Predicated region
    $region6: #{tpu_custom_call.1} parent=1 // pred_check
      _
    $region7: #{tpu_custom_call.1} parent=1 // pred_check_branch
      %17 = sbr.rel (0) target = $region9
    $region8: #{tpu_custom_call.1} parent=1 // pred_region
      _
    $region9: #{tpu_custom_call.1} parent=1 // pred_fallthru
      _
    // Predicated region
    $region10: #{tpu_custom_call.1} parent=1 // pred_check
      _
    $region11: #{tpu_custom_call.1} parent=1 // pred_check_branch
      %19 = sbr.rel (0) target = $region13
    $region12: #{tpu_custom_call.1} parent=1 // pred_region
      _
    $region13: #{tpu_custom_call.1} parent=1 // pred_fallthru
      _
    // Predicated region
    $region14: #{tpu_custom_call.1} parent=1 // pred_check
      _
    $region15: #{tpu_custom_call.1} parent=1 // pred_check_branch
      %21 = sbr.rel (0) target = $region17
    $region16: #{tpu_custom_call.1} parent=1 // pred_region
      _
    $region17: #{tpu_custom_call.1} parent=1 // pred_fallthru
      _
    // Predicated region
    $region18: #{tpu_custom_call.1} parent=1 // pred_check
      _
    $region19: #{tpu_custom_call.1} parent=1 // pred_check_branch
      %23 = sbr.rel (0) target = $region21
    $region20: #{tpu_custom_call.1} parent=1 // pred_region
      %s25 = ssub.s32 16384, 16384
      %26 = vsyncadd [#allocation5], %s25
      %s27 = sshll.u32 [#allocation4], 4
      %s28 = int_to_ptr.vmem [resolvable:$true] %s27
      %33 = dma.hbm_to_vmem [thread:$0]  %s4, 16384, %s28, [#allocation5], 64, 64, 4
    $region21: #{tpu_custom_call.1} parent=1 // pred_fallthru
      _
    // Predicated region
    $region22: #{tpu_custom_call.1} parent=1 // pred_check
      _
    $region23: #{tpu_custom_call.1} parent=1 // pred_check_branch
      %35 = sbr.rel (0) target = $region25
    $region24: #{tpu_custom_call.1} parent=1 // pred_region
      _
    $region25: #{tpu_custom_call.1} parent=1 // pred_fallthru
      _
    // Predicated region
    $region26: #{tpu_custom_call.1} parent=1 // pred_check
      _
    $region27: #{tpu_custom_call.1} parent=1 // pred_check_branch
      %37 = sbr.rel (0) target = $region29
    $region28: #{tpu_custom_call.1} parent=1 // pred_region
      %38 = dma.done [#allocation5], 16384
    $region29: #{tpu_custom_call.1} parent=1 // pred_fallthru
      _
    %p41 = scmp.lt.u32.totalorder 4, 8
    %p42 = pneg %p41
    // Predicated region
    $region30: #{tpu_custom_call.1} parent=1 // pred_check
      _
    $region31: #{tpu_custom_call.1} parent=1 // pred_check_branch
      %44 = sbr.rel (%p41) target = $region33
    $region32: #{tpu_custom_call.1} parent=1 // pred_region
      %s377 = sand.u32 4, 7
      %p378 = scmp.eq.s32.totalorder %s377, 0
      %p379 = pneg %p378
      // Predicated region
      $region45: #{tpu_custom_call.1} parent=32 // pred_check
        _
      $region46: #{tpu_custom_call.1} parent=32 // pred_check_branch
        %381 = sbr.rel (%p378) target = $region48
      $region47: #{tpu_custom_call.1} parent=32 // pred_region
        %s382 = sand.u32 4, 7
        %s383 = ssub.s32 4, %s382
        %s384 = scalar_lea.vmem %s6, %s383
        %s385 = ssub.s32 4, %s382
        %s386 = scalar_lea.vmem [#allocation2], %s385
        loop: start=0, step=1, limit=1
        $region49: #{tpu_custom_call.1} parent=47 // loop_pre_header
          _
        $region50: #{tpu_custom_call.1} parent=47 // loop_header
          %s388 = sphi 0, %s392
          %p389 = scmp.ge.s32.totalorder %s388, 1
          %s393 = sphi %s6, %s6
          %s394 = sphi [#allocation2], [#allocation2]
        $region51: #{tpu_custom_call.1} parent=47 // loop_header_branch
          %391 = sbr.rel (%p389) target = $region55
        $region52: #{tpu_custom_call.1} parent=47 // loop_body
          _
        $region53: #{tpu_custom_call.1} parent=47 // loop_footer
          %s392 = sadd.s32 1, %s388
        $region54: #{tpu_custom_call.1} parent=47 // loop_footer_branch
          %387 = sbr.rel target = $region50
        $region55: #{tpu_custom_call.1} parent=47 // loop_exit
          _
        %s395 = sshllo.u32 0, %s382
        loop: start=0, step=1, limit=1
        $region56: #{tpu_custom_call.1} parent=47 // loop_pre_header
          _
        $region57: #{tpu_custom_call.1} parent=47 // loop_header
          %s397 = sphi 0, %s401
          %p398 = scmp.ge.s32.totalorder %s397, 1
          %s402 = sphi %s384, %s384
          %s403 = sphi %s386, %s386
        $region58: #{tpu_custom_call.1} parent=47 // loop_header_branch
          %400 = sbr.rel (%p398) target = $region62
        $region59: #{tpu_custom_call.1} parent=47 // loop_body
          %v404 = vld [vmem:[%s402] sm:%s395]
          %405 = vst [vmem:[%s403] sm:%s395] %v404
          %v406 = vld [vmem:[%s402 + $0x8] sm:%s395]
          %407 = vst [vmem:[%s403 + $0x4] sm:%s395] %v406
          %v408 = vld [vmem:[%s402 + $0x4] sm:%s395]
          %409 = vst [vmem:[%s403 + $0x8] sm:%s395] %v408
          %v410 = vld [vmem:[%s402 + $0xc] sm:%s395]
          %411 = vst [vmem:[%s403 + $0xc] sm:%s395] %v410
          %v412 = vld [vmem:[%s402 + $0x10] sm:%s395]
          %413 = vst [vmem:[%s403 + $0x10] sm:%s395] %v412
          %v414 = vld [vmem:[%s402 + $0x18] sm:%s395]
          %415 = vst [vmem:[%s403 + $0x14] sm:%s395] %v414
          %v416 = vld [vmem:[%s402 + $0x14] sm:%s395]
          %417 = vst [vmem:[%s403 + $0x18] sm:%s395] %v416
          %v418 = vld [vmem:[%s402 + $0x1c] sm:%s395]
          %419 = vst [vmem:[%s403 + $0x1c] sm:%s395] %v418
          %v420 = vld [vmem:[%s402 + $0x20] sm:%s395]
          %421 = vst [vmem:[%s403 + $0x20] sm:%s395] %v420
          %v422 = vld [vmem:[%s402 + $0x28] sm:%s395]
          %423 = vst [vmem:[%s403 + $0x24] sm:%s395] %v422
          %v424 = vld [vmem:[%s402 + $0x24] sm:%s395]
          %425 = vst [vmem:[%s403 + $0x28] sm:%s395] %v424
          %v426 = vld [vmem:[%s402 + $0x2c] sm:%s395]
          %427 = vst [vmem:[%s403 + $0x2c] sm:%s395] %v426
          %v428 = vld [vmem:[%s402 + $0x30] sm:%s395]
          %429 = vst [vmem:[%s403 + $0x30] sm:%s395] %v428
          %v430 = vld [vmem:[%s402 + $0x38] sm:%s395]
          %431 = vst [vmem:[%s403 + $0x34] sm:%s395] %v430
          %v432 = vld [vmem:[%s402 + $0x34] sm:%s395]
          %433 = vst [vmem:[%s403 + $0x38] sm:%s395] %v432
          %v434 = vld [vmem:[%s402 + $0x3c] sm:%s395]
          %435 = vst [vmem:[%s403 + $0x3c] sm:%s395] %v434
          %v436 = vld [vmem:[%s402 + $0x40] sm:%s395]
          %437 = vst [vmem:[%s403 + $0x40] sm:%s395] %v436
          %v438 = vld [vmem:[%s402 + $0x48] sm:%s395]
          %439 = vst [vmem:[%s403 + $0x44] sm:%s395] %v438
          %v440 = vld [vmem:[%s402 + $0x44] sm:%s395]
          %441 = vst [vmem:[%s403 + $0x48] sm:%s395] %v440
          %v442 = vld [vmem:[%s402 + $0x4c] sm:%s395]
          %443 = vst [vmem:[%s403 + $0x4c] sm:%s395] %v442
          %v444 = vld [vmem:[%s402 + $0x50] sm:%s395]
          %445 = vst [vmem:[%s403 + $0x50] sm:%s395] %v444
          %v446 = vld [vmem:[%s402 + $0x58] sm:%s395]
          %447 = vst [vmem:[%s403 + $0x54] sm:%s395] %v446
          %v448 = vld [vmem:[%s402 + $0x54] sm:%s395]
          %449 = vst [vmem:[%s403 + $0x58] sm:%s395] %v448
          %v450 = vld [vmem:[%s402 + $0x5c] sm:%s395]
          %451 = vst [vmem:[%s403 + $0x5c] sm:%s395] %v450
          %v452 = vld [vmem:[%s402 + $0x60] sm:%s395]
          %453 = vst [vmem:[%s403 + $0x60] sm:%s395] %v452
          %v454 = vld [vmem:[%s402 + $0x68] sm:%s395]
          %455 = vst [vmem:[%s403 + $0x64] sm:%s395] %v454
          %v456 = vld [vmem:[%s402 + $0x64] sm:%s395]
          %457 = vst [vmem:[%s403 + $0x68] sm:%s395] %v456
          %v458 = vld [vmem:[%s402 + $0x6c] sm:%s395]
          %459 = vst [vmem:[%s403 + $0x6c] sm:%s395] %v458
          %v460 = vld [vmem:[%s402 + $0x70] sm:%s395]
          %461 = vst [vmem:[%s403 + $0x70] sm:%s395] %v460
          %v462 = vld [vmem:[%s402 + $0x78] sm:%s395]
          %463 = vst [vmem:[%s403 + $0x74] sm:%s395] %v462
          %v464 = vld [vmem:[%s402 + $0x74] sm:%s395]
          %465 = vst [vmem:[%s403 + $0x78] sm:%s395] %v464
          %v466 = vld [vmem:[%s402 + $0x7c] sm:%s395]
          %467 = vst [vmem:[%s403 + $0x7c] sm:%s395] %v466
          %v468 = vld [vmem:[%s402 + $0x80] sm:%s395]
          %469 = vst [vmem:[%s403 + $0x80] sm:%s395] %v468
          %v470 = vld [vmem:[%s402 + $0x88] sm:%s395]
          %471 = vst [vmem:[%s403 + $0x84] sm:%s395] %v470
          %v472 = vld [vmem:[%s402 + $0x84] sm:%s395]
          %473 = vst [vmem:[%s403 + $0x88] sm:%s395] %v472
          %v474 = vld [vmem:[%s402 + $0x8c] sm:%s395]
          %475 = vst [vmem:[%s403 + $0x8c] sm:%s395] %v474
          %v476 = vld [vmem:[%s402 + $0x90] sm:%s395]
          %477 = vst [vmem:[%s403 + $0x90] sm:%s395] %v476
          %v478 = vld [vmem:[%s402 + $0x98] sm:%s395]
          %479 = vst [vmem:[%s403 + $0x94] sm:%s395] %v478
          %v480 = vld [vmem:[%s402 + $0x94] sm:%s395]
          %481 = vst [vmem:[%s403 + $0x98] sm:%s395] %v480
          %v482 = vld [vmem:[%s402 + $0x9c] sm:%s395]
          %483 = vst [vmem:[%s403 + $0x9c] sm:%s395] %v482
          %v484 = vld [vmem:[%s402 + $0xa0] sm:%s395]
          %485 = vst [vmem:[%s403 + $0xa0] sm:%s395] %v484
          %v486 = vld [vmem:[%s402 + $0xa8] sm:%s395]
          %487 = vst [vmem:[%s403 + $0xa4] sm:%s395] %v486
          %v488 = vld [vmem:[%s402 + $0xa4] sm:%s395]
          %489 = vst [vmem:[%s403 + $0xa8] sm:%s395] %v488
          %v490 = vld [vmem:[%s402 + $0xac] sm:%s395]
          %491 = vst [vmem:[%s403 + $0xac] sm:%s395] %v490
          %v492 = vld [vmem:[%s402 + $0xb0] sm:%s395]
          %493 = vst [vmem:[%s403 + $0xb0] sm:%s395] %v492
          %v494 = vld [vmem:[%s402 + $0xb8] sm:%s395]
          %495 = vst [vmem:[%s403 + $0xb4] sm:%s395] %v494
          %v496 = vld [vmem:[%s402 + $0xb4] sm:%s395]
          %497 = vst [vmem:[%s403 + $0xb8] sm:%s395] %v496
          %v498 = vld [vmem:[%s402 + $0xbc] sm:%s395]
          %499 = vst [vmem:[%s403 + $0xbc] sm:%s395] %v498
          %v500 = vld [vmem:[%s402 + $0xc0] sm:%s395]
          %501 = vst [vmem:[%s403 + $0xc0] sm:%s395] %v500
          %v502 = vld [vmem:[%s402 + $0xc8] sm:%s395]
          %503 = vst [vmem:[%s403 + $0xc4] sm:%s395] %v502
          %v504 = vld [vmem:[%s402 + $0xc4] sm:%s395]
          %505 = vst [vmem:[%s403 + $0xc8] sm:%s395] %v504
          %v506 = vld [vmem:[%s402 + $0xcc] sm:%s395]
          %507 = vst [vmem:[%s403 + $0xcc] sm:%s395] %v506
          %v508 = vld [vmem:[%s402 + $0xd0] sm:%s395]
          %509 = vst [vmem:[%s403 + $0xd0] sm:%s395] %v508
          %v510 = vld [vmem:[%s402 + $0xd8] sm:%s395]
          %511 = vst [vmem:[%s403 + $0xd4] sm:%s395] %v510
          %v512 = vld [vmem:[%s402 + $0xd4] sm:%s395]
          %513 = vst [vmem:[%s403 + $0xd8] sm:%s395] %v512
          %v514 = vld [vmem:[%s402 + $0xdc] sm:%s395]
          %515 = vst [vmem:[%s403 + $0xdc] sm:%s395] %v514
          %v516 = vld [vmem:[%s402 + $0xe0] sm:%s395]
          %517 = vst [vmem:[%s403 + $0xe0] sm:%s395] %v516
          %v518 = vld [vmem:[%s402 + $0xe8] sm:%s395]
          %519 = vst [vmem:[%s403 + $0xe4] sm:%s395] %v518
          %v520 = vld [vmem:[%s402 + $0xe4] sm:%s395]
          %521 = vst [vmem:[%s403 + $0xe8] sm:%s395] %v520
          %v522 = vld [vmem:[%s402 + $0xec] sm:%s395]
          %523 = vst [vmem:[%s403 + $0xec] sm:%s395] %v522
          %v524 = vld [vmem:[%s402 + $0xf0] sm:%s395]
          %525 = vst [vmem:[%s403 + $0xf0] sm:%s395] %v524
          %v526 = vld [vmem:[%s402 + $0xf8] sm:%s395]
          %527 = vst [vmem:[%s403 + $0xf4] sm:%s395] %v526
          %v528 = vld [vmem:[%s402 + $0xf4] sm:%s395]
          %529 = vst [vmem:[%s403 + $0xf8] sm:%s395] %v528
          %v530 = vld [vmem:[%s402 + $0xfc] sm:%s395]
          %531 = vst [vmem:[%s403 + $0xfc] sm:%s395] %v530
          %v532 = vld [vmem:[%s402 + $0x100] sm:%s395]
          %533 = vst [vmem:[%s403 + $0x100] sm:%s395] %v532
          %v534 = vld [vmem:[%s402 + $0x108] sm:%s395]
          %535 = vst [vmem:[%s403 + $0x104] sm:%s395] %v534
          %v536 = vld [vmem:[%s402 + $0x104] sm:%s395]
          %537 = vst [vmem:[%s403 + $0x108] sm:%s395] %v536
          %v538 = vld [vmem:[%s402 + $0x10c] sm:%s395]
          %539 = vst [vmem:[%s403 + $0x10c] sm:%s395] %v538
          %v540 = vld [vmem:[%s402 + $0x110] sm:%s395]
          %541 = vst [vmem:[%s403 + $0x110] sm:%s395] %v540
          %v542 = vld [vmem:[%s402 + $0x118] sm:%s395]
          %543 = vst [vmem:[%s403 + $0x114] sm:%s395] %v542
          %v544 = vld [vmem:[%s402 + $0x114] sm:%s395]
          %545 = vst [vmem:[%s403 + $0x118] sm:%s395] %v544
          %v546 = vld [vmem:[%s402 + $0x11c] sm:%s395]
          %547 = vst [vmem:[%s403 + $0x11c] sm:%s395] %v546
          %v548 = vld [vmem:[%s402 + $0x120] sm:%s395]
          %549 = vst [vmem:[%s403 + $0x120] sm:%s395] %v548
          %v550 = vld [vmem:[%s402 + $0x128] sm:%s395]
          %551 = vst [vmem:[%s403 + $0x124] sm:%s395] %v550
          %v552 = vld [vmem:[%s402 + $0x124] sm:%s395]
          %553 = vst [vmem:[%s403 + $0x128] sm:%s395] %v552
          %v554 = vld [vmem:[%s402 + $0x12c] sm:%s395]
          %555 = vst [vmem:[%s403 + $0x12c] sm:%s395] %v554
          %v556 = vld [vmem:[%s402 + $0x130] sm:%s395]
          %557 = vst [vmem:[%s403 + $0x130] sm:%s395] %v556
          %v558 = vld [vmem:[%s402 + $0x138] sm:%s395]
          %559 = vst [vmem:[%s403 + $0x134] sm:%s395] %v558
          %v560 = vld [vmem:[%s402 + $0x134] sm:%s395]
          %561 = vst [vmem:[%s403 + $0x138] sm:%s395] %v560
          %v562 = vld [vmem:[%s402 + $0x13c] sm:%s395]
          %563 = vst [vmem:[%s403 + $0x13c] sm:%s395] %v562
          %v564 = vld [vmem:[%s402 + $0x140] sm:%s395]
          %565 = vst [vmem:[%s403 + $0x140] sm:%s395] %v564
          %v566 = vld [vmem:[%s402 + $0x148] sm:%s395]
          %567 = vst [vmem:[%s403 + $0x144] sm:%s395] %v566
          %v568 = vld [vmem:[%s402 + $0x144] sm:%s395]
          %569 = vst [vmem:[%s403 + $0x148] sm:%s395] %v568
          %v570 = vld [vmem:[%s402 + $0x14c] sm:%s395]
          %571 = vst [vmem:[%s403 + $0x14c] sm:%s395] %v570
          %v572 = vld [vmem:[%s402 + $0x150] sm:%s395]
          %573 = vst [vmem:[%s403 + $0x150] sm:%s395] %v572
          %v574 = vld [vmem:[%s402 + $0x158] sm:%s395]
          %575 = vst [vmem:[%s403 + $0x154] sm:%s395] %v574
          %v576 = vld [vmem:[%s402 + $0x154] sm:%s395]
          %577 = vst [vmem:[%s403 + $0x158] sm:%s395] %v576
          %v578 = vld [vmem:[%s402 + $0x15c] sm:%s395]
          %579 = vst [vmem:[%s403 + $0x15c] sm:%s395] %v578
          %v580 = vld [vmem:[%s402 + $0x160] sm:%s395]
          %581 = vst [vmem:[%s403 + $0x160] sm:%s395] %v580
          %v582 = vld [vmem:[%s402 + $0x168] sm:%s395]
          %583 = vst [vmem:[%s403 + $0x164] sm:%s395] %v582
          %v584 = vld [vmem:[%s402 + $0x164] sm:%s395]
          %585 = vst [vmem:[%s403 + $0x168] sm:%s395] %v584
          %v586 = vld [vmem:[%s402 + $0x16c] sm:%s395]
          %587 = vst [vmem:[%s403 + $0x16c] sm:%s395] %v586
          %v588 = vld [vmem:[%s402 + $0x170] sm:%s395]
          %589 = vst [vmem:[%s403 + $0x170] sm:%s395] %v588
          %v590 = vld [vmem:[%s402 + $0x178] sm:%s395]
          %591 = vst [vmem:[%s403 + $0x174] sm:%s395] %v590
          %v592 = vld [vmem:[%s402 + $0x174] sm:%s395]
          %593 = vst [vmem:[%s403 + $0x178] sm:%s395] %v592
          %v594 = vld [vmem:[%s402 + $0x17c] sm:%s395]
          %595 = vst [vmem:[%s403 + $0x17c] sm:%s395] %v594
          %v596 = vld [vmem:[%s402 + $0x180] sm:%s395]
          %597 = vst [vmem:[%s403 + $0x180] sm:%s395] %v596
          %v598 = vld [vmem:[%s402 + $0x188] sm:%s395]
          %599 = vst [vmem:[%s403 + $0x184] sm:%s395] %v598
          %v600 = vld [vmem:[%s402 + $0x184] sm:%s395]
          %601 = vst [vmem:[%s403 + $0x188] sm:%s395] %v600
          %v602 = vld [vmem:[%s402 + $0x18c] sm:%s395]
          %603 = vst [vmem:[%s403 + $0x18c] sm:%s395] %v602
          %v604 = vld [vmem:[%s402 + $0x190] sm:%s395]
          %605 = vst [vmem:[%s403 + $0x190] sm:%s395] %v604
          %v606 = vld [vmem:[%s402 + $0x198] sm:%s395]
          %607 = vst [vmem:[%s403 + $0x194] sm:%s395] %v606
          %v608 = vld [vmem:[%s402 + $0x194] sm:%s395]
          %609 = vst [vmem:[%s403 + $0x198] sm:%s395] %v608
          %v610 = vld [vmem:[%s402 + $0x19c] sm:%s395]
          %611 = vst [vmem:[%s403 + $0x19c] sm:%s395] %v610
          %v612 = vld [vmem:[%s402 + $0x1a0] sm:%s395]
          %613 = vst [vmem:[%s403 + $0x1a0] sm:%s395] %v612
          %v614 = vld [vmem:[%s402 + $0x1a8] sm:%s395]
          %615 = vst [vmem:[%s403 + $0x1a4] sm:%s395] %v614
          %v616 = vld [vmem:[%s402 + $0x1a4] sm:%s395]
          %617 = vst [vmem:[%s403 + $0x1a8] sm:%s395] %v616
          %v618 = vld [vmem:[%s402 + $0x1ac] sm:%s395]
          %619 = vst [vmem:[%s403 + $0x1ac] sm:%s395] %v618
          %v620 = vld [vmem:[%s402 + $0x1b0] sm:%s395]
          %621 = vst [vmem:[%s403 + $0x1b0] sm:%s395] %v620
          %v622 = vld [vmem:[%s402 + $0x1b8] sm:%s395]
          %623 = vst [vmem:[%s403 + $0x1b4] sm:%s395] %v622
          %v624 = vld [vmem:[%s402 + $0x1b4] sm:%s395]
          %625 = vst [vmem:[%s403 + $0x1b8] sm:%s395] %v624
          %v626 = vld [vmem:[%s402 + $0x1bc] sm:%s395]
          %627 = vst [vmem:[%s403 + $0x1bc] sm:%s395] %v626
          %v628 = vld [vmem:[%s402 + $0x1c0] sm:%s395]
          %629 = vst [vmem:[%s403 + $0x1c0] sm:%s395] %v628
          %v630 = vld [vmem:[%s402 + $0x1c8] sm:%s395]
          %631 = vst [vmem:[%s403 + $0x1c4] sm:%s395] %v630
          %v632 = vld [vmem:[%s402 + $0x1c4] sm:%s395]
          %633 = vst [vmem:[%s403 + $0x1c8] sm:%s395] %v632
          %v634 = vld [vmem:[%s402 + $0x1cc] sm:%s395]
          %635 = vst [vmem:[%s403 + $0x1cc] sm:%s395] %v634
          %v636 = vld [vmem:[%s402 + $0x1d0] sm:%s395]
          %637 = vst [vmem:[%s403 + $0x1d0] sm:%s395] %v636
          %v638 = vld [vmem:[%s402 + $0x1d8] sm:%s395]
          %639 = vst [vmem:[%s403 + $0x1d4] sm:%s395] %v638
          %v640 = vld [vmem:[%s402 + $0x1d4] sm:%s395]
          %641 = vst [vmem:[%s403 + $0x1d8] sm:%s395] %v640
          %v642 = vld [vmem:[%s402 + $0x1dc] sm:%s395]
          %643 = vst [vmem:[%s403 + $0x1dc] sm:%s395] %v642
          %v644 = vld [vmem:[%s402 + $0x1e0] sm:%s395]
          %645 = vst [vmem:[%s403 + $0x1e0] sm:%s395] %v644
          %v646 = vld [vmem:[%s402 + $0x1e8] sm:%s395]
          %647 = vst [vmem:[%s403 + $0x1e4] sm:%s395] %v646
          %v648 = vld [vmem:[%s402 + $0x1e4] sm:%s395]
          %649 = vst [vmem:[%s403 + $0x1e8] sm:%s395] %v648
          %v650 = vld [vmem:[%s402 + $0x1ec] sm:%s395]
          %651 = vst [vmem:[%s403 + $0x1ec] sm:%s395] %v650
          %v652 = vld [vmem:[%s402 + $0x1f0] sm:%s395]
          %653 = vst [vmem:[%s403 + $0x1f0] sm:%s395] %v652
          %v654 = vld [vmem:[%s402 + $0x1f8] sm:%s395]
          %655 = vst [vmem:[%s403 + $0x1f4] sm:%s395] %v654
          %v656 = vld [vmem:[%s402 + $0x1f4] sm:%s395]
          %657 = vst [vmem:[%s403 + $0x1f8] sm:%s395] %v656
          %v658 = vld [vmem:[%s402 + $0x1fc] sm:%s395]
          %659 = vst [vmem:[%s403 + $0x1fc] sm:%s395] %v658
          %v660 = vld [vmem:[%s402 + $0x200] sm:%s395]
          %661 = vst [vmem:[%s403 + $0x200] sm:%s395] %v660
          %v662 = vld [vmem:[%s402 + $0x208] sm:%s395]
          %663 = vst [vmem:[%s403 + $0x204] sm:%s395] %v662
          %v664 = vld [vmem:[%s402 + $0x204] sm:%s395]
          %665 = vst [vmem:[%s403 + $0x208] sm:%s395] %v664
          %v666 = vld [vmem:[%s402 + $0x20c] sm:%s395]
          %667 = vst [vmem:[%s403 + $0x20c] sm:%s395] %v666
          %v668 = vld [vmem:[%s402 + $0x210] sm:%s395]
          %669 = vst [vmem:[%s403 + $0x210] sm:%s395] %v668
          %v670 = vld [vmem:[%s402 + $0x218] sm:%s395]
          %671 = vst [vmem:[%s403 + $0x214] sm:%s395] %v670
          %v672 = vld [vmem:[%s402 + $0x214] sm:%s395]
          %673 = vst [vmem:[%s403 + $0x218] sm:%s395] %v672
          %v674 = vld [vmem:[%s402 + $0x21c] sm:%s395]
          %675 = vst [vmem:[%s403 + $0x21c] sm:%s395] %v674
          %v676 = vld [vmem:[%s402 + $0x220] sm:%s395]
          %677 = vst [vmem:[%s403 + $0x220] sm:%s395] %v676
          %v678 = vld [vmem:[%s402 + $0x228] sm:%s395]
          %679 = vst [vmem:[%s403 + $0x224] sm:%s395] %v678
          %v680 = vld [vmem:[%s402 + $0x224] sm:%s395]
          %681 = vst [vmem:[%s403 + $0x228] sm:%s395] %v680
          %v682 = vld [vmem:[%s402 + $0x22c] sm:%s395]
          %683 = vst [vmem:[%s403 + $0x22c] sm:%s395] %v682
          %v684 = vld [vmem:[%s402 + $0x230] sm:%s395]
          %685 = vst [vmem:[%s403 + $0x230] sm:%s395] %v684
          %v686 = vld [vmem:[%s402 + $0x238] sm:%s395]
          %687 = vst [vmem:[%s403 + $0x234] sm:%s395] %v686
          %v688 = vld [vmem:[%s402 + $0x234] sm:%s395]
          %689 = vst [vmem:[%s403 + $0x238] sm:%s395] %v688
          %v690 = vld [vmem:[%s402 + $0x23c] sm:%s395]
          %691 = vst [vmem:[%s403 + $0x23c] sm:%s395] %v690
          %v692 = vld [vmem:[%s402 + $0x240] sm:%s395]
          %693 = vst [vmem:[%s403 + $0x240] sm:%s395] %v692
          %v694 = vld [vmem:[%s402 + $0x248] sm:%s395]
          %695 = vst [vmem:[%s403 + $0x244] sm:%s395] %v694
          %v696 = vld [vmem:[%s402 + $0x244] sm:%s395]
          %697 = vst [vmem:[%s403 + $0x248] sm:%s395] %v696
          %v698 = vld [vmem:[%s402 + $0x24c] sm:%s395]
          %699 = vst [vmem:[%s403 + $0x24c] sm:%s395] %v698
          %v700 = vld [vmem:[%s402 + $0x250] sm:%s395]
          %701 = vst [vmem:[%s403 + $0x250] sm:%s395] %v700
          %v702 = vld [vmem:[%s402 + $0x258] sm:%s395]
          %703 = vst [vmem:[%s403 + $0x254] sm:%s395] %v702
          %v704 = vld [vmem:[%s402 + $0x254] sm:%s395]
          %705 = vst [vmem:[%s403 + $0x258] sm:%s395] %v704
          %v706 = vld [vmem:[%s402 + $0x25c] sm:%s395]
          %707 = vst [vmem:[%s403 + $0x25c] sm:%s395] %v706
          %v708 = vld [vmem:[%s402 + $0x260] sm:%s395]
          %709 = vst [vmem:[%s403 + $0x260] sm:%s395] %v708
          %v710 = vld [vmem:[%s402 + $0x268] sm:%s395]
          %711 = vst [vmem:[%s403 + $0x264] sm:%s395] %v710
          %v712 = vld [vmem:[%s402 + $0x264] sm:%s395]
          %713 = vst [vmem:[%s403 + $0x268] sm:%s395] %v712
          %v714 = vld [vmem:[%s402 + $0x26c] sm:%s395]
          %715 = vst [vmem:[%s403 + $0x26c] sm:%s395] %v714
          %v716 = vld [vmem:[%s402 + $0x270] sm:%s395]
          %717 = vst [vmem:[%s403 + $0x270] sm:%s395] %v716
          %v718 = vld [vmem:[%s402 + $0x278] sm:%s395]
          %719 = vst [vmem:[%s403 + $0x274] sm:%s395] %v718
          %v720 = vld [vmem:[%s402 + $0x274] sm:%s395]
          %721 = vst [vmem:[%s403 + $0x278] sm:%s395] %v720
          %v722 = vld [vmem:[%s402 + $0x27c] sm:%s395]
          %723 = vst [vmem:[%s403 + $0x27c] sm:%s395] %v722
        $region60: #{tpu_custom_call.1} parent=47 // loop_footer
          %s401 = sadd.s32 1, %s397
        $region61: #{tpu_custom_call.1} parent=47 // loop_footer_branch
          %396 = sbr.rel target = $region57
        $region62: #{tpu_custom_call.1} parent=47 // loop_exit
          _
      $region48: #{tpu_custom_call.1} parent=32 // pred_fallthru
        _
    $region33: #{tpu_custom_call.1} parent=1 // pred_fallthru
      _
    // Predicated region
    $region34: #{tpu_custom_call.1} parent=1 // pred_check
      %p45 = pneg %p41
    $region35: #{tpu_custom_call.1} parent=1 // pred_check_branch
      %47 = sbr.rel (%p45) target = $region37
    $region36: #{tpu_custom_call.1} parent=1 // pred_region
      %s48 = sshllo.u32 0, 4
      loop: start=0, step=1, limit=1
      $region38: #{tpu_custom_call.1} parent=36 // loop_pre_header
        _
      $region39: #{tpu_custom_call.1} parent=36 // loop_header
        %s50 = sphi 0, %s54
        %p51 = scmp.ge.s32.totalorder %s50, 1
        %s55 = sphi %s6, %s6
        %s56 = sphi [#allocation2], [#allocation2]
      $region40: #{tpu_custom_call.1} parent=36 // loop_header_branch
        %53 = sbr.rel (%p51) target = $region44
      $region41: #{tpu_custom_call.1} parent=36 // loop_body
        %v57 = vld [vmem:[%s55] sm:%s48]
        %58 = vst [vmem:[%s56] sm:%s48] %v57
        %v59 = vld [vmem:[%s55 + $0x8] sm:%s48]
        %60 = vst [vmem:[%s56 + $0x4] sm:%s48] %v59
        %v61 = vld [vmem:[%s55 + $0x4] sm:%s48]
        %62 = vst [vmem:[%s56 + $0x8] sm:%s48] %v61
        %v63 = vld [vmem:[%s55 + $0xc] sm:%s48]
        %64 = vst [vmem:[%s56 + $0xc] sm:%s48] %v63
        %v65 = vld [vmem:[%s55 + $0x10] sm:%s48]
        %66 = vst [vmem:[%s56 + $0x10] sm:%s48] %v65
        %v67 = vld [vmem:[%s55 + $0x18] sm:%s48]
        %68 = vst [vmem:[%s56 + $0x14] sm:%s48] %v67
        %v69 = vld [vmem:[%s55 + $0x14] sm:%s48]
        %70 = vst [vmem:[%s56 + $0x18] sm:%s48] %v69
        %v71 = vld [vmem:[%s55 + $0x1c] sm:%s48]
        %72 = vst [vmem:[%s56 + $0x1c] sm:%s48] %v71
        %v73 = vld [vmem:[%s55 + $0x20] sm:%s48]
        %74 = vst [vmem:[%s56 + $0x20] sm:%s48] %v73
        %v75 = vld [vmem:[%s55 + $0x28] sm:%s48]
        %76 = vst [vmem:[%s56 + $0x24] sm:%s48] %v75
        %v77 = vld [vmem:[%s55 + $0x24] sm:%s48]
        %78 = vst [vmem:[%s56 + $0x28] sm:%s48] %v77
        %v79 = vld [vmem:[%s55 + $0x2c] sm:%s48]
        %80 = vst [vmem:[%s56 + $0x2c] sm:%s48] %v79
        %v81 = vld [vmem:[%s55 + $0x30] sm:%s48]
        %82 = vst [vmem:[%s56 + $0x30] sm:%s48] %v81
        %v83 = vld [vmem:[%s55 + $0x38] sm:%s48]
        %84 = vst [vmem:[%s56 + $0x34] sm:%s48] %v83
        %v85 = vld [vmem:[%s55 + $0x34] sm:%s48]
        %86 = vst [vmem:[%s56 + $0x38] sm:%s48] %v85
        %v87 = vld [vmem:[%s55 + $0x3c] sm:%s48]
        %88 = vst [vmem:[%s56 + $0x3c] sm:%s48] %v87
        %v89 = vld [vmem:[%s55 + $0x40] sm:%s48]
        %90 = vst [vmem:[%s56 + $0x40] sm:%s48] %v89
        %v91 = vld [vmem:[%s55 + $0x48] sm:%s48]
        %92 = vst [vmem:[%s56 + $0x44] sm:%s48] %v91
        %v93 = vld [vmem:[%s55 + $0x44] sm:%s48]
        %94 = vst [vmem:[%s56 + $0x48] sm:%s48] %v93
        %v95 = vld [vmem:[%s55 + $0x4c] sm:%s48]
        %96 = vst [vmem:[%s56 + $0x4c] sm:%s48] %v95
        %v97 = vld [vmem:[%s55 + $0x50] sm:%s48]
        %98 = vst [vmem:[%s56 + $0x50] sm:%s48] %v97
        %v99 = vld [vmem:[%s55 + $0x58] sm:%s48]
        %100 = vst [vmem:[%s56 + $0x54] sm:%s48] %v99
        %v101 = vld [vmem:[%s55 + $0x54] sm:%s48]
        %102 = vst [vmem:[%s56 + $0x58] sm:%s48] %v101
        %v103 = vld [vmem:[%s55 + $0x5c] sm:%s48]
        %104 = vst [vmem:[%s56 + $0x5c] sm:%s48] %v103
        %v105 = vld [vmem:[%s55 + $0x60] sm:%s48]
        %106 = vst [vmem:[%s56 + $0x60] sm:%s48] %v105
        %v107 = vld [vmem:[%s55 + $0x68] sm:%s48]
        %108 = vst [vmem:[%s56 + $0x64] sm:%s48] %v107
        %v109 = vld [vmem:[%s55 + $0x64] sm:%s48]
        %110 = vst [vmem:[%s56 + $0x68] sm:%s48] %v109
        %v111 = vld [vmem:[%s55 + $0x6c] sm:%s48]
        %112 = vst [vmem:[%s56 + $0x6c] sm:%s48] %v111
        %v113 = vld [vmem:[%s55 + $0x70] sm:%s48]
        %114 = vst [vmem:[%s56 + $0x70] sm:%s48] %v113
        %v115 = vld [vmem:[%s55 + $0x78] sm:%s48]
        %116 = vst [vmem:[%s56 + $0x74] sm:%s48] %v115
        %v117 = vld [vmem:[%s55 + $0x74] sm:%s48]
        %118 = vst [vmem:[%s56 + $0x78] sm:%s48] %v117
        %v119 = vld [vmem:[%s55 + $0x7c] sm:%s48]
        %120 = vst [vmem:[%s56 + $0x7c] sm:%s48] %v119
        %v121 = vld [vmem:[%s55 + $0x80] sm:%s48]
        %122 = vst [vmem:[%s56 + $0x80] sm:%s48] %v121
        %v123 = vld [vmem:[%s55 + $0x88] sm:%s48]
        %124 = vst [vmem:[%s56 + $0x84] sm:%s48] %v123
        %v125 = vld [vmem:[%s55 + $0x84] sm:%s48]
        %126 = vst [vmem:[%s56 + $0x88] sm:%s48] %v125
        %v127 = vld [vmem:[%s55 + $0x8c] sm:%s48]
        %128 = vst [vmem:[%s56 + $0x8c] sm:%s48] %v127
        %v129 = vld [vmem:[%s55 + $0x90] sm:%s48]
        %130 = vst [vmem:[%s56 + $0x90] sm:%s48] %v129
        %v131 = vld [vmem:[%s55 + $0x98] sm:%s48]
        %132 = vst [vmem:[%s56 + $0x94] sm:%s48] %v131
        %v133 = vld [vmem:[%s55 + $0x94] sm:%s48]
        %134 = vst [vmem:[%s56 + $0x98] sm:%s48] %v133
        %v135 = vld [vmem:[%s55 + $0x9c] sm:%s48]
        %136 = vst [vmem:[%s56 + $0x9c] sm:%s48] %v135
        %v137 = vld [vmem:[%s55 + $0xa0] sm:%s48]
        %138 = vst [vmem:[%s56 + $0xa0] sm:%s48] %v137
        %v139 = vld [vmem:[%s55 + $0xa8] sm:%s48]
        %140 = vst [vmem:[%s56 + $0xa4] sm:%s48] %v139
        %v141 = vld [vmem:[%s55 + $0xa4] sm:%s48]
        %142 = vst [vmem:[%s56 + $0xa8] sm:%s48] %v141
        %v143 = vld [vmem:[%s55 + $0xac] sm:%s48]
        %144 = vst [vmem:[%s56 + $0xac] sm:%s48] %v143
        %v145 = vld [vmem:[%s55 + $0xb0] sm:%s48]
        %146 = vst [vmem:[%s56 + $0xb0] sm:%s48] %v145
        %v147 = vld [vmem:[%s55 + $0xb8] sm:%s48]
        %148 = vst [vmem:[%s56 + $0xb4] sm:%s48] %v147
        %v149 = vld [vmem:[%s55 + $0xb4] sm:%s48]
        %150 = vst [vmem:[%s56 + $0xb8] sm:%s48] %v149
        %v151 = vld [vmem:[%s55 + $0xbc] sm:%s48]
        %152 = vst [vmem:[%s56 + $0xbc] sm:%s48] %v151
        %v153 = vld [vmem:[%s55 + $0xc0] sm:%s48]
        %154 = vst [vmem:[%s56 + $0xc0] sm:%s48] %v153
        %v155 = vld [vmem:[%s55 + $0xc8] sm:%s48]
        %156 = vst [vmem:[%s56 + $0xc4] sm:%s48] %v155
        %v157 = vld [vmem:[%s55 + $0xc4] sm:%s48]
        %158 = vst [vmem:[%s56 + $0xc8] sm:%s48] %v157
        %v159 = vld [vmem:[%s55 + $0xcc] sm:%s48]
        %160 = vst [vmem:[%s56 + $0xcc] sm:%s48] %v159
        %v161 = vld [vmem:[%s55 + $0xd0] sm:%s48]
        %162 = vst [vmem:[%s56 + $0xd0] sm:%s48] %v161
        %v163 = vld [vmem:[%s55 + $0xd8] sm:%s48]
        %164 = vst [vmem:[%s56 + $0xd4] sm:%s48] %v163
        %v165 = vld [vmem:[%s55 + $0xd4] sm:%s48]
        %166 = vst [vmem:[%s56 + $0xd8] sm:%s48] %v165
        %v167 = vld [vmem:[%s55 + $0xdc] sm:%s48]
        %168 = vst [vmem:[%s56 + $0xdc] sm:%s48] %v167
        %v169 = vld [vmem:[%s55 + $0xe0] sm:%s48]
        %170 = vst [vmem:[%s56 + $0xe0] sm:%s48] %v169
        %v171 = vld [vmem:[%s55 + $0xe8] sm:%s48]
        %172 = vst [vmem:[%s56 + $0xe4] sm:%s48] %v171
        %v173 = vld [vmem:[%s55 + $0xe4] sm:%s48]
        %174 = vst [vmem:[%s56 + $0xe8] sm:%s48] %v173
        %v175 = vld [vmem:[%s55 + $0xec] sm:%s48]
        %176 = vst [vmem:[%s56 + $0xec] sm:%s48] %v175
        %v177 = vld [vmem:[%s55 + $0xf0] sm:%s48]
        %178 = vst [vmem:[%s56 + $0xf0] sm:%s48] %v177
        %v179 = vld [vmem:[%s55 + $0xf8] sm:%s48]
        %180 = vst [vmem:[%s56 + $0xf4] sm:%s48] %v179
        %v181 = vld [vmem:[%s55 + $0xf4] sm:%s48]
        %182 = vst [vmem:[%s56 + $0xf8] sm:%s48] %v181
        %v183 = vld [vmem:[%s55 + $0xfc] sm:%s48]
        %184 = vst [vmem:[%s56 + $0xfc] sm:%s48] %v183
        %v185 = vld [vmem:[%s55 + $0x100] sm:%s48]
        %186 = vst [vmem:[%s56 + $0x100] sm:%s48] %v185
        %v187 = vld [vmem:[%s55 + $0x108] sm:%s48]
        %188 = vst [vmem:[%s56 + $0x104] sm:%s48] %v187
        %v189 = vld [vmem:[%s55 + $0x104] sm:%s48]
        %190 = vst [vmem:[%s56 + $0x108] sm:%s48] %v189
        %v191 = vld [vmem:[%s55 + $0x10c] sm:%s48]
        %192 = vst [vmem:[%s56 + $0x10c] sm:%s48] %v191
        %v193 = vld [vmem:[%s55 + $0x110] sm:%s48]
        %194 = vst [vmem:[%s56 + $0x110] sm:%s48] %v193
        %v195 = vld [vmem:[%s55 + $0x118] sm:%s48]
        %196 = vst [vmem:[%s56 + $0x114] sm:%s48] %v195
        %v197 = vld [vmem:[%s55 + $0x114] sm:%s48]
        %198 = vst [vmem:[%s56 + $0x118] sm:%s48] %v197
        %v199 = vld [vmem:[%s55 + $0x11c] sm:%s48]
        %200 = vst [vmem:[%s56 + $0x11c] sm:%s48] %v199
        %v201 = vld [vmem:[%s55 + $0x120] sm:%s48]
        %202 = vst [vmem:[%s56 + $0x120] sm:%s48] %v201
        %v203 = vld [vmem:[%s55 + $0x128] sm:%s48]
        %204 = vst [vmem:[%s56 + $0x124] sm:%s48] %v203
        %v205 = vld [vmem:[%s55 + $0x124] sm:%s48]
        %206 = vst [vmem:[%s56 + $0x128] sm:%s48] %v205
        %v207 = vld [vmem:[%s55 + $0x12c] sm:%s48]
        %208 = vst [vmem:[%s56 + $0x12c] sm:%s48] %v207
        %v209 = vld [vmem:[%s55 + $0x130] sm:%s48]
        %210 = vst [vmem:[%s56 + $0x130] sm:%s48] %v209
        %v211 = vld [vmem:[%s55 + $0x138] sm:%s48]
        %212 = vst [vmem:[%s56 + $0x134] sm:%s48] %v211
        %v213 = vld [vmem:[%s55 + $0x134] sm:%s48]
        %214 = vst [vmem:[%s56 + $0x138] sm:%s48] %v213
        %v215 = vld [vmem:[%s55 + $0x13c] sm:%s48]
        %216 = vst [vmem:[%s56 + $0x13c] sm:%s48] %v215
        %v217 = vld [vmem:[%s55 + $0x140] sm:%s48]
        %218 = vst [vmem:[%s56 + $0x140] sm:%s48] %v217
        %v219 = vld [vmem:[%s55 + $0x148] sm:%s48]
        %220 = vst [vmem:[%s56 + $0x144] sm:%s48] %v219
        %v221 = vld [vmem:[%s55 + $0x144] sm:%s48]
        %222 = vst [vmem:[%s56 + $0x148] sm:%s48] %v221
        %v223 = vld [vmem:[%s55 + $0x14c] sm:%s48]
        %224 = vst [vmem:[%s56 + $0x14c] sm:%s48] %v223
        %v225 = vld [vmem:[%s55 + $0x150] sm:%s48]
        %226 = vst [vmem:[%s56 + $0x150] sm:%s48] %v225
        %v227 = vld [vmem:[%s55 + $0x158] sm:%s48]
        %228 = vst [vmem:[%s56 + $0x154] sm:%s48] %v227
        %v229 = vld [vmem:[%s55 + $0x154] sm:%s48]
        %230 = vst [vmem:[%s56 + $0x158] sm:%s48] %v229
        %v231 = vld [vmem:[%s55 + $0x15c] sm:%s48]
        %232 = vst [vmem:[%s56 + $0x15c] sm:%s48] %v231
        %v233 = vld [vmem:[%s55 + $0x160] sm:%s48]
        %234 = vst [vmem:[%s56 + $0x160] sm:%s48] %v233
        %v235 = vld [vmem:[%s55 + $0x168] sm:%s48]
        %236 = vst [vmem:[%s56 + $0x164] sm:%s48] %v235
        %v237 = vld [vmem:[%s55 + $0x164] sm:%s48]
        %238 = vst [vmem:[%s56 + $0x168] sm:%s48] %v237
        %v239 = vld [vmem:[%s55 + $0x16c] sm:%s48]
        %240 = vst [vmem:[%s56 + $0x16c] sm:%s48] %v239
        %v241 = vld [vmem:[%s55 + $0x170] sm:%s48]
        %242 = vst [vmem:[%s56 + $0x170] sm:%s48] %v241
        %v243 = vld [vmem:[%s55 + $0x178] sm:%s48]
        %244 = vst [vmem:[%s56 + $0x174] sm:%s48] %v243
        %v245 = vld [vmem:[%s55 + $0x174] sm:%s48]
        %246 = vst [vmem:[%s56 + $0x178] sm:%s48] %v245
        %v247 = vld [vmem:[%s55 + $0x17c] sm:%s48]
        %248 = vst [vmem:[%s56 + $0x17c] sm:%s48] %v247
        %v249 = vld [vmem:[%s55 + $0x180] sm:%s48]
        %250 = vst [vmem:[%s56 + $0x180] sm:%s48] %v249
        %v251 = vld [vmem:[%s55 + $0x188] sm:%s48]
        %252 = vst [vmem:[%s56 + $0x184] sm:%s48] %v251
        %v253 = vld [vmem:[%s55 + $0x184] sm:%s48]
        %254 = vst [vmem:[%s56 + $0x188] sm:%s48] %v253
        %v255 = vld [vmem:[%s55 + $0x18c] sm:%s48]
        %256 = vst [vmem:[%s56 + $0x18c] sm:%s48] %v255
        %v257 = vld [vmem:[%s55 + $0x190] sm:%s48]
        %258 = vst [vmem:[%s56 + $0x190] sm:%s48] %v257
        %v259 = vld [vmem:[%s55 + $0x198] sm:%s48]
        %260 = vst [vmem:[%s56 + $0x194] sm:%s48] %v259
        %v261 = vld [vmem:[%s55 + $0x194] sm:%s48]
        %262 = vst [vmem:[%s56 + $0x198] sm:%s48] %v261
        %v263 = vld [vmem:[%s55 + $0x19c] sm:%s48]
        %264 = vst [vmem:[%s56 + $0x19c] sm:%s48] %v263
        %v265 = vld [vmem:[%s55 + $0x1a0] sm:%s48]
        %266 = vst [vmem:[%s56 + $0x1a0] sm:%s48] %v265
        %v267 = vld [vmem:[%s55 + $0x1a8] sm:%s48]
        %268 = vst [vmem:[%s56 + $0x1a4] sm:%s48] %v267
        %v269 = vld [vmem:[%s55 + $0x1a4] sm:%s48]
        %270 = vst [vmem:[%s56 + $0x1a8] sm:%s48] %v269
        %v271 = vld [vmem:[%s55 + $0x1ac] sm:%s48]
        %272 = vst [vmem:[%s56 + $0x1ac] sm:%s48] %v271
        %v273 = vld [vmem:[%s55 + $0x1b0] sm:%s48]
        %274 = vst [vmem:[%s56 + $0x1b0] sm:%s48] %v273
        %v275 = vld [vmem:[%s55 + $0x1b8] sm:%s48]
        %276 = vst [vmem:[%s56 + $0x1b4] sm:%s48] %v275
        %v277 = vld [vmem:[%s55 + $0x1b4] sm:%s48]
        %278 = vst [vmem:[%s56 + $0x1b8] sm:%s48] %v277
        %v279 = vld [vmem:[%s55 + $0x1bc] sm:%s48]
        %280 = vst [vmem:[%s56 + $0x1bc] sm:%s48] %v279
        %v281 = vld [vmem:[%s55 + $0x1c0] sm:%s48]
        %282 = vst [vmem:[%s56 + $0x1c0] sm:%s48] %v281
        %v283 = vld [vmem:[%s55 + $0x1c8] sm:%s48]
        %284 = vst [vmem:[%s56 + $0x1c4] sm:%s48] %v283
        %v285 = vld [vmem:[%s55 + $0x1c4] sm:%s48]
        %286 = vst [vmem:[%s56 + $0x1c8] sm:%s48] %v285
        %v287 = vld [vmem:[%s55 + $0x1cc] sm:%s48]
        %288 = vst [vmem:[%s56 + $0x1cc] sm:%s48] %v287
        %v289 = vld [vmem:[%s55 + $0x1d0] sm:%s48]
        %290 = vst [vmem:[%s56 + $0x1d0] sm:%s48] %v289
        %v291 = vld [vmem:[%s55 + $0x1d8] sm:%s48]
        %292 = vst [vmem:[%s56 + $0x1d4] sm:%s48] %v291
        %v293 = vld [vmem:[%s55 + $0x1d4] sm:%s48]
        %294 = vst [vmem:[%s56 + $0x1d8] sm:%s48] %v293
        %v295 = vld [vmem:[%s55 + $0x1dc] sm:%s48]
        %296 = vst [vmem:[%s56 + $0x1dc] sm:%s48] %v295
        %v297 = vld [vmem:[%s55 + $0x1e0] sm:%s48]
        %298 = vst [vmem:[%s56 + $0x1e0] sm:%s48] %v297
        %v299 = vld [vmem:[%s55 + $0x1e8] sm:%s48]
        %300 = vst [vmem:[%s56 + $0x1e4] sm:%s48] %v299
        %v301 = vld [vmem:[%s55 + $0x1e4] sm:%s48]
        %302 = vst [vmem:[%s56 + $0x1e8] sm:%s48] %v301
        %v303 = vld [vmem:[%s55 + $0x1ec] sm:%s48]
        %304 = vst [vmem:[%s56 + $0x1ec] sm:%s48] %v303
        %v305 = vld [vmem:[%s55 + $0x1f0] sm:%s48]
        %306 = vst [vmem:[%s56 + $0x1f0] sm:%s48] %v305
        %v307 = vld [vmem:[%s55 + $0x1f8] sm:%s48]
        %308 = vst [vmem:[%s56 + $0x1f4] sm:%s48] %v307
        %v309 = vld [vmem:[%s55 + $0x1f4] sm:%s48]
        %310 = vst [vmem:[%s56 + $0x1f8] sm:%s48] %v309
        %v311 = vld [vmem:[%s55 + $0x1fc] sm:%s48]
        %312 = vst [vmem:[%s56 + $0x1fc] sm:%s48] %v311
        %v313 = vld [vmem:[%s55 + $0x200] sm:%s48]
        %314 = vst [vmem:[%s56 + $0x200] sm:%s48] %v313
        %v315 = vld [vmem:[%s55 + $0x208] sm:%s48]
        %316 = vst [vmem:[%s56 + $0x204] sm:%s48] %v315
        %v317 = vld [vmem:[%s55 + $0x204] sm:%s48]
        %318 = vst [vmem:[%s56 + $0x208] sm:%s48] %v317
        %v319 = vld [vmem:[%s55 + $0x20c] sm:%s48]
        %320 = vst [vmem:[%s56 + $0x20c] sm:%s48] %v319
        %v321 = vld [vmem:[%s55 + $0x210] sm:%s48]
        %322 = vst [vmem:[%s56 + $0x210] sm:%s48] %v321
        %v323 = vld [vmem:[%s55 + $0x218] sm:%s48]
        %324 = vst [vmem:[%s56 + $0x214] sm:%s48] %v323
        %v325 = vld [vmem:[%s55 + $0x214] sm:%s48]
        %326 = vst [vmem:[%s56 + $0x218] sm:%s48] %v325
        %v327 = vld [vmem:[%s55 + $0x21c] sm:%s48]
        %328 = vst [vmem:[%s56 + $0x21c] sm:%s48] %v327
        %v329 = vld [vmem:[%s55 + $0x220] sm:%s48]
        %330 = vst [vmem:[%s56 + $0x220] sm:%s48] %v329
        %v331 = vld [vmem:[%s55 + $0x228] sm:%s48]
        %332 = vst [vmem:[%s56 + $0x224] sm:%s48] %v331
        %v333 = vld [vmem:[%s55 + $0x224] sm:%s48]
        %334 = vst [vmem:[%s56 + $0x228] sm:%s48] %v333
        %v335 = vld [vmem:[%s55 + $0x22c] sm:%s48]
        %336 = vst [vmem:[%s56 + $0x22c] sm:%s48] %v335
        %v337 = vld [vmem:[%s55 + $0x230] sm:%s48]
        %338 = vst [vmem:[%s56 + $0x230] sm:%s48] %v337
        %v339 = vld [vmem:[%s55 + $0x238] sm:%s48]
        %340 = vst [vmem:[%s56 + $0x234] sm:%s48] %v339
        %v341 = vld [vmem:[%s55 + $0x234] sm:%s48]
        %342 = vst [vmem:[%s56 + $0x238] sm:%s48] %v341
        %v343 = vld [vmem:[%s55 + $0x23c] sm:%s48]
        %344 = vst [vmem:[%s56 + $0x23c] sm:%s48] %v343
        %v345 = vld [vmem:[%s55 + $0x240] sm:%s48]
        %346 = vst [vmem:[%s56 + $0x240] sm:%s48] %v345
        %v347 = vld [vmem:[%s55 + $0x248] sm:%s48]
        %348 = vst [vmem:[%s56 + $0x244] sm:%s48] %v347
        %v349 = vld [vmem:[%s55 + $0x244] sm:%s48]
        %350 = vst [vmem:[%s56 + $0x248] sm:%s48] %v349
        %v351 = vld [vmem:[%s55 + $0x24c] sm:%s48]
        %352 = vst [vmem:[%s56 + $0x24c] sm:%s48] %v351
        %v353 = vld [vmem:[%s55 + $0x250] sm:%s48]
        %354 = vst [vmem:[%s56 + $0x250] sm:%s48] %v353
        %v355 = vld [vmem:[%s55 + $0x258] sm:%s48]
        %356 = vst [vmem:[%s56 + $0x254] sm:%s48] %v355
        %v357 = vld [vmem:[%s55 + $0x254] sm:%s48]
        %358 = vst [vmem:[%s56 + $0x258] sm:%s48] %v357
        %v359 = vld [vmem:[%s55 + $0x25c] sm:%s48]
        %360 = vst [vmem:[%s56 + $0x25c] sm:%s48] %v359
        %v361 = vld [vmem:[%s55 + $0x260] sm:%s48]
        %362 = vst [vmem:[%s56 + $0x260] sm:%s48] %v361
        %v363 = vld [vmem:[%s55 + $0x268] sm:%s48]
        %364 = vst [vmem:[%s56 + $0x264] sm:%s48] %v363
        %v365 = vld [vmem:[%s55 + $0x264] sm:%s48]
        %366 = vst [vmem:[%s56 + $0x268] sm:%s48] %v365
        %v367 = vld [vmem:[%s55 + $0x26c] sm:%s48]
        %368 = vst [vmem:[%s56 + $0x26c] sm:%s48] %v367
        %v369 = vld [vmem:[%s55 + $0x270] sm:%s48]
        %370 = vst [vmem:[%s56 + $0x270] sm:%s48] %v369
        %v371 = vld [vmem:[%s55 + $0x278] sm:%s48]
        %372 = vst [vmem:[%s56 + $0x274] sm:%s48] %v371
        %v373 = vld [vmem:[%s55 + $0x274] sm:%s48]
        %374 = vst [vmem:[%s56 + $0x278] sm:%s48] %v373
        %v375 = vld [vmem:[%s55 + $0x27c] sm:%s48]
        %376 = vst [vmem:[%s56 + $0x27c] sm:%s48] %v375
      $region42: #{tpu_custom_call.1} parent=36 // loop_footer
        %s54 = sadd.s32 1, %s50
      $region43: #{tpu_custom_call.1} parent=36 // loop_footer_branch
        %49 = sbr.rel target = $region39
      $region44: #{tpu_custom_call.1} parent=36 // loop_exit
        _
    $region37: #{tpu_custom_call.1} parent=1 // pred_fallthru
      _
    // Predicated region
    $region63: #{tpu_custom_call.1} parent=1 // pred_check
      _
    $region64: #{tpu_custom_call.1} parent=1 // pred_check_branch
      %726 = sbr.rel (0) target = $region66
    $region65: #{tpu_custom_call.1} parent=1 // pred_region
      %727 = vsyncadd [#allocation3], 10240
    $region66: #{tpu_custom_call.1} parent=1 // pred_fallthru
      _
    %v728 = vlaneseq
    %v729 = vshrl.u32 %v728, 7
    %v730 = vadd.s32 %v729, 8
    %v731 = vadd.s32 %v729, 16
    %v732 = vadd.s32 %v729, 24
    %vm733 = vcmp.lt.s32.totalorder %v729, 0
    %v734 = vsub.s32 0, %v729
    %v735 = vsel %vm733, %v734, %v729
    %v736 = vshrl.u32 %v735, 4
    %v737 = vand.u32 %v735, 15
    %v738 = vsub.s32 0, %v737
    %v739 = vsel %vm733, %v738, %v737
    %vm740 = vcmp.lt.s32.totalorder %v730, 0
    %v741 = vsub.s32 0, %v730
    %v742 = vsel %vm740, %v741, %v730
    %v743 = vshrl.u32 %v742, 4
    %v744 = vand.u32 %v742, 15
    %v745 = vsub.s32 0, %v744
    %v746 = vsel %vm740, %v745, %v744
    %vm747 = vcmp.lt.s32.totalorder %v731, 0
    %v748 = vsub.s32 0, %v731
    %v749 = vsel %vm747, %v748, %v731
    %v750 = vshrl.u32 %v749, 4
    %v751 = vand.u32 %v749, 15
    %v752 = vsub.s32 0, %v751
    %v753 = vsel %vm747, %v752, %v751
    %vm754 = vcmp.lt.s32.totalorder %v732, 0
    %v755 = vsub.s32 0, %v732
    %v756 = vsel %vm754, %v755, %v732
    %v757 = vshrl.u32 %v756, 4
    %v758 = vand.u32 %v756, 15
    %v759 = vsub.s32 0, %v758
    %v760 = vsel %vm754, %v759, %v758
    %vm761 = vcmp.ne.s32.totalorder %v739, 0
    %vm762 = vcmp.ne.s32.totalorder %v746, 0
    %vm763 = vcmp.ne.s32.totalorder %v753, 0
    %vm764 = vcmp.ne.s32.totalorder %v760, 0
    %vm765 = vcmp.lt.s32.totalorder %v739, 0
    %vm766 = vcmp.lt.s32.totalorder %v746, 0
    %vm767 = vcmp.lt.s32.totalorder %v753, 0
    %vm768 = vcmp.lt.s32.totalorder %v760, 0
    %vm769 = vmand %vm765, %vm761
    %vm770 = vmand %vm766, %vm762
    %vm771 = vmand %vm767, %vm763
    %vm772 = vmand %vm768, %vm764
    %v773 = vadd.s32 %v739, 16
    %v774 = vadd.s32 %v746, 16
    %v775 = vadd.s32 %v753, 16
    %v776 = vadd.s32 %v760, 16
    %v777 = vsel %vm769, %v773, %v739
    %v778 = vsel %vm770, %v774, %v746
    %v779 = vsel %vm771, %v775, %v753
    %v780 = vsel %vm772, %v776, %v760
    %vm781 = vcmp.ne.s32.totalorder %v777, 0
    %vm782 = vcmp.ne.s32.totalorder %v778, 0
    %vm783 = vcmp.ne.s32.totalorder %v779, 0
    %vm784 = vcmp.ne.s32.totalorder %v780, 0
    %vm785 = vcmp.ne.s32.totalorder %v777, 15
    %vm786 = vcmp.ne.s32.totalorder %v778, 15
    %vm787 = vcmp.ne.s32.totalorder %v779, 15
    %vm788 = vcmp.ne.s32.totalorder %v780, 15
    %vm789 = vcmp.lt.s32.totalorder %v729, 0
    %v790 = vsub.s32 0, %v729
    %v791 = vsel %vm789, %v790, %v729
    %v792 = vshrl.u32 %v791, 3
    %v793 = vand.u32 %v791, 7
    %v794 = vsub.s32 0, %v793
    %v795 = vsel %vm789, %v794, %v793
    %vm796 = vcmp.lt.s32.totalorder %v730, 0
    %v797 = vsub.s32 0, %v730
    %v798 = vsel %vm796, %v797, %v730
    %v799 = vshrl.u32 %v798, 3
    %v800 = vand.u32 %v798, 7
    %v801 = vsub.s32 0, %v800
    %v802 = vsel %vm796, %v801, %v800
    %vm803 = vcmp.ne.s32.totalorder %v795, 0
    %vm804 = vcmp.ne.s32.totalorder %v802, 0
    %vm805 = vcmp.lt.s32.totalorder %v795, 0
    %vm806 = vcmp.lt.s32.totalorder %v802, 0
    %vm807 = vmand %vm805, %vm803
    %vm808 = vmand %vm806, %vm804
    %v809 = vadd.s32 %v795, 8
    %v810 = vadd.s32 %v802, 8
    %v811 = vsel %vm807, %v809, %v795
    %v812 = vsel %vm808, %v810, %v802
    %vm813 = vcmp.ne.s32.totalorder %v811, 0
    %vm814 = vcmp.ne.s32.totalorder %v812, 0
    %vm815 = vcmp.ne.s32.totalorder %v811, 7
    %vm816 = vcmp.ne.s32.totalorder %v812, 7
    %v817 = vld [vmem:[%s0] sm:$0xff]
    %v818 = vld [vmem:[%s0 + $0x8] sm:$0xff]
    %v819 = vld [vmem:[%s0 + $0x10] sm:$0xff]
    %v820 = vld [vmem:[%s0 + $0x18] sm:$0xff]
    %v821 = vld [vmem:[%s3] sm:$0xf]
    %v822 = vpack.c.bf16 %v818, %v817
    %v823 = vpack.c.bf16 %v820, %v819
    %v824 = vld [vmem:[%s5] ss:$0 sm:$0xff]
    %vm825 = vcmask 64512
    %v827 = vsel %vm825, %v822, 0
    %v830 = vsel %vm825, %v823, 0
    %vm832 = vcmask 1043456
    %v834 = vsel %vm832, %v821, 0
    %836 = vmatprep.subr.bf16.mxu0 0
    %837 = vmatpush1.bf16.msra.mxu0 %v834
    %838 = vmatprep.subr.bf16.mxu0 0
    %839 = vmatpush1.bf16.msra.mxu0 0
    %840 = vmatprep.subr.bf16.mxu0 0
    %841 = vmatpush1.bf16.msra.mxu0 0
    %842 = vmatprep.subr.bf16.mxu0 0
    %843 = vmatpush1.bf16.msra.mxu0 0
    %844 = vmatprep.subr.bf16.mxu0 0
    %845 = vmatpush1.bf16.msra.mxu0 0
    %846 = vmatprep.subr.bf16.mxu0 0
    %847 = vmatpush1.bf16.msra.mxu0 0
    %848 = vmatprep.subr.bf16.mxu0 0
    %849 = vmatpush1.bf16.msra.mxu0 0
    %850 = vmatprep.subr.bf16.mxu0 0
    %851 = vmatpush1.bf16.msra.mxu0 0
    %852 = vmatprep.subr.bf16.mxu0 0
    %853 = vmatpush1.bf16.msra.mxu0 0
    %854 = vmatprep.subr.bf16.mxu0 0
    %855 = vmatpush1.bf16.msra.mxu0 0
    %856 = vmatprep.subr.bf16.mxu0 0
    %857 = vmatpush1.bf16.msra.mxu0 0
    %858 = vmatprep.subr.bf16.mxu0 0
    %859 = vmatpush1.bf16.msra.mxu0 0
    %860 = vmatprep.subr.bf16.mxu0 0
    %861 = vmatpush1.bf16.msra.mxu0 0
    %862 = vmatprep.subr.bf16.mxu0 0
    %863 = vmatpush1.bf16.msra.mxu0 0
    %864 = vmatprep.subr.bf16.mxu0 0
    %865 = vmatpush1.bf16.msra.mxu0 0
    %866 = vmatprep.subr.bf16.mxu0 0
    %867 = vmatpush1.bf16.msra.mxu0 0
    %868 = vmatprep.mubr.bf16.mxu0 0
    %869 = vmatmul.mubr.bf16.gmra.mrb[0].mxu0 %v827
    %v870 = vpop.f32.mrb[0].mxu0
    %v871 = vadd.f32 %v824, %v870
    %v872 = vpop.f32.mrb[0].mxu0
    %v873 = vpop.f32.mrb[0].mxu0
    %v874 = vadd.f32 %v824, %v873
    %v875 = vpop.f32.mrb[0].mxu0
    %876 = vmatprep.mubr.bf16.mxu0 0
    %877 = vmatmul.mubr.bf16.gmra.mrb[0].mxu0 %v830
    %v878 = vpop.f32.mrb[0].mxu0
    %v879 = vadd.f32 %v824, %v878
    %v880 = vpop.f32.mrb[0].mxu0
    %v881 = vpop.f32.mrb[0].mxu0
    %v882 = vadd.f32 %v824, %v881
    %v883 = vpop.f32.mrb[0].mxu0
    %884 = vdwg.mxu0
    %v885 = vld [vmem:[%s3 + $0x4] sm:$0xf]
    %v886 = vld [vmem:[%s3 + $0x8] sm:$0xf]
    %v887 = vld [vmem:[%s3 + $0xc] sm:$0xf]
    %v888 = vld [vmem:[%s3 + $0x10] sm:$0xf]
    %v889 = vld [vmem:[%s3 + $0x14] sm:$0xf]
    %v890 = vld [vmem:[%s3 + $0x18] sm:$0xf]
    %v891 = vld [vmem:[%s3 + $0x1c] sm:$0xf]
    %v892 = vld [vmem:[%s3 + $0x20] sm:$0xf]
    %v893 = vld [vmem:[%s3 + $0x24] sm:$0xf]
    %v894 = vld [vmem:[%s3 + $0x28] sm:$0xf]
    %v895 = vld [vmem:[%s3 + $0x2c] sm:$0xf]
    %v896 = vld [vmem:[%s3 + $0x30] sm:$0xf]
    %v897 = vld [vmem:[%s3 + $0x34] sm:$0xf]
    %v898 = vld [vmem:[%s3 + $0x38] sm:$0xf]
    %v899 = vld [vmem:[%s3 + $0x3c] sm:$0xf]
    %v900 = vld [vmem:[%s3 + $0x40] sm:$0xf]
    %v901 = vld [vmem:[%s3 + $0x44] sm:$0xf]
    %v902 = vld [vmem:[%s3 + $0x48] sm:$0xf]
    %v903 = vld [vmem:[%s3 + $0x4c] sm:$0xf]
    %v904 = vld [vmem:[%s3 + $0x50] sm:$0xf]
    %v905 = vld [vmem:[%s3 + $0x54] sm:$0xf]
    %v906 = vld [vmem:[%s3 + $0x58] sm:$0xf]
    %v907 = vld [vmem:[%s3 + $0x5c] sm:$0xf]
    %v908 = vld [vmem:[%s3 + $0x60] sm:$0xf]
    %v909 = vld [vmem:[%s5 + $0x1] ss:$0 sm:$0xff]
    %v910 = vrot.slane %v871, 7
    %v911 = vrot.slane %v874, 7
    %v912 = vrot.slane %v879, 7
    %v913 = vrot.slane %v882, 7
    %vm914 = vcmp.lt.s32.totalorder %v729, 1
    %v915 = vsel %vm914, %v912, %v913
    %v916 = vsel %vm914, %v911, %v912
    %v917 = vsel %vm914, %v910, %v911
    %v918 = vsel %vm914, %v913, %v910
    %v919 = vsel %vm781, 1, 0
    %v920 = vsel %vm782, 1, 0
    %v921 = vsel %vm783, 1, 0
    %v922 = vsel %vm784, 1, 0
    %vm923 = vcmp.eq.s32.totalorder %v919, 1
    %vm924 = vcmp.eq.s32.totalorder %v920, 1
    %vm925 = vcmp.eq.s32.totalorder %v921, 1
    %vm926 = vcmp.eq.s32.totalorder %v922, 1
    %v927 = vsel %vm923, %v918, 0.0
    %v928 = vsel %vm924, %v917, 0.0
    %v929 = vsel %vm925, %v916, 0.0
    %v930 = vsel %vm926, %v915, 0.0
    %v931 = vrot.slane %v871, 1
    %v932 = vrot.slane %v874, 1
    %v933 = vrot.slane %v879, 1
    %v934 = vrot.slane %v882, 1
    %vm935 = vcmp.lt.s32.totalorder %v729, 7
    %v936 = vsel %vm935, %v933, %v934
    %v937 = vsel %vm935, %v932, %v933
    %v938 = vsel %vm935, %v931, %v932
    %v939 = vsel %vm935, %v934, %v931
    %v940 = vsel %vm785, 1, 0
    %v941 = vsel %vm786, 1, 0
    %v942 = vsel %vm787, 1, 0
    %v943 = vsel %vm788, 1, 0
    %vm944 = vcmp.eq.s32.totalorder %v940, 1
    %vm945 = vcmp.eq.s32.totalorder %v941, 1
    %vm946 = vcmp.eq.s32.totalorder %v942, 1
    %vm947 = vcmp.eq.s32.totalorder %v943, 1
    %v948 = vsel %vm944, %v938, 0.0
    %v949 = vsel %vm945, %v937, 0.0
    %v950 = vsel %vm946, %v936, 0.0
    %v951 = vsel %vm947, %v939, 0.0
    %956 = vrot.lane.b32.xlu0 %v871, 64
    %v957 = vpop.permute.xlu0 %956
    %958 = vrot.lane.b32.xlu0 %v874, 64
    %v959 = vpop.permute.xlu0 %958
    %960 = vrot.lane.b32.xlu0 %v879, 64
    %v961 = vpop.permute.xlu0 %960
    %962 = vrot.lane.b32.xlu0 %v882, 64
    %v963 = vpop.permute.xlu0 %962
    %vm968 = vcmask 523264
    %v969 = vsel %vm968, %v927, %v957
    %v970 = vsel %vm968, %v928, %v959
    %v971 = vsel %vm968, %v929, %v961
    %v972 = vsel %vm968, %v930, %v963
    %v973 = vpack.c.bf16 %v970, %v969
    %v974 = vpack.c.bf16 %v949, %v948
    %v975 = vpack.c.bf16 %v972, %v971
    %v976 = vpack.c.bf16 %v951, %v950
    %v1001 = vunpack.c.l.b16 %v885
    %v1002 = vunpack.c.l.b16 %v886
    %v1003 = vunpack.c.l.b16 %v887
    %v1004 = vunpack.c.l.b16 %v888
    %v1005 = vunpack.c.l.b16 %v889
    %v1006 = vunpack.c.l.b16 %v890
    %v1007 = vunpack.c.l.b16 %v891
    %v1008 = vunpack.c.l.b16 %v892
    %v1009 = vunpack.c.l.b16 %v893
    %v1010 = vunpack.c.l.b16 %v894
    %v1011 = vunpack.c.l.b16 %v895
    %v1012 = vunpack.c.l.b16 %v896
    %v1013 = vunpack.c.l.b16 %v897
    %v1014 = vunpack.c.l.b16 %v898
    %v1015 = vunpack.c.l.b16 %v899
    %v1016 = vunpack.c.l.b16 %v900
    %v1017 = vunpack.c.l.b16 %v901
    %v1018 = vunpack.c.l.b16 %v902
    %v1019 = vunpack.c.l.b16 %v903
    %v1020 = vunpack.c.l.b16 %v904
    %v1021 = vunpack.c.l.b16 %v905
    %v1022 = vunpack.c.l.b16 %v906
    %v1023 = vunpack.c.l.b16 %v907
    %v1024 = vunpack.c.l.b16 %v908
    %v1025 = vpack.c.b16 %v1002, %v1001
    %v1026 = vpack.c.b16 %v1004, %v1003
    %v1027 = vpack.c.b16 %v1006, %v1005
    %v1028 = vpack.c.b16 %v1008, %v1007
    %v1029 = vpack.c.b16 %v1010, %v1009
    %v1030 = vpack.c.b16 %v1012, %v1011
    %v1031 = vpack.c.b16 %v1014, %v1013
    %v1032 = vpack.c.b16 %v1016, %v1015
    %v1033 = vpack.c.b16 %v1018, %v1017
    %v1034 = vpack.c.b16 %v1020, %v1019
    %v1035 = vpack.c.b16 %v1022, %v1021
    %v1036 = vpack.c.b16 %v1024, %v1023
    %v1050 = vsel %vm968, %v974, 0
    %v1053 = vsel %vm968, %v976, 0
    %1055 = vmatprep.subr.bf16.mxu0 0
    %1056 = vmatpush1.bf16.msra.mxu0 %v1025
    %1057 = vmatprep.subr.bf16.mxu0 0
    %1058 = vmatpush1.bf16.msra.mxu0 %v1026
    %1059 = vmatprep.subr.bf16.mxu0 0
    %1060 = vmatpush1.bf16.msra.mxu0 %v1027
    %1061 = vmatprep.subr.bf16.mxu0 0
    %1062 = vmatpush1.bf16.msra.mxu0 %v1028
    %1063 = vmatprep.subr.bf16.mxu0 0
    %1064 = vmatpush1.bf16.msra.mxu0 %v1029
    %1065 = vmatprep.subr.bf16.mxu0 0
    %1066 = vmatpush1.bf16.msra.mxu0 %v1030
    %1067 = vmatprep.subr.bf16.mxu0 0
    %1068 = vmatpush1.bf16.msra.mxu0 %v1031
    %1069 = vmatprep.subr.bf16.mxu0 0
    %1070 = vmatpush1.bf16.msra.mxu0 %v1032
    %1071 = vmatprep.subr.bf16.mxu0 0
    %1072 = vmatpush1.bf16.msra.mxu0 %v1033
    %1073 = vmatprep.subr.bf16.mxu0 0
    %1074 = vmatpush1.bf16.msra.mxu0 %v1034
    %1075 = vmatprep.subr.bf16.mxu0 0
    %1076 = vmatpush1.bf16.msra.mxu0 %v1035
    %1077 = vmatprep.subr.bf16.mxu0 0
    %1078 = vmatpush1.bf16.msra.mxu0 %v1036
    %1079 = vmatprep.subr.bf16.mxu0 0
    %1080 = vmatpush1.bf16.msra.mxu0 0
    %1081 = vmatprep.subr.bf16.mxu0 0
    %1082 = vmatpush1.bf16.msra.mxu0 0
    %1083 = vmatprep.subr.bf16.mxu0 0
    %1084 = vmatpush1.bf16.msra.mxu0 0
    %1085 = vmatprep.subr.bf16.mxu0 0
    %1086 = vmatpush1.bf16.msra.mxu0 0
    %1087 = vmatprep.mubr.bf16.mxu0 %v1050
    %1088 = vmatmul.mubr.bf16.gmra.mrb[0].mxu0 %v973
    %v1089 = vpop.f32.mrb[0].mxu0
    %v1090 = vadd.f32 %v909, %v1089
    %v1091 = vpop.f32.mrb[0].mxu0
    %v1092 = vpop.f32.mrb[0].mxu0
    %v1093 = vadd.f32 %v909, %v1092
    %v1094 = vpop.f32.mrb[0].mxu0
    %1095 = vmatprep.mubr.bf16.mxu0 %v1053
    %1096 = vmatmul.mubr.bf16.gmra.mrb[0].mxu0 %v975
    %v1097 = vpop.f32.mrb[0].mxu0
    %v1098 = vadd.f32 %v909, %v1097
    %v1099 = vpop.f32.mrb[0].mxu0
    %v1100 = vpop.f32.mrb[0].mxu0
    %v1101 = vadd.f32 %v909, %v1100
    %v1102 = vpop.f32.mrb[0].mxu0
    %1103 = vdwg.mxu0
    %vm1104 = vcmp.ge.f32.partialorder %v1090, 0.0
    %vm1105 = vcmp.ge.f32.partialorder %v1093, 0.0
    %vm1106 = vcmp.ge.f32.partialorder %v1098, 0.0
    %vm1107 = vcmp.ge.f32.partialorder %v1101, 0.0
    %v1108 = vmul.f32 %v1090, 0.05
    %v1109 = vmul.f32 %v1093, 0.05
    %v1110 = vmul.f32 %v1098, 0.05
    %v1111 = vmul.f32 %v1101, 0.05
    %v1112 = vsel %vm1104, %v1090, %v1108
    %v1113 = vsel %vm1105, %v1093, %v1109
    %v1114 = vsel %vm1106, %v1098, %v1110
    %v1115 = vsel %vm1107, %v1101, %v1111
    %v1116 = vld [vmem:[%s3 + $0x64] sm:$0xf]
    %v1117 = vld [vmem:[%s3 + $0x68] sm:$0xf]
    %v1118 = vld [vmem:[%s3 + $0x6c] sm:$0xf]
    %v1119 = vld [vmem:[%s3 + $0x70] sm:$0xf]
    %v1120 = vld [vmem:[%s3 + $0x74] sm:$0xf]
    %v1121 = vld [vmem:[%s3 + $0x78] sm:$0xf]
    %v1122 = vld [vmem:[%s3 + $0x7c] sm:$0xf]
    %v1123 = vld [vmem:[%s3 + $0x80] sm:$0xf]
    %v1124 = vpack.c.bf16 %v1113, %v1112
    %v1125 = vpack.c.bf16 %v1115, %v1114
    %v1126 = vld [vmem:[%s5 + $0x2] ss:$0 sm:$0xff]
    %v1135 = vunpack.c.l.b16 %v1116
    %v1136 = vunpack.c.l.b16 %v1117
    %v1137 = vunpack.c.l.b16 %v1118
    %v1138 = vunpack.c.l.b16 %v1119
    %v1139 = vunpack.c.l.b16 %v1120
    %v1140 = vunpack.c.l.b16 %v1121
    %v1141 = vunpack.c.l.b16 %v1122
    %v1142 = vunpack.c.l.b16 %v1123
    %v1143 = vpack.c.b16 %v1136, %v1135
    %v1144 = vpack.c.b16 %v1138, %v1137
    %v1145 = vpack.c.b16 %v1140, %v1139
    %v1146 = vpack.c.b16 %v1142, %v1141
    %v1152 = vsel %vm968, %v1124, 0
    %v1155 = vsel %vm968, %v1125, 0
    %1157 = vmatprep.subr.bf16.mxu0 0
    %1158 = vmatpush1.bf16.msra.mxu0 %v1143
    %1159 = vmatprep.subr.bf16.mxu0 0
    %1160 = vmatpush1.bf16.msra.mxu0 %v1144
    %1161 = vmatprep.subr.bf16.mxu0 0
    %1162 = vmatpush1.bf16.msra.mxu0 %v1145
    %1163 = vmatprep.subr.bf16.mxu0 0
    %1164 = vmatpush1.bf16.msra.mxu0 %v1146
    %1165 = vmatprep.subr.bf16.mxu0 0
    %1166 = vmatpush1.bf16.msra.mxu0 0
    %1167 = vmatprep.subr.bf16.mxu0 0
    %1168 = vmatpush1.bf16.msra.mxu0 0
    %1169 = vmatprep.subr.bf16.mxu0 0
    %1170 = vmatpush1.bf16.msra.mxu0 0
    %1171 = vmatprep.subr.bf16.mxu0 0
    %1172 = vmatpush1.bf16.msra.mxu0 0
    %1173 = vmatprep.subr.bf16.mxu0 0
    %1174 = vmatpush1.bf16.msra.mxu0 0
    %1175 = vmatprep.subr.bf16.mxu0 0
    %1176 = vmatpush1.bf16.msra.mxu0 0
    %1177 = vmatprep.subr.bf16.mxu0 0
    %1178 = vmatpush1.bf16.msra.mxu0 0
    %1179 = vmatprep.subr.bf16.mxu0 0
    %1180 = vmatpush1.bf16.msra.mxu0 0
    %1181 = vmatprep.subr.bf16.mxu0 0
    %1182 = vmatpush1.bf16.msra.mxu0 0
    %1183 = vmatprep.subr.bf16.mxu0 0
    %1184 = vmatpush1.bf16.msra.mxu0 0
    %1185 = vmatprep.subr.bf16.mxu0 0
    %1186 = vmatpush1.bf16.msra.mxu0 0
    %1187 = vmatprep.subr.bf16.mxu0 0
    %1188 = vmatpush1.bf16.msra.mxu0 0
    %1189 = vmatprep.mubr.bf16.mxu0 0
    %1190 = vmatmul.mubr.bf16.gmra.mrb[0].mxu0 %v1152
    %v1191 = vpop.f32.mrb[0].mxu0
    %v1192 = vadd.f32 %v1126, %v1191
    %v1193 = vpop.f32.mrb[0].mxu0
    %v1194 = vpop.f32.mrb[0].mxu0
    %v1195 = vadd.f32 %v1126, %v1194
    %v1196 = vpop.f32.mrb[0].mxu0
    %1197 = vmatprep.mubr.bf16.mxu0 0
    %1198 = vmatmul.mubr.bf16.gmra.mrb[0].mxu0 %v1155
    %v1199 = vpop.f32.mrb[0].mxu0
    %v1200 = vadd.f32 %v1126, %v1199
    %v1201 = vpop.f32.mrb[0].mxu0
    %v1202 = vpop.f32.mrb[0].mxu0
    %v1203 = vadd.f32 %v1126, %v1202
    %v1204 = vpop.f32.mrb[0].mxu0
    %1205 = vdwg.mxu0
    %vm1206 = vcmp.ge.f32.partialorder %v1192, 0.0
    %vm1207 = vcmp.ge.f32.partialorder %v1195, 0.0
    %vm1208 = vcmp.ge.f32.partialorder %v1200, 0.0
    %vm1209 = vcmp.ge.f32.partialorder %v1203, 0.0
    %v1210 = vmul.f32 %v1192, 0.05
    %v1211 = vmul.f32 %v1195, 0.05
    %v1212 = vmul.f32 %v1200, 0.05
    %v1213 = vmul.f32 %v1203, 0.05
    %v1214 = vsel %vm1206, %v1192, %v1210
    %v1215 = vsel %vm1207, %v1195, %v1211
    %v1216 = vsel %vm1208, %v1200, %v1212
    %v1217 = vsel %vm1209, %v1203, %v1213
    %v1218 = vld [vmem:[%s3 + $0x84] sm:$0xf]
    %v1219 = vld [vmem:[%s3 + $0x88] sm:$0xf]
    %v1220 = vld [vmem:[%s3 + $0x8c] sm:$0xf]
    %v1221 = vld [vmem:[%s3 + $0x90] sm:$0xf]
    %v1222 = vld [vmem:[%s3 + $0x94] sm:$0xf]
    %v1223 = vld [vmem:[%s3 + $0x98] sm:$0xf]
    %v1224 = vld [vmem:[%s3 + $0x9c] sm:$0xf]
    %v1225 = vld [vmem:[%s3 + $0xa0] sm:$0xf]
    %v1226 = vld [vmem:[%s3 + $0xa4] sm:$0xf]
    %v1227 = vld [vmem:[%s3 + $0xa8] sm:$0xf]
    %v1228 = vld [vmem:[%s3 + $0xac] sm:$0xf]
    %v1229 = vld [vmem:[%s3 + $0xb0] sm:$0xf]
    %v1230 = vld [vmem:[%s3 + $0xb4] sm:$0xf]
    %v1231 = vld [vmem:[%s3 + $0xb8] sm:$0xf]
    %v1232 = vld [vmem:[%s3 + $0xbc] sm:$0xf]
    %v1233 = vld [vmem:[%s3 + $0xc0] sm:$0xf]
    %v1234 = vld [vmem:[%s3 + $0xc4] sm:$0xf]
    %v1235 = vld [vmem:[%s3 + $0xc8] sm:$0xf]
    %v1236 = vld [vmem:[%s3 + $0xcc] sm:$0xf]
    %v1237 = vld [vmem:[%s3 + $0xd0] sm:$0xf]
    %v1238 = vld [vmem:[%s3 + $0xd4] sm:$0xf]
    %v1239 = vld [vmem:[%s3 + $0xd8] sm:$0xf]
    %v1240 = vld [vmem:[%s3 + $0xdc] sm:$0xf]
    %v1241 = vld [vmem:[%s3 + $0xe0] sm:$0xf]
    %v1242 = vld [vmem:[%s5 + $0x3] ss:$0 sm:$0xff]
    %v1243 = vrot.slane %v1214, 7
    %v1244 = vrot.slane %v1215, 7
    %v1245 = vrot.slane %v1216, 7
    %v1246 = vrot.slane %v1217, 7
    %v1247 = vsel %vm914, %v1245, %v1246
    %v1248 = vsel %vm914, %v1244, %v1245
    %v1249 = vsel %vm914, %v1243, %v1244
    %v1250 = vsel %vm914, %v1246, %v1243
    %v1251 = vsel %vm923, %v1250, 0.0
    %v1252 = vsel %vm924, %v1249, 0.0
    %v1253 = vsel %vm925, %v1248, 0.0
    %v1254 = vsel %vm926, %v1247, 0.0
    %v1255 = vrot.slane %v1214, 1
    %v1256 = vrot.slane %v1215, 1
    %v1257 = vrot.slane %v1216, 1
    %v1258 = vrot.slane %v1217, 1
    %v1259 = vsel %vm935, %v1257, %v1258
    %v1260 = vsel %vm935, %v1256, %v1257
    %v1261 = vsel %vm935, %v1255, %v1256
    %v1262 = vsel %vm935, %v1258, %v1255
    %v1263 = vsel %vm944, %v1261, 0.0
    %v1264 = vsel %vm945, %v1260, 0.0
    %v1265 = vsel %vm946, %v1259, 0.0
    %v1266 = vsel %vm947, %v1262, 0.0
    %1271 = vrot.lane.b32.xlu0 %v1214, 64
    %v1272 = vpop.permute.xlu0 %1271
    %1273 = vrot.lane.b32.xlu0 %v1215, 64
    %v1274 = vpop.permute.xlu0 %1273
    %1275 = vrot.lane.b32.xlu0 %v1216, 64
    %v1276 = vpop.permute.xlu0 %1275
    %1277 = vrot.lane.b32.xlu0 %v1217, 64
    %v1278 = vpop.permute.xlu0 %1277
    %v1283 = vsel %vm968, %v1251, %v1272
    %v1284 = vsel %vm968, %v1252, %v1274
    %v1285 = vsel %vm968, %v1253, %v1276
    %v1286 = vsel %vm968, %v1254, %v1278
    %v1287 = vpack.c.bf16 %v1284, %v1283
    %v1288 = vpack.c.bf16 %v1264, %v1263
    %v1289 = vpack.c.bf16 %v1286, %v1285
    %v1290 = vpack.c.bf16 %v1266, %v1265
    %v1315 = vunpack.c.l.b16 %v1218
    %v1316 = vunpack.c.l.b16 %v1219
    %v1317 = vunpack.c.l.b16 %v1220
    %v1318 = vunpack.c.l.b16 %v1221
    %v1319 = vunpack.c.l.b16 %v1222
    %v1320 = vunpack.c.l.b16 %v1223
    %v1321 = vunpack.c.l.b16 %v1224
    %v1322 = vunpack.c.l.b16 %v1225
    %v1323 = vunpack.c.l.b16 %v1226
    %v1324 = vunpack.c.l.b16 %v1227
    %v1325 = vunpack.c.l.b16 %v1228
    %v1326 = vunpack.c.l.b16 %v1229
    %v1327 = vunpack.c.l.b16 %v1230
    %v1328 = vunpack.c.l.b16 %v1231
    %v1329 = vunpack.c.l.b16 %v1232
    %v1330 = vunpack.c.l.b16 %v1233
    %v1331 = vunpack.c.l.b16 %v1234
    %v1332 = vunpack.c.l.b16 %v1235
    %v1333 = vunpack.c.l.b16 %v1236
    %v1334 = vunpack.c.l.b16 %v1237
    %v1335 = vunpack.c.l.b16 %v1238
    %v1336 = vunpack.c.l.b16 %v1239
    %v1337 = vunpack.c.l.b16 %v1240
    %v1338 = vunpack.c.l.b16 %v1241
    %v1339 = vpack.c.b16 %v1316, %v1315
    %v1340 = vpack.c.b16 %v1318, %v1317
    %v1341 = vpack.c.b16 %v1320, %v1319
    %v1342 = vpack.c.b16 %v1322, %v1321
    %v1343 = vpack.c.b16 %v1324, %v1323
    %v1344 = vpack.c.b16 %v1326, %v1325
    %v1345 = vpack.c.b16 %v1328, %v1327
    %v1346 = vpack.c.b16 %v1330, %v1329
    %v1347 = vpack.c.b16 %v1332, %v1331
    %v1348 = vpack.c.b16 %v1334, %v1333
    %v1349 = vpack.c.b16 %v1336, %v1335
    %v1350 = vpack.c.b16 %v1338, %v1337
    %v1364 = vsel %vm968, %v1288, 0
    %v1367 = vsel %vm968, %v1290, 0
    %1369 = vmatprep.subr.bf16.mxu0 0
    %1370 = vmatpush1.bf16.msra.mxu0 %v1339
    %1371 = vmatprep.subr.bf16.mxu0 0
    %1372 = vmatpush1.bf16.msra.mxu0 %v1340
    %1373 = vmatprep.subr.bf16.mxu0 0
    %1374 = vmatpush1.bf16.msra.mxu0 %v1341
    %1375 = vmatprep.subr.bf16.mxu0 0
    %1376 = vmatpush1.bf16.msra.mxu0 %v1342
    %1377 = vmatprep.subr.bf16.mxu0 0
    %1378 = vmatpush1.bf16.msra.mxu0 %v1343
    %1379 = vmatprep.subr.bf16.mxu0 0
    %1380 = vmatpush1.bf16.msra.mxu0 %v1344
    %1381 = vmatprep.subr.bf16.mxu0 0
    %1382 = vmatpush1.bf16.msra.mxu0 %v1345
    %1383 = vmatprep.subr.bf16.mxu0 0
    %1384 = vmatpush1.bf16.msra.mxu0 %v1346
    %1385 = vmatprep.subr.bf16.mxu0 0
    %1386 = vmatpush1.bf16.msra.mxu0 %v1347
    %1387 = vmatprep.subr.bf16.mxu0 0
    %1388 = vmatpush1.bf16.msra.mxu0 %v1348
    %1389 = vmatprep.subr.bf16.mxu0 0
    %1390 = vmatpush1.bf16.msra.mxu0 %v1349
    %1391 = vmatprep.subr.bf16.mxu0 0
    %1392 = vmatpush1.bf16.msra.mxu0 %v1350
    %1393 = vmatprep.subr.bf16.mxu0 0
    %1394 = vmatpush1.bf16.msra.mxu0 0
    %1395 = vmatprep.subr.bf16.mxu0 0
    %1396 = vmatpush1.bf16.msra.mxu0 0
    %1397 = vmatprep.subr.bf16.mxu0 0
    %1398 = vmatpush1.bf16.msra.mxu0 0
    %1399 = vmatprep.subr.bf16.mxu0 0
    %1400 = vmatpush1.bf16.msra.mxu0 0
    %1401 = vmatprep.mubr.bf16.mxu0 %v1364
    %1402 = vmatmul.mubr.bf16.gmra.mrb[0].mxu0 %v1287
    %v1403 = vpop.f32.mrb[0].mxu0
    %v1404 = vadd.f32 %v1242, %v1403
    %v1405 = vpop.f32.mrb[0].mxu0
    %v1406 = vpop.f32.mrb[0].mxu0
    %v1407 = vadd.f32 %v1242, %v1406
    %v1408 = vpop.f32.mrb[0].mxu0
    %1409 = vmatprep.mubr.bf16.mxu0 %v1367
    %1410 = vmatmul.mubr.bf16.gmra.mrb[0].mxu0 %v1289
    %v1411 = vpop.f32.mrb[0].mxu0
    %v1412 = vadd.f32 %v1242, %v1411
    %v1413 = vpop.f32.mrb[0].mxu0
    %v1414 = vpop.f32.mrb[0].mxu0
    %v1415 = vadd.f32 %v1242, %v1414
    %v1416 = vpop.f32.mrb[0].mxu0
    %1417 = vdwg.mxu0
    %v1418 = vadd.f32 %v1404, %v871
    %v1419 = vadd.f32 %v1407, %v874
    %v1420 = vadd.f32 %v1412, %v879
    %v1421 = vadd.f32 %v1415, %v882
    %v1422 = vld [vmem:[%s3 + $0xe4] sm:$0xf]
    %v1423 = vld [vmem:[%s3 + $0xe8] sm:$0xf]
    %v1424 = vld [vmem:[%s3 + $0xec] sm:$0xf]
    %v1425 = vld [vmem:[%s3 + $0xf0] sm:$0xf]
    %v1426 = vld [vmem:[%s3 + $0xf4] sm:$0xf]
    %v1427 = vld [vmem:[%s3 + $0xf8] sm:$0xf]
    %v1428 = vld [vmem:[%s3 + $0xfc] sm:$0xf]
    %v1429 = vld [vmem:[%s3 + $0x100] sm:$0xf]
    %v1430 = vld [vmem:[%s3 + $0x104] sm:$0xf]
    %v1431 = vld [vmem:[%s3 + $0x108] sm:$0xf]
    %v1432 = vld [vmem:[%s3 + $0x10c] sm:$0xf]
    %v1433 = vld [vmem:[%s3 + $0x110] sm:$0xf]
    %v1434 = vld [vmem:[%s3 + $0x114] sm:$0xf]
    %v1435 = vld [vmem:[%s3 + $0x118] sm:$0xf]
    %v1436 = vld [vmem:[%s3 + $0x11c] sm:$0xf]
    %v1437 = vld [vmem:[%s3 + $0x120] sm:$0xf]
    %v1438 = vld [vmem:[%s3 + $0x124] sm:$0xf]
    %v1439 = vld [vmem:[%s3 + $0x128] sm:$0xf]
    %v1440 = vld [vmem:[%s3 + $0x12c] sm:$0xf]
    %v1441 = vld [vmem:[%s3 + $0x130] sm:$0xf]
    %v1442 = vld [vmem:[%s3 + $0x134] sm:$0xf]
    %v1443 = vld [vmem:[%s3 + $0x138] sm:$0xf]
    %v1444 = vld [vmem:[%s3 + $0x13c] sm:$0xf]
    %v1445 = vld [vmem:[%s3 + $0x140] sm:$0xf]
    %v1446 = vld [vmem:[%s5 + $0x4] ss:$0 sm:$0xff]
    %v1447 = vrot.slane %v1418, 7
    %v1448 = vrot.slane %v1419, 7
    %v1449 = vrot.slane %v1420, 7
    %v1450 = vrot.slane %v1421, 7
    %v1451 = vsel %vm914, %v1449, %v1450
    %v1452 = vsel %vm914, %v1448, %v1449
    %v1453 = vsel %vm914, %v1447, %v1448
    %v1454 = vsel %vm914, %v1450, %v1447
    %v1455 = vsel %vm923, %v1454, 0.0
    %v1456 = vsel %vm924, %v1453, 0.0
    %v1457 = vsel %vm925, %v1452, 0.0
    %v1458 = vsel %vm926, %v1451, 0.0
    %v1459 = vrot.slane %v1418, 1
    %v1460 = vrot.slane %v1419, 1
    %v1461 = vrot.slane %v1420, 1
    %v1462 = vrot.slane %v1421, 1
    %v1463 = vsel %vm935, %v1461, %v1462
    %v1464 = vsel %vm935, %v1460, %v1461
    %v1465 = vsel %vm935, %v1459, %v1460
    %v1466 = vsel %vm935, %v1462, %v1459
    %v1467 = vsel %vm944, %v1465, 0.0
    %v1468 = vsel %vm945, %v1464, 0.0
    %v1469 = vsel %vm946, %v1463, 0.0
    %v1470 = vsel %vm947, %v1466, 0.0
    %1475 = vrot.lane.b32.xlu0 %v1418, 64
    %v1476 = vpop.permute.xlu0 %1475
    %1477 = vrot.lane.b32.xlu0 %v1419, 64
    %v1478 = vpop.permute.xlu0 %1477
    %1479 = vrot.lane.b32.xlu0 %v1420, 64
    %v1480 = vpop.permute.xlu0 %1479
    %1481 = vrot.lane.b32.xlu0 %v1421, 64
    %v1482 = vpop.permute.xlu0 %1481
    %v1487 = vsel %vm968, %v1455, %v1476
    %v1488 = vsel %vm968, %v1456, %v1478
    %v1489 = vsel %vm968, %v1457, %v1480
    %v1490 = vsel %vm968, %v1458, %v1482
    %v1491 = vpack.c.bf16 %v1488, %v1487
    %v1492 = vpack.c.bf16 %v1468, %v1467
    %v1493 = vpack.c.bf16 %v1490, %v1489
    %v1494 = vpack.c.bf16 %v1470, %v1469
    %v1519 = vunpack.c.l.b16 %v1422
    %v1520 = vunpack.c.l.b16 %v1423
    %v1521 = vunpack.c.l.b16 %v1424
    %v1522 = vunpack.c.l.b16 %v1425
    %v1523 = vunpack.c.l.b16 %v1426
    %v1524 = vunpack.c.l.b16 %v1427
    %v1525 = vunpack.c.l.b16 %v1428
    %v1526 = vunpack.c.l.b16 %v1429
    %v1527 = vunpack.c.l.b16 %v1430
    %v1528 = vunpack.c.l.b16 %v1431
    %v1529 = vunpack.c.l.b16 %v1432
    %v1530 = vunpack.c.l.b16 %v1433
    %v1531 = vunpack.c.l.b16 %v1434
    %v1532 = vunpack.c.l.b16 %v1435
    %v1533 = vunpack.c.l.b16 %v1436
    %v1534 = vunpack.c.l.b16 %v1437
    %v1535 = vunpack.c.l.b16 %v1438
    %v1536 = vunpack.c.l.b16 %v1439
    %v1537 = vunpack.c.l.b16 %v1440
    %v1538 = vunpack.c.l.b16 %v1441
    %v1539 = vunpack.c.l.b16 %v1442
    %v1540 = vunpack.c.l.b16 %v1443
    %v1541 = vunpack.c.l.b16 %v1444
    %v1542 = vunpack.c.l.b16 %v1445
    %v1543 = vpack.c.b16 %v1520, %v1519
    %v1544 = vpack.c.b16 %v1522, %v1521
    %v1545 = vpack.c.b16 %v1524, %v1523
    %v1546 = vpack.c.b16 %v1526, %v1525
    %v1547 = vpack.c.b16 %v1528, %v1527
    %v1548 = vpack.c.b16 %v1530, %v1529
    %v1549 = vpack.c.b16 %v1532, %v1531
    %v1550 = vpack.c.b16 %v1534, %v1533
    %v1551 = vpack.c.b16 %v1536, %v1535
    %v1552 = vpack.c.b16 %v1538, %v1537
    %v1553 = vpack.c.b16 %v1540, %v1539
    %v1554 = vpack.c.b16 %v1542, %v1541
    %v1568 = vsel %vm968, %v1492, 0
    %v1571 = vsel %vm968, %v1494, 0
    %1573 = vmatprep.subr.bf16.mxu0 0
    %1574 = vmatpush1.bf16.msra.mxu0 %v1543
    %1575 = vmatprep.subr.bf16.mxu0 0
    %1576 = vmatpush1.bf16.msra.mxu0 %v1544
    %1577 = vmatprep.subr.bf16.mxu0 0
    %1578 = vmatpush1.bf16.msra.mxu0 %v1545
    %1579 = vmatprep.subr.bf16.mxu0 0
    %1580 = vmatpush1.bf16.msra.mxu0 %v1546
    %1581 = vmatprep.subr.bf16.mxu0 0
    %1582 = vmatpush1.bf16.msra.mxu0 %v1547
    %1583 = vmatprep.subr.bf16.mxu0 0
    %1584 = vmatpush1.bf16.msra.mxu0 %v1548
    %1585 = vmatprep.subr.bf16.mxu0 0
    %1586 = vmatpush1.bf16.msra.mxu0 %v1549
    %1587 = vmatprep.subr.bf16.mxu0 0
    %1588 = vmatpush1.bf16.msra.mxu0 %v1550
    %1589 = vmatprep.subr.bf16.mxu0 0
    %1590 = vmatpush1.bf16.msra.mxu0 %v1551
    %1591 = vmatprep.subr.bf16.mxu0 0
    %1592 = vmatpush1.bf16.msra.mxu0 %v1552
    %1593 = vmatprep.subr.bf16.mxu0 0
    %1594 = vmatpush1.bf16.msra.mxu0 %v1553
    %1595 = vmatprep.subr.bf16.mxu0 0
    %1596 = vmatpush1.bf16.msra.mxu0 %v1554
    %1597 = vmatprep.subr.bf16.mxu0 0
    %1598 = vmatpush1.bf16.msra.mxu0 0
    %1599 = vmatprep.subr.bf16.mxu0 0
    %1600 = vmatpush1.bf16.msra.mxu0 0
    %1601 = vmatprep.subr.bf16.mxu0 0
    %1602 = vmatpush1.bf16.msra.mxu0 0
    %1603 = vmatprep.subr.bf16.mxu0 0
    %1604 = vmatpush1.bf16.msra.mxu0 0
    %1605 = vmatprep.mubr.bf16.mxu0 %v1568
    %1606 = vmatmul.mubr.bf16.gmra.mrb[0].mxu0 %v1491
    %v1607 = vpop.f32.mrb[0].mxu0
    %v1608 = vadd.f32 %v1446, %v1607
    %v1609 = vpop.f32.mrb[0].mxu0
    %v1610 = vpop.f32.mrb[0].mxu0
    %v1611 = vadd.f32 %v1446, %v1610
    %v1612 = vpop.f32.mrb[0].mxu0
    %1613 = vmatprep.mubr.bf16.mxu0 %v1571
    %1614 = vmatmul.mubr.bf16.gmra.mrb[0].mxu0 %v1493
    %v1615 = vpop.f32.mrb[0].mxu0
    %v1616 = vadd.f32 %v1446, %v1615
    %v1617 = vpop.f32.mrb[0].mxu0
    %v1618 = vpop.f32.mrb[0].mxu0
    %v1619 = vadd.f32 %v1446, %v1618
    %v1620 = vpop.f32.mrb[0].mxu0
    %1621 = vdwg.mxu0
    %vm1622 = vcmp.ge.f32.partialorder %v1608, 0.0
    %vm1623 = vcmp.ge.f32.partialorder %v1611, 0.0
    %vm1624 = vcmp.ge.f32.partialorder %v1616, 0.0
    %vm1625 = vcmp.ge.f32.partialorder %v1619, 0.0
    %v1626 = vmul.f32 %v1608, 0.05
    %v1627 = vmul.f32 %v1611, 0.05
    %v1628 = vmul.f32 %v1616, 0.05
    %v1629 = vmul.f32 %v1619, 0.05
    %v1630 = vsel %vm1622, %v1608, %v1626
    %v1631 = vsel %vm1623, %v1611, %v1627
    %v1632 = vsel %vm1624, %v1616, %v1628
    %v1633 = vsel %vm1625, %v1619, %v1629
    %v1634 = vld [vmem:[%s3 + $0x144] sm:$0xf]
    %v1635 = vld [vmem:[%s3 + $0x148] sm:$0xf]
    %v1636 = vld [vmem:[%s3 + $0x14c] sm:$0xf]
    %v1637 = vld [vmem:[%s3 + $0x150] sm:$0xf]
    %v1638 = vld [vmem:[%s3 + $0x154] sm:$0xf]
    %v1639 = vld [vmem:[%s3 + $0x158] sm:$0xf]
    %v1640 = vld [vmem:[%s3 + $0x15c] sm:$0xf]
    %v1641 = vld [vmem:[%s3 + $0x160] sm:$0xf]
    %v1642 = vpack.c.bf16 %v1631, %v1630
    %v1643 = vpack.c.bf16 %v1633, %v1632
    %v1644 = vld [vmem:[%s5 + $0x5] ss:$0 sm:$0xff]
    %v1653 = vunpack.c.l.b16 %v1634
    %v1654 = vunpack.c.l.b16 %v1635
    %v1655 = vunpack.c.l.b16 %v1636
    %v1656 = vunpack.c.l.b16 %v1637
    %v1657 = vunpack.c.l.b16 %v1638
    %v1658 = vunpack.c.l.b16 %v1639
    %v1659 = vunpack.c.l.b16 %v1640
    %v1660 = vunpack.c.l.b16 %v1641
    %v1661 = vpack.c.b16 %v1654, %v1653
    %v1662 = vpack.c.b16 %v1656, %v1655
    %v1663 = vpack.c.b16 %v1658, %v1657
    %v1664 = vpack.c.b16 %v1660, %v1659
    %v1670 = vsel %vm968, %v1642, 0
    %v1673 = vsel %vm968, %v1643, 0
    %1675 = vmatprep.subr.bf16.mxu0 0
    %1676 = vmatpush1.bf16.msra.mxu0 %v1661
    %1677 = vmatprep.subr.bf16.mxu0 0
    %1678 = vmatpush1.bf16.msra.mxu0 %v1662
    %1679 = vmatprep.subr.bf16.mxu0 0
    %1680 = vmatpush1.bf16.msra.mxu0 %v1663
    %1681 = vmatprep.subr.bf16.mxu0 0
    %1682 = vmatpush1.bf16.msra.mxu0 %v1664
    %1683 = vmatprep.subr.bf16.mxu0 0
    %1684 = vmatpush1.bf16.msra.mxu0 0
    %1685 = vmatprep.subr.bf16.mxu0 0
    %1686 = vmatpush1.bf16.msra.mxu0 0
    %1687 = vmatprep.subr.bf16.mxu0 0
    %1688 = vmatpush1.bf16.msra.mxu0 0
    %1689 = vmatprep.subr.bf16.mxu0 0
    %1690 = vmatpush1.bf16.msra.mxu0 0
    %1691 = vmatprep.subr.bf16.mxu0 0
    %1692 = vmatpush1.bf16.msra.mxu0 0
    %1693 = vmatprep.subr.bf16.mxu0 0
    %1694 = vmatpush1.bf16.msra.mxu0 0
    %1695 = vmatprep.subr.bf16.mxu0 0
    %1696 = vmatpush1.bf16.msra.mxu0 0
    %1697 = vmatprep.subr.bf16.mxu0 0
    %1698 = vmatpush1.bf16.msra.mxu0 0
    %1699 = vmatprep.subr.bf16.mxu0 0
    %1700 = vmatpush1.bf16.msra.mxu0 0
    %1701 = vmatprep.subr.bf16.mxu0 0
    %1702 = vmatpush1.bf16.msra.mxu0 0
    %1703 = vmatprep.subr.bf16.mxu0 0
    %1704 = vmatpush1.bf16.msra.mxu0 0
    %1705 = vmatprep.subr.bf16.mxu0 0
    %1706 = vmatpush1.bf16.msra.mxu0 0
    %1707 = vmatprep.mubr.bf16.mxu0 0
    %1708 = vmatmul.mubr.bf16.gmra.mrb[0].mxu0 %v1670
    %v1709 = vpop.f32.mrb[0].mxu0
    %v1710 = vadd.f32 %v1644, %v1709
    %v1711 = vpop.f32.mrb[0].mxu0
    %v1712 = vpop.f32.mrb[0].mxu0
    %v1713 = vadd.f32 %v1644, %v1712
    %v1714 = vpop.f32.mrb[0].mxu0
    %1715 = vmatprep.mubr.bf16.mxu0 0
    %1716 = vmatmul.mubr.bf16.gmra.mrb[0].mxu0 %v1673
    %v1717 = vpop.f32.mrb[0].mxu0
    %v1718 = vadd.f32 %v1644, %v1717
    %v1719 = vpop.f32.mrb[0].mxu0
    %v1720 = vpop.f32.mrb[0].mxu0
    %v1721 = vadd.f32 %v1644, %v1720
    %v1722 = vpop.f32.mrb[0].mxu0
    %1723 = vdwg.mxu0
    %vm1724 = vcmp.ge.f32.partialorder %v1710, 0.0
    %vm1725 = vcmp.ge.f32.partialorder %v1713, 0.0
    %vm1726 = vcmp.ge.f32.partialorder %v1718, 0.0
    %vm1727 = vcmp.ge.f32.partialorder %v1721, 0.0
    %v1728 = vmul.f32 %v1710, 0.05
    %v1729 = vmul.f32 %v1713, 0.05
    %v1730 = vmul.f32 %v1718, 0.05
    %v1731 = vmul.f32 %v1721, 0.05
    %v1732 = vsel %vm1724, %v1710, %v1728
    %v1733 = vsel %vm1725, %v1713, %v1729
    %v1734 = vsel %vm1726, %v1718, %v1730
    %v1735 = vsel %vm1727, %v1721, %v1731
    %v1736 = vld [vmem:[%s3 + $0x164] sm:$0xf]
    %v1737 = vld [vmem:[%s3 + $0x168] sm:$0xf]
    %v1738 = vld [vmem:[%s3 + $0x16c] sm:$0xf]
    %v1739 = vld [vmem:[%s3 + $0x170] sm:$0xf]
    %v1740 = vld [vmem:[%s3 + $0x174] sm:$0xf]
    %v1741 = vld [vmem:[%s3 + $0x178] sm:$0xf]
    %v1742 = vld [vmem:[%s3 + $0x17c] sm:$0xf]
    %v1743 = vld [vmem:[%s3 + $0x180] sm:$0xf]
    %v1744 = vld [vmem:[%s3 + $0x184] sm:$0xf]
    %v1745 = vld [vmem:[%s3 + $0x188] sm:$0xf]
    %v1746 = vld [vmem:[%s3 + $0x18c] sm:$0xf]
    %v1747 = vld [vmem:[%s3 + $0x190] sm:$0xf]
    %v1748 = vld [vmem:[%s3 + $0x194] sm:$0xf]
    %v1749 = vld [vmem:[%s3 + $0x198] sm:$0xf]
    %v1750 = vld [vmem:[%s3 + $0x19c] sm:$0xf]
    %v1751 = vld [vmem:[%s3 + $0x1a0] sm:$0xf]
    %v1752 = vld [vmem:[%s3 + $0x1a4] sm:$0xf]
    %v1753 = vld [vmem:[%s3 + $0x1a8] sm:$0xf]
    %v1754 = vld [vmem:[%s3 + $0x1ac] sm:$0xf]
    %v1755 = vld [vmem:[%s3 + $0x1b0] sm:$0xf]
    %v1756 = vld [vmem:[%s3 + $0x1b4] sm:$0xf]
    %v1757 = vld [vmem:[%s3 + $0x1b8] sm:$0xf]
    %v1758 = vld [vmem:[%s3 + $0x1bc] sm:$0xf]
    %v1759 = vld [vmem:[%s3 + $0x1c0] sm:$0xf]
    %v1760 = vld [vmem:[%s5 + $0x6] ss:$0 sm:$0xff]
    %v1761 = vrot.slane %v1732, 7
    %v1762 = vrot.slane %v1733, 7
    %v1763 = vrot.slane %v1734, 7
    %v1764 = vrot.slane %v1735, 7
    %v1765 = vsel %vm914, %v1763, %v1764
    %v1766 = vsel %vm914, %v1762, %v1763
    %v1767 = vsel %vm914, %v1761, %v1762
    %v1768 = vsel %vm914, %v1764, %v1761
    %v1769 = vsel %vm923, %v1768, 0.0
    %v1770 = vsel %vm924, %v1767, 0.0
    %v1771 = vsel %vm925, %v1766, 0.0
    %v1772 = vsel %vm926, %v1765, 0.0
    %v1773 = vrot.slane %v1732, 1
    %v1774 = vrot.slane %v1733, 1
    %v1775 = vrot.slane %v1734, 1
    %v1776 = vrot.slane %v1735, 1
    %v1777 = vsel %vm935, %v1775, %v1776
    %v1778 = vsel %vm935, %v1774, %v1775
    %v1779 = vsel %vm935, %v1773, %v1774
    %v1780 = vsel %vm935, %v1776, %v1773
    %v1781 = vsel %vm944, %v1779, 0.0
    %v1782 = vsel %vm945, %v1778, 0.0
    %v1783 = vsel %vm946, %v1777, 0.0
    %v1784 = vsel %vm947, %v1780, 0.0
    %1789 = vrot.lane.b32.xlu0 %v1732, 64
    %v1790 = vpop.permute.xlu0 %1789
    %1791 = vrot.lane.b32.xlu0 %v1733, 64
    %v1792 = vpop.permute.xlu0 %1791
    %1793 = vrot.lane.b32.xlu0 %v1734, 64
    %v1794 = vpop.permute.xlu0 %1793
    %1795 = vrot.lane.b32.xlu0 %v1735, 64
    %v1796 = vpop.permute.xlu0 %1795
    %v1801 = vsel %vm968, %v1769, %v1790
    %v1802 = vsel %vm968, %v1770, %v1792
    %v1803 = vsel %vm968, %v1771, %v1794
    %v1804 = vsel %vm968, %v1772, %v1796
    %v1805 = vpack.c.bf16 %v1802, %v1801
    %v1806 = vpack.c.bf16 %v1782, %v1781
    %v1807 = vpack.c.bf16 %v1804, %v1803
    %v1808 = vpack.c.bf16 %v1784, %v1783
    %v1833 = vunpack.c.l.b16 %v1736
    %v1834 = vunpack.c.l.b16 %v1737
    %v1835 = vunpack.c.l.b16 %v1738
    %v1836 = vunpack.c.l.b16 %v1739
    %v1837 = vunpack.c.l.b16 %v1740
    %v1838 = vunpack.c.l.b16 %v1741
    %v1839 = vunpack.c.l.b16 %v1742
    %v1840 = vunpack.c.l.b16 %v1743
    %v1841 = vunpack.c.l.b16 %v1744
    %v1842 = vunpack.c.l.b16 %v1745
    %v1843 = vunpack.c.l.b16 %v1746
    %v1844 = vunpack.c.l.b16 %v1747
    %v1845 = vunpack.c.l.b16 %v1748
    %v1846 = vunpack.c.l.b16 %v1749
    %v1847 = vunpack.c.l.b16 %v1750
    %v1848 = vunpack.c.l.b16 %v1751
    %v1849 = vunpack.c.l.b16 %v1752
    %v1850 = vunpack.c.l.b16 %v1753
    %v1851 = vunpack.c.l.b16 %v1754
    %v1852 = vunpack.c.l.b16 %v1755
    %v1853 = vunpack.c.l.b16 %v1756
    %v1854 = vunpack.c.l.b16 %v1757
    %v1855 = vunpack.c.l.b16 %v1758
    %v1856 = vunpack.c.l.b16 %v1759
    %v1857 = vpack.c.b16 %v1834, %v1833
    %v1858 = vpack.c.b16 %v1836, %v1835
    %v1859 = vpack.c.b16 %v1838, %v1837
    %v1860 = vpack.c.b16 %v1840, %v1839
    %v1861 = vpack.c.b16 %v1842, %v1841
    %v1862 = vpack.c.b16 %v1844, %v1843
    %v1863 = vpack.c.b16 %v1846, %v1845
    %v1864 = vpack.c.b16 %v1848, %v1847
    %v1865 = vpack.c.b16 %v1850, %v1849
    %v1866 = vpack.c.b16 %v1852, %v1851
    %v1867 = vpack.c.b16 %v1854, %v1853
    %v1868 = vpack.c.b16 %v1856, %v1855
    %v1882 = vsel %vm968, %v1806, 0
    %v1885 = vsel %vm968, %v1808, 0
    %1887 = vmatprep.subr.bf16.mxu0 0
    %1888 = vmatpush1.bf16.msra.mxu0 %v1857
    %1889 = vmatprep.subr.bf16.mxu0 0
    %1890 = vmatpush1.bf16.msra.mxu0 %v1858
    %1891 = vmatprep.subr.bf16.mxu0 0
    %1892 = vmatpush1.bf16.msra.mxu0 %v1859
    %1893 = vmatprep.subr.bf16.mxu0 0
    %1894 = vmatpush1.bf16.msra.mxu0 %v1860
    %1895 = vmatprep.subr.bf16.mxu0 0
    %1896 = vmatpush1.bf16.msra.mxu0 %v1861
    %1897 = vmatprep.subr.bf16.mxu0 0
    %1898 = vmatpush1.bf16.msra.mxu0 %v1862
    %1899 = vmatprep.subr.bf16.mxu0 0
    %1900 = vmatpush1.bf16.msra.mxu0 %v1863
    %1901 = vmatprep.subr.bf16.mxu0 0
    %1902 = vmatpush1.bf16.msra.mxu0 %v1864
    %1903 = vmatprep.subr.bf16.mxu0 0
    %1904 = vmatpush1.bf16.msra.mxu0 %v1865
    %1905 = vmatprep.subr.bf16.mxu0 0
    %1906 = vmatpush1.bf16.msra.mxu0 %v1866
    %1907 = vmatprep.subr.bf16.mxu0 0
    %1908 = vmatpush1.bf16.msra.mxu0 %v1867
    %1909 = vmatprep.subr.bf16.mxu0 0
    %1910 = vmatpush1.bf16.msra.mxu0 %v1868
    %1911 = vmatprep.subr.bf16.mxu0 0
    %1912 = vmatpush1.bf16.msra.mxu0 0
    %1913 = vmatprep.subr.bf16.mxu0 0
    %1914 = vmatpush1.bf16.msra.mxu0 0
    %1915 = vmatprep.subr.bf16.mxu0 0
    %1916 = vmatpush1.bf16.msra.mxu0 0
    %1917 = vmatprep.subr.bf16.mxu0 0
    %1918 = vmatpush1.bf16.msra.mxu0 0
    %1919 = vmatprep.mubr.bf16.mxu0 %v1882
    %1920 = vmatmul.mubr.bf16.gmra.mrb[0].mxu0 %v1805
    %v1921 = vpop.f32.mrb[0].mxu0
    %v1922 = vadd.f32 %v1760, %v1921
    %v1923 = vpop.f32.mrb[0].mxu0
    %v1924 = vpop.f32.mrb[0].mxu0
    %v1925 = vadd.f32 %v1760, %v1924
    %v1926 = vpop.f32.mrb[0].mxu0
    %1927 = vmatprep.mubr.bf16.mxu0 %v1885
    %1928 = vmatmul.mubr.bf16.gmra.mrb[0].mxu0 %v1807
    %v1929 = vpop.f32.mrb[0].mxu0
    %v1930 = vadd.f32 %v1760, %v1929
    %v1931 = vpop.f32.mrb[0].mxu0
    %v1932 = vpop.f32.mrb[0].mxu0
    %v1933 = vadd.f32 %v1760, %v1932
    %v1934 = vpop.f32.mrb[0].mxu0
    %1935 = vdwg.mxu0
    %v1936 = vadd.f32 %v1922, %v1418
    %v1937 = vadd.f32 %v1925, %v1419
    %v1938 = vadd.f32 %v1930, %v1420
    %v1939 = vadd.f32 %v1933, %v1421
    %v1940 = vld [vmem:[%s1] sm:$0xf]
    %v1941 = vld [vmem:[%s1 + $0x4] sm:$0xf]
    %v1942 = vpack.c.bf16 %v1937, %v1936
    %v1943 = vpack.c.bf16 %v1939, %v1938
    %v1946 = vunpack.c.l.b16 %v1940
    %v1947 = vunpack.c.l.b16 %v1941
    %v1948 = vpack.c.b16 %v1947, %v1946
    %vm1949 = vcmask 261120
    %v1951 = vsel %vm1949, %v1948, 0
    %1953 = vmatprep.subr.bf16.mxu0 0
    %1954 = vmatpush1.bf16.msra.mxu0 %v1942
    %1955 = vmatprep.subr.bf16.mxu0 0
    %1956 = vmatpush1.bf16.msra.mxu0 %v1943
    %1957 = vmatprep.subr.bf16.mxu0 0
    %1958 = vmatpush1.bf16.msra.mxu0 0
    %1959 = vmatprep.subr.bf16.mxu0 0
    %1960 = vmatpush1.bf16.msra.mxu0 0
    %1961 = vmatprep.subr.bf16.mxu0 0
    %1962 = vmatpush1.bf16.msra.mxu0 0
    %1963 = vmatprep.subr.bf16.mxu0 0
    %1964 = vmatpush1.bf16.msra.mxu0 0
    %1965 = vmatprep.subr.bf16.mxu0 0
    %1966 = vmatpush1.bf16.msra.mxu0 0
    %1967 = vmatprep.subr.bf16.mxu0 0
    %1968 = vmatpush1.bf16.msra.mxu0 0
    %1969 = vmatprep.subr.bf16.mxu0 0
    %1970 = vmatpush1.bf16.msra.mxu0 0
    %1971 = vmatprep.subr.bf16.mxu0 0
    %1972 = vmatpush1.bf16.msra.mxu0 0
    %1973 = vmatprep.subr.bf16.mxu0 0
    %1974 = vmatpush1.bf16.msra.mxu0 0
    %1975 = vmatprep.subr.bf16.mxu0 0
    %1976 = vmatpush1.bf16.msra.mxu0 0
    %1977 = vmatprep.subr.bf16.mxu0 0
    %1978 = vmatpush1.bf16.msra.mxu0 0
    %1979 = vmatprep.subr.bf16.mxu0 0
    %1980 = vmatpush1.bf16.msra.mxu0 0
    %1981 = vmatprep.subr.bf16.mxu0 0
    %1982 = vmatpush1.bf16.msra.mxu0 0
    %1983 = vmatprep.subr.bf16.mxu0 0
    %1984 = vmatpush1.bf16.msra.mxu0 0
    %1985 = vmatprep.mubr.bf16.mxu0 0
    %1986 = vmatmul.mubr.bf16.gmra.mrb[0].mxu0 %v1951
    %v1987 = vpop.f32.mrb[0].mxu0
    %v1988 = vadd.f32 0.0, %v1987
    %v1989 = vpop.f32.mrb[0].mxu0
    %v1990 = vpop.f32.mrb[0].mxu0
    %v1991 = vadd.f32 0.0, %v1990
    %v1992 = vpop.f32.mrb[0].mxu0
    %1993 = vdwg.mxu0
    %v1994 = vld [vmem:[#allocation4] sm:$0xf]
    %v1995 = vld [vmem:[#allocation4 + $0x4] sm:$0xf]
    %v1996 = vld [vmem:[#allocation4 + $0x8] sm:$0xf]
    %v1997 = vld [vmem:[#allocation4 + $0xc] sm:$0xf]
    %v1998 = vld [vmem:[#allocation4 + $0x10] sm:$0xf]
    %v1999 = vld [vmem:[#allocation4 + $0x14] sm:$0xf]
    %v2000 = vld [vmem:[#allocation4 + $0x18] sm:$0xf]
    %v2001 = vld [vmem:[#allocation4 + $0x1c] sm:$0xf]
    %v2002 = vpack.c.bf16 %v1991, %v1988
    %v2003 = vld [vmem:[%s5 + $0x15] ss:$0 sm:$0xff]
    %v2012 = vunpack.c.l.b16 %v1994
    %v2013 = vunpack.c.l.b16 %v1995
    %v2014 = vunpack.c.l.b16 %v1996
    %v2015 = vunpack.c.l.b16 %v1997
    %v2016 = vunpack.c.l.b16 %v1998
    %v2017 = vunpack.c.l.b16 %v1999
    %v2018 = vunpack.c.l.b16 %v2000
    %v2019 = vunpack.c.l.b16 %v2001
    %v2020 = vpack.c.b16 %v2013, %v2012
    %v2021 = vpack.c.b16 %v2015, %v2014
    %v2022 = vpack.c.b16 %v2017, %v2016
    %v2023 = vpack.c.b16 %v2019, %v2018
    %v2029 = vsel %vm968, %v2002, 0
    %2031 = vmatprep.subr.bf16.mxu0 0
    %2032 = vmatpush1.bf16.msra.mxu0 %v2020
    %2033 = vmatprep.subr.bf16.mxu0 0
    %2034 = vmatpush1.bf16.msra.mxu0 %v2021
    %2035 = vmatprep.subr.bf16.mxu0 0
    %2036 = vmatpush1.bf16.msra.mxu0 %v2022
    %2037 = vmatprep.subr.bf16.mxu0 0
    %2038 = vmatpush1.bf16.msra.mxu0 %v2023
    %2039 = vmatprep.subr.bf16.mxu0 0
    %2040 = vmatpush1.bf16.msra.mxu0 0
    %2041 = vmatprep.subr.bf16.mxu0 0
    %2042 = vmatpush1.bf16.msra.mxu0 0
    %2043 = vmatprep.subr.bf16.mxu0 0
    %2044 = vmatpush1.bf16.msra.mxu0 0
    %2045 = vmatprep.subr.bf16.mxu0 0
    %2046 = vmatpush1.bf16.msra.mxu0 0
    %2047 = vmatprep.subr.bf16.mxu0 0
    %2048 = vmatpush1.bf16.msra.mxu0 0
    %2049 = vmatprep.subr.bf16.mxu0 0
    %2050 = vmatpush1.bf16.msra.mxu0 0
    %2051 = vmatprep.subr.bf16.mxu0 0
    %2052 = vmatpush1.bf16.msra.mxu0 0
    %2053 = vmatprep.subr.bf16.mxu0 0
    %2054 = vmatpush1.bf16.msra.mxu0 0
    %2055 = vmatprep.subr.bf16.mxu0 0
    %2056 = vmatpush1.bf16.msra.mxu0 0
    %2057 = vmatprep.subr.bf16.mxu0 0
    %2058 = vmatpush1.bf16.msra.mxu0 0
    %2059 = vmatprep.subr.bf16.mxu0 0
    %2060 = vmatpush1.bf16.msra.mxu0 0
    %2061 = vmatprep.subr.bf16.mxu0 0
    %2062 = vmatpush1.bf16.msra.mxu0 0
    %2063 = vmatprep.mubr.bf16.mxu0 0
    %2064 = vmatmul.mubr.bf16.gmra.mrb[0].mxu0 %v2029
    %v2065 = vpop.f32.mrb[0].mxu0
    %v2066 = vadd.f32 %v2003, %v2065
    %v2067 = vpop.f32.mrb[0].mxu0
    %v2068 = vpop.f32.mrb[0].mxu0
    %v2069 = vadd.f32 %v2003, %v2068
    %v2070 = vpop.f32.mrb[0].mxu0
    %2071 = vdwg.mxu0
    %v2072 = vld [vmem:[#allocation4 + $0x20] sm:$0xf]
    %v2073 = vld [vmem:[#allocation4 + $0x24] sm:$0xf]
    %v2074 = vld [vmem:[#allocation4 + $0x28] sm:$0xf]
    %v2075 = vld [vmem:[#allocation4 + $0x2c] sm:$0xf]
    %v2076 = vld [vmem:[#allocation4 + $0x30] sm:$0xf]
    %v2077 = vld [vmem:[#allocation4 + $0x34] sm:$0xf]
    %v2078 = vld [vmem:[#allocation4 + $0x38] sm:$0xf]
    %v2079 = vld [vmem:[#allocation4 + $0x3c] sm:$0xf]
    %v2080 = vld [vmem:[#allocation4 + $0x40] sm:$0xf]
    %v2081 = vld [vmem:[#allocation4 + $0x44] sm:$0xf]
    %v2082 = vld [vmem:[#allocation4 + $0x48] sm:$0xf]
    %v2083 = vld [vmem:[#allocation4 + $0x4c] sm:$0xf]
    %v2084 = vld [vmem:[#allocation4 + $0x50] sm:$0xf]
    %v2085 = vld [vmem:[#allocation4 + $0x54] sm:$0xf]
    %v2086 = vld [vmem:[#allocation4 + $0x58] sm:$0xf]
    %v2087 = vld [vmem:[#allocation4 + $0x5c] sm:$0xf]
    %v2088 = vld [vmem:[#allocation4 + $0x60] sm:$0xf]
    %v2089 = vld [vmem:[#allocation4 + $0x64] sm:$0xf]
    %v2090 = vld [vmem:[#allocation4 + $0x68] sm:$0xf]
    %v2091 = vld [vmem:[#allocation4 + $0x6c] sm:$0xf]
    %v2092 = vld [vmem:[#allocation4 + $0x70] sm:$0xf]
    %v2093 = vld [vmem:[#allocation4 + $0x74] sm:$0xf]
    %v2094 = vld [vmem:[#allocation4 + $0x78] sm:$0xf]
    %v2095 = vld [vmem:[#allocation4 + $0x7c] sm:$0xf]
    %v2096 = vld [vmem:[#allocation4 + $0x80] sm:$0xf]
    %v2097 = vld [vmem:[#allocation4 + $0x84] sm:$0xf]
    %v2098 = vld [vmem:[#allocation4 + $0x88] sm:$0xf]
    %v2099 = vld [vmem:[#allocation4 + $0x8c] sm:$0xf]
    %v2100 = vld [vmem:[#allocation4 + $0x90] sm:$0xf]
    %v2101 = vld [vmem:[#allocation4 + $0x94] sm:$0xf]
    %v2102 = vld [vmem:[#allocation4 + $0x98] sm:$0xf]
    %v2103 = vld [vmem:[#allocation4 + $0x9c] sm:$0xf]
    %v2104 = vld [vmem:[#allocation4 + $0xa0] sm:$0xf]
    %v2105 = vld [vmem:[#allocation4 + $0xa4] sm:$0xf]
    %v2106 = vld [vmem:[#allocation4 + $0xa8] sm:$0xf]
    %v2107 = vld [vmem:[#allocation4 + $0xac] sm:$0xf]
    %v2108 = vld [vmem:[#allocation4 + $0xb0] sm:$0xf]
    %v2109 = vld [vmem:[#allocation4 + $0xb4] sm:$0xf]
    %v2110 = vld [vmem:[#allocation4 + $0xb8] sm:$0xf]
    %v2111 = vld [vmem:[#allocation4 + $0xbc] sm:$0xf]
    %v2112 = vld [vmem:[#allocation4 + $0xc0] sm:$0xf]
    %v2113 = vld [vmem:[#allocation4 + $0xc4] sm:$0xf]
    %v2114 = vld [vmem:[#allocation4 + $0xc8] sm:$0xf]
    %v2115 = vld [vmem:[#allocation4 + $0xcc] sm:$0xf]
    %v2116 = vld [vmem:[#allocation4 + $0xd0] sm:$0xf]
    %v2117 = vld [vmem:[#allocation4 + $0xd4] sm:$0xf]
    %v2118 = vld [vmem:[#allocation4 + $0xd8] sm:$0xf]
    %v2119 = vld [vmem:[#allocation4 + $0xdc] sm:$0xf]
    %v2120 = vld [vmem:[%s5 + $0x7] ss:$0 sm:$0xff]
    %v2121 = vrot.slane %v2066, 7
    %v2122 = vrot.slane %v2069, 7
    %v2123 = vsel %vm914, %v2121, %v2122
    %v2124 = vsel %vm914, %v2122, %v2121
    %v2125 = vsel %vm813, 1, 0
    %v2126 = vsel %vm814, 1, 0
    %vm2127 = vcmp.eq.s32.totalorder %v2125, 1
    %vm2128 = vcmp.eq.s32.totalorder %v2126, 1
    %v2129 = vsel %vm2127, %v2124, 0.0
    %v2130 = vsel %vm2128, %v2123, 0.0
    %v2131 = vrot.slane %v2066, 1
    %v2132 = vrot.slane %v2069, 1
    %v2133 = vsel %vm935, %v2131, %v2132
    %v2134 = vsel %vm935, %v2132, %v2131
    %v2135 = vsel %vm815, 1, 0
    %v2136 = vsel %vm816, 1, 0
    %vm2137 = vcmp.eq.s32.totalorder %v2135, 1
    %vm2138 = vcmp.eq.s32.totalorder %v2136, 1
    %v2139 = vsel %vm2137, %v2133, 0.0
    %v2140 = vsel %vm2138, %v2134, 0.0
    %v2141 = vpack.c.bf16 %v2130, %v2129
    %v2142 = vpack.c.bf16 %v2069, %v2066
    %v2143 = vpack.c.bf16 %v2140, %v2139
    %v2192 = vunpack.c.l.b16 %v2072
    %v2193 = vunpack.c.l.b16 %v2073
    %v2194 = vunpack.c.l.b16 %v2074
    %v2195 = vunpack.c.l.b16 %v2075
    %v2196 = vunpack.c.l.b16 %v2076
    %v2197 = vunpack.c.l.b16 %v2077
    %v2198 = vunpack.c.l.b16 %v2078
    %v2199 = vunpack.c.l.b16 %v2079
    %v2200 = vunpack.c.l.b16 %v2080
    %v2201 = vunpack.c.l.b16 %v2081
    %v2202 = vunpack.c.l.b16 %v2082
    %v2203 = vunpack.c.l.b16 %v2083
    %v2204 = vunpack.c.l.b16 %v2084
    %v2205 = vunpack.c.l.b16 %v2085
    %v2206 = vunpack.c.l.b16 %v2086
    %v2207 = vunpack.c.l.b16 %v2087
    %v2208 = vunpack.c.l.b16 %v2088
    %v2209 = vunpack.c.l.b16 %v2089
    %v2210 = vunpack.c.l.b16 %v2090
    %v2211 = vunpack.c.l.b16 %v2091
    %v2212 = vunpack.c.l.b16 %v2092
    %v2213 = vunpack.c.l.b16 %v2093
    %v2214 = vunpack.c.l.b16 %v2094
    %v2215 = vunpack.c.l.b16 %v2095
    %v2216 = vunpack.c.l.b16 %v2096
    %v2217 = vunpack.c.l.b16 %v2097
    %v2218 = vunpack.c.l.b16 %v2098
    %v2219 = vunpack.c.l.b16 %v2099
    %v2220 = vunpack.c.l.b16 %v2100
    %v2221 = vunpack.c.l.b16 %v2101
    %v2222 = vunpack.c.l.b16 %v2102
    %v2223 = vunpack.c.l.b16 %v2103
    %v2224 = vunpack.c.l.b16 %v2104
    %v2225 = vunpack.c.l.b16 %v2105
    %v2226 = vunpack.c.l.b16 %v2106
    %v2227 = vunpack.c.l.b16 %v2107
    %v2228 = vunpack.c.l.b16 %v2108
    %v2229 = vunpack.c.l.b16 %v2109
    %v2230 = vunpack.c.l.b16 %v2110
    %v2231 = vunpack.c.l.b16 %v2111
    %v2232 = vunpack.c.l.b16 %v2112
    %v2233 = vunpack.c.l.b16 %v2113
    %v2234 = vunpack.c.l.b16 %v2114
    %v2235 = vunpack.c.l.b16 %v2115
    %v2236 = vunpack.c.l.b16 %v2116
    %v2237 = vunpack.c.l.b16 %v2117
    %v2238 = vunpack.c.l.b16 %v2118
    %v2239 = vunpack.c.l.b16 %v2119
    %v2240 = vpack.c.b16 %v2193, %v2192
    %v2241 = vpack.c.b16 %v2195, %v2194
    %v2242 = vpack.c.b16 %v2197, %v2196
    %v2243 = vpack.c.b16 %v2199, %v2198
    %v2244 = vpack.c.b16 %v2201, %v2200
    %v2245 = vpack.c.b16 %v2203, %v2202
    %v2246 = vpack.c.b16 %v2205, %v2204
    %v2247 = vpack.c.b16 %v2207, %v2206
    %v2248 = vpack.c.b16 %v2209, %v2208
    %v2249 = vpack.c.b16 %v2211, %v2210
    %v2250 = vpack.c.b16 %v2213, %v2212
    %v2251 = vpack.c.b16 %v2215, %v2214
    %v2252 = vpack.c.b16 %v2217, %v2216
    %v2253 = vpack.c.b16 %v2219, %v2218
    %v2254 = vpack.c.b16 %v2221, %v2220
    %v2255 = vpack.c.b16 %v2223, %v2222
    %v2256 = vpack.c.b16 %v2225, %v2224
    %v2257 = vpack.c.b16 %v2227, %v2226
    %v2258 = vpack.c.b16 %v2229, %v2228
    %v2259 = vpack.c.b16 %v2231, %v2230
    %v2260 = vpack.c.b16 %v2233, %v2232
    %v2261 = vpack.c.b16 %v2235, %v2234
    %v2262 = vpack.c.b16 %v2237, %v2236
    %v2263 = vpack.c.b16 %v2239, %v2238
    %2288 = vmatprep.subr.bf16.mxu0 0
    %2289 = vmatpush1.bf16.msra.mxu0 %v2240
    %2290 = vmatprep.subr.bf16.mxu0 0
    %2291 = vmatpush1.bf16.msra.mxu0 %v2241
    %2292 = vmatprep.subr.bf16.mxu0 0
    %2293 = vmatpush1.bf16.msra.mxu0 %v2242
    %2294 = vmatprep.subr.bf16.mxu0 0
    %2295 = vmatpush1.bf16.msra.mxu0 %v2243
    %2296 = vmatprep.subr.bf16.mxu0 0
    %2297 = vmatpush1.bf16.msra.mxu0 %v2244
    %2298 = vmatprep.subr.bf16.mxu0 0
    %2299 = vmatpush1.bf16.msra.mxu0 %v2245
    %2300 = vmatprep.subr.bf16.mxu0 0
    %2301 = vmatpush1.bf16.msra.mxu0 %v2246
    %2302 = vmatprep.subr.bf16.mxu0 0
    %2303 = vmatpush1.bf16.msra.mxu0 %v2247
    %2304 = vmatprep.subr.bf16.mxu0 0
    %2305 = vmatpush1.bf16.msra.mxu0 %v2248
    %2306 = vmatprep.subr.bf16.mxu0 0
    %2307 = vmatpush1.bf16.msra.mxu0 %v2249
    %2308 = vmatprep.subr.bf16.mxu0 0
    %2309 = vmatpush1.bf16.msra.mxu0 %v2250
    %2310 = vmatprep.subr.bf16.mxu0 0
    %2311 = vmatpush1.bf16.msra.mxu0 %v2251
    %2312 = vmatprep.subr.bf16.mxu0 0
    %2313 = vmatpush1.bf16.msra.mxu0 %v2252
    %2314 = vmatprep.subr.bf16.mxu0 0
    %2315 = vmatpush1.bf16.msra.mxu0 %v2253
    %2316 = vmatprep.subr.bf16.mxu0 0
    %2317 = vmatpush1.bf16.msra.mxu0 %v2254
    %2318 = vmatprep.subr.bf16.mxu0 0
    %2319 = vmatpush1.bf16.msra.mxu0 %v2255
    %2320 = vmatprep.mubr.bf16.mxu0 %v2142
    %2321 = vmatmul.mubr.bf16.gmra.mrb[0].mxu0 %v2141
    %v2322 = vpop.f32.mrb[0].mxu0
    %v2323 = vadd.f32 %v2120, %v2322
    %v2324 = vpop.f32.mrb[0].mxu0
    %v2325 = vpop.f32.mrb[0].mxu0
    %v2326 = vadd.f32 %v2120, %v2325
    %v2327 = vpop.f32.mrb[0].mxu0
    %2328 = vdwg.mxu0
    %2329 = vmatprep.subr.bf16.mxu0 0
    %2330 = vmatpush1.bf16.msra.mxu0 %v2256
    %2331 = vmatprep.subr.bf16.mxu0 0
    %2332 = vmatpush1.bf16.msra.mxu0 %v2257
    %2333 = vmatprep.subr.bf16.mxu0 0
    %2334 = vmatpush1.bf16.msra.mxu0 %v2258
    %2335 = vmatprep.subr.bf16.mxu0 0
    %2336 = vmatpush1.bf16.msra.mxu0 %v2259
    %2337 = vmatprep.subr.bf16.mxu0 0
    %2338 = vmatpush1.bf16.msra.mxu0 %v2260
    %2339 = vmatprep.subr.bf16.mxu0 0
    %2340 = vmatpush1.bf16.msra.mxu0 %v2261
    %2341 = vmatprep.subr.bf16.mxu0 0
    %2342 = vmatpush1.bf16.msra.mxu0 %v2262
    %2343 = vmatprep.subr.bf16.mxu0 0
    %2344 = vmatpush1.bf16.msra.mxu0 %v2263
    %2345 = vmatprep.subr.bf16.mxu0 0
    %2346 = vmatpush1.bf16.msra.mxu0 0
    %2347 = vmatprep.subr.bf16.mxu0 0
    %2348 = vmatpush1.bf16.msra.mxu0 0
    %2349 = vmatprep.subr.bf16.mxu0 0
    %2350 = vmatpush1.bf16.msra.mxu0 0
    %2351 = vmatprep.subr.bf16.mxu0 0
    %2352 = vmatpush1.bf16.msra.mxu0 0
    %2353 = vmatprep.subr.bf16.mxu0 0
    %2354 = vmatpush1.bf16.msra.mxu0 0
    %2355 = vmatprep.subr.bf16.mxu0 0
    %2356 = vmatpush1.bf16.msra.mxu0 0
    %2357 = vmatprep.subr.bf16.mxu0 0
    %2358 = vmatpush1.bf16.msra.mxu0 0
    %2359 = vmatprep.subr.bf16.mxu0 0
    %2360 = vmatpush1.bf16.msra.mxu0 0
    %2361 = vmatprep.mubr.bf16.mxu0 0
    %2362 = vmatmul.mubr.bf16.gmra.mrb[0].mxu0 %v2143
    %v2363 = vpop.f32.mrb[0].mxu0
    %v2364 = vadd.f32 %v2323, %v2363
    %v2365 = vpop.f32.mrb[0].mxu0
    %v2366 = vpop.f32.mrb[0].mxu0
    %v2367 = vadd.f32 %v2326, %v2366
    %v2368 = vpop.f32.mrb[0].mxu0
    %2369 = vdwg.mxu0
    %vm2370 = vcmp.ge.f32.partialorder %v2364, 0.0
    %vm2371 = vcmp.ge.f32.partialorder %v2367, 0.0
    %v2372 = vmul.f32 %v2364, 0.05
    %v2373 = vmul.f32 %v2367, 0.05
    %v2374 = vsel %vm2370, %v2364, %v2372
    %v2375 = vsel %vm2371, %v2367, %v2373
    %v2376 = vld [vmem:[#allocation4 + $0xe0] sm:$0xf]
    %v2377 = vld [vmem:[#allocation4 + $0xe4] sm:$0xf]
    %v2378 = vld [vmem:[#allocation4 + $0xe8] sm:$0xf]
    %v2379 = vld [vmem:[#allocation4 + $0xec] sm:$0xf]
    %v2380 = vld [vmem:[#allocation4 + $0xf0] sm:$0xf]
    %v2381 = vld [vmem:[#allocation4 + $0xf4] sm:$0xf]
    %v2382 = vld [vmem:[#allocation4 + $0xf8] sm:$0xf]
    %v2383 = vld [vmem:[#allocation4 + $0xfc] sm:$0xf]
    %v2384 = vld [vmem:[#allocation4 + $0x100] sm:$0xf]
    %v2385 = vld [vmem:[#allocation4 + $0x104] sm:$0xf]
    %v2386 = vld [vmem:[#allocation4 + $0x108] sm:$0xf]
    %v2387 = vld [vmem:[#allocation4 + $0x10c] sm:$0xf]
    %v2388 = vld [vmem:[#allocation4 + $0x110] sm:$0xf]
    %v2389 = vld [vmem:[#allocation4 + $0x114] sm:$0xf]
    %v2390 = vld [vmem:[#allocation4 + $0x118] sm:$0xf]
    %v2391 = vld [vmem:[#allocation4 + $0x11c] sm:$0xf]
    %v2392 = vpack.c.bf16 %v2375, %v2374
    %v2393 = vld [vmem:[%s5 + $0x10] ss:$0 sm:$0xff]
    %v2410 = vunpack.c.l.b16 %v2376
    %v2411 = vunpack.c.l.b16 %v2377
    %v2412 = vunpack.c.l.b16 %v2378
    %v2413 = vunpack.c.l.b16 %v2379
    %v2414 = vunpack.c.l.b16 %v2380
    %v2415 = vunpack.c.l.b16 %v2381
    %v2416 = vunpack.c.l.b16 %v2382
    %v2417 = vunpack.c.l.b16 %v2383
    %v2418 = vunpack.c.l.b16 %v2384
    %v2419 = vunpack.c.l.b16 %v2385
    %v2420 = vunpack.c.l.b16 %v2386
    %v2421 = vunpack.c.l.b16 %v2387
    %v2422 = vunpack.c.l.b16 %v2388
    %v2423 = vunpack.c.l.b16 %v2389
    %v2424 = vunpack.c.l.b16 %v2390
    %v2425 = vunpack.c.l.b16 %v2391
    %v2426 = vpack.c.b16 %v2411, %v2410
    %v2427 = vpack.c.b16 %v2413, %v2412
    %v2428 = vpack.c.b16 %v2415, %v2414
    %v2429 = vpack.c.b16 %v2417, %v2416
    %v2430 = vpack.c.b16 %v2419, %v2418
    %v2431 = vpack.c.b16 %v2421, %v2420
    %v2432 = vpack.c.b16 %v2423, %v2422
    %v2433 = vpack.c.b16 %v2425, %v2424
    %2442 = vmatprep.subr.bf16.mxu0 0
    %2443 = vmatpush1.bf16.msra.mxu0 %v2426
    %2444 = vmatprep.subr.bf16.mxu0 0
    %2445 = vmatpush1.bf16.msra.mxu0 %v2427
    %2446 = vmatprep.subr.bf16.mxu0 0
    %2447 = vmatpush1.bf16.msra.mxu0 %v2428
    %2448 = vmatprep.subr.bf16.mxu0 0
    %2449 = vmatpush1.bf16.msra.mxu0 %v2429
    %2450 = vmatprep.subr.bf16.mxu0 0
    %2451 = vmatpush1.bf16.msra.mxu0 %v2430
    %2452 = vmatprep.subr.bf16.mxu0 0
    %2453 = vmatpush1.bf16.msra.mxu0 %v2431
    %2454 = vmatprep.subr.bf16.mxu0 0
    %2455 = vmatpush1.bf16.msra.mxu0 %v2432
    %2456 = vmatprep.subr.bf16.mxu0 0
    %2457 = vmatpush1.bf16.msra.mxu0 %v2433
    %2458 = vmatprep.subr.bf16.mxu0 0
    %2459 = vmatpush1.bf16.msra.mxu0 0
    %2460 = vmatprep.subr.bf16.mxu0 0
    %2461 = vmatpush1.bf16.msra.mxu0 0
    %2462 = vmatprep.subr.bf16.mxu0 0
    %2463 = vmatpush1.bf16.msra.mxu0 0
    %2464 = vmatprep.subr.bf16.mxu0 0
    %2465 = vmatpush1.bf16.msra.mxu0 0
    %2466 = vmatprep.subr.bf16.mxu0 0
    %2467 = vmatpush1.bf16.msra.mxu0 0
    %2468 = vmatprep.subr.bf16.mxu0 0
    %2469 = vmatpush1.bf16.msra.mxu0 0
    %2470 = vmatprep.subr.bf16.mxu0 0
    %2471 = vmatpush1.bf16.msra.mxu0 0
    %2472 = vmatprep.subr.bf16.mxu0 0
    %2473 = vmatpush1.bf16.msra.mxu0 0
    %2474 = vmatprep.mubr.bf16.mxu0 0
    %2475 = vmatmul.mubr.bf16.gmra.mrb[0].mxu0 %v2392
    %v2476 = vpop.f32.mrb[0].mxu0
    %v2477 = vadd.f32 %v2393, %v2476
    %v2478 = vpop.f32.mrb[0].mxu0
    %v2479 = vpop.f32.mrb[0].mxu0
    %v2480 = vadd.f32 %v2393, %v2479
    %v2481 = vpop.f32.mrb[0].mxu0
    %2482 = vdwg.mxu0
    %vm2483 = vcmp.ge.f32.partialorder %v2477, 0.0
    %vm2484 = vcmp.ge.f32.partialorder %v2480, 0.0
    %v2485 = vmul.f32 %v2477, 0.05
    %v2486 = vmul.f32 %v2480, 0.05
    %v2487 = vsel %vm2483, %v2477, %v2485
    %v2488 = vsel %vm2484, %v2480, %v2486
    %v2489 = vld [vmem:[#allocation4 + $0x120] sm:$0xf]
    %v2490 = vld [vmem:[#allocation4 + $0x124] sm:$0xf]
    %v2491 = vld [vmem:[#allocation4 + $0x128] sm:$0xf]
    %v2492 = vld [vmem:[#allocation4 + $0x12c] sm:$0xf]
    %v2493 = vld [vmem:[#allocation4 + $0x130] sm:$0xf]
    %v2494 = vld [vmem:[#allocation4 + $0x134] sm:$0xf]
    %v2495 = vld [vmem:[#allocation4 + $0x138] sm:$0xf]
    %v2496 = vld [vmem:[#allocation4 + $0x13c] sm:$0xf]
    %v2497 = vld [vmem:[#allocation4 + $0x140] sm:$0xf]
    %v2498 = vld [vmem:[#allocation4 + $0x144] sm:$0xf]
    %v2499 = vld [vmem:[#allocation4 + $0x148] sm:$0xf]
    %v2500 = vld [vmem:[#allocation4 + $0x14c] sm:$0xf]
    %v2501 = vld [vmem:[#allocation4 + $0x150] sm:$0xf]
    %v2502 = vld [vmem:[#allocation4 + $0x154] sm:$0xf]
    %v2503 = vld [vmem:[#allocation4 + $0x158] sm:$0xf]
    %v2504 = vld [vmem:[#allocation4 + $0x15c] sm:$0xf]
    %v2505 = vld [vmem:[#allocation4 + $0x160] sm:$0xf]
    %v2506 = vld [vmem:[#allocation4 + $0x164] sm:$0xf]
    %v2507 = vld [vmem:[#allocation4 + $0x168] sm:$0xf]
    %v2508 = vld [vmem:[#allocation4 + $0x16c] sm:$0xf]
    %v2509 = vld [vmem:[#allocation4 + $0x170] sm:$0xf]
    %v2510 = vld [vmem:[#allocation4 + $0x174] sm:$0xf]
    %v2511 = vld [vmem:[#allocation4 + $0x178] sm:$0xf]
    %v2512 = vld [vmem:[#allocation4 + $0x17c] sm:$0xf]
    %v2513 = vld [vmem:[#allocation4 + $0x180] sm:$0xf]
    %v2514 = vld [vmem:[#allocation4 + $0x184] sm:$0xf]
    %v2515 = vld [vmem:[#allocation4 + $0x188] sm:$0xf]
    %v2516 = vld [vmem:[#allocation4 + $0x18c] sm:$0xf]
    %v2517 = vld [vmem:[#allocation4 + $0x190] sm:$0xf]
    %v2518 = vld [vmem:[#allocation4 + $0x194] sm:$0xf]
    %v2519 = vld [vmem:[#allocation4 + $0x198] sm:$0xf]
    %v2520 = vld [vmem:[#allocation4 + $0x19c] sm:$0xf]
    %v2521 = vld [vmem:[#allocation4 + $0x1a0] sm:$0xf]
    %v2522 = vld [vmem:[#allocation4 + $0x1a4] sm:$0xf]
    %v2523 = vld [vmem:[#allocation4 + $0x1a8] sm:$0xf]
    %v2524 = vld [vmem:[#allocation4 + $0x1ac] sm:$0xf]
    %v2525 = vld [vmem:[#allocation4 + $0x1b0] sm:$0xf]
    %v2526 = vld [vmem:[#allocation4 + $0x1b4] sm:$0xf]
    %v2527 = vld [vmem:[#allocation4 + $0x1b8] sm:$0xf]
    %v2528 = vld [vmem:[#allocation4 + $0x1bc] sm:$0xf]
    %v2529 = vld [vmem:[#allocation4 + $0x1c0] sm:$0xf]
    %v2530 = vld [vmem:[#allocation4 + $0x1c4] sm:$0xf]
    %v2531 = vld [vmem:[#allocation4 + $0x1c8] sm:$0xf]
    %v2532 = vld [vmem:[#allocation4 + $0x1cc] sm:$0xf]
    %v2533 = vld [vmem:[#allocation4 + $0x1d0] sm:$0xf]
    %v2534 = vld [vmem:[#allocation4 + $0x1d4] sm:$0xf]
    %v2535 = vld [vmem:[#allocation4 + $0x1d8] sm:$0xf]
    %v2536 = vld [vmem:[#allocation4 + $0x1dc] sm:$0xf]
    %v2537 = vld [vmem:[%s5 + $0x11] ss:$0 sm:$0xff]
    %v2538 = vrot.slane %v2487, 7
    %v2539 = vrot.slane %v2488, 7
    %v2540 = vsel %vm914, %v2538, %v2539
    %v2541 = vsel %vm914, %v2539, %v2538
    %v2542 = vsel %vm2127, %v2541, 0.0
    %v2543 = vsel %vm2128, %v2540, 0.0
    %v2544 = vrot.slane %v2487, 1
    %v2545 = vrot.slane %v2488, 1
    %v2546 = vsel %vm935, %v2544, %v2545
    %v2547 = vsel %vm935, %v2545, %v2544
    %v2548 = vsel %vm2137, %v2546, 0.0
    %v2549 = vsel %vm2138, %v2547, 0.0
    %v2550 = vpack.c.bf16 %v2543, %v2542
    %v2551 = vpack.c.bf16 %v2488, %v2487
    %v2552 = vpack.c.bf16 %v2549, %v2548
    %v2601 = vunpack.c.l.b16 %v2489
    %v2602 = vunpack.c.l.b16 %v2490
    %v2603 = vunpack.c.l.b16 %v2491
    %v2604 = vunpack.c.l.b16 %v2492
    %v2605 = vunpack.c.l.b16 %v2493
    %v2606 = vunpack.c.l.b16 %v2494
    %v2607 = vunpack.c.l.b16 %v2495
    %v2608 = vunpack.c.l.b16 %v2496
    %v2609 = vunpack.c.l.b16 %v2497
    %v2610 = vunpack.c.l.b16 %v2498
    %v2611 = vunpack.c.l.b16 %v2499
    %v2612 = vunpack.c.l.b16 %v2500
    %v2613 = vunpack.c.l.b16 %v2501
    %v2614 = vunpack.c.l.b16 %v2502
    %v2615 = vunpack.c.l.b16 %v2503
    %v2616 = vunpack.c.l.b16 %v2504
    %v2617 = vunpack.c.l.b16 %v2505
    %v2618 = vunpack.c.l.b16 %v2506
    %v2619 = vunpack.c.l.b16 %v2507
    %v2620 = vunpack.c.l.b16 %v2508
    %v2621 = vunpack.c.l.b16 %v2509
    %v2622 = vunpack.c.l.b16 %v2510
    %v2623 = vunpack.c.l.b16 %v2511
    %v2624 = vunpack.c.l.b16 %v2512
    %v2625 = vunpack.c.l.b16 %v2513
    %v2626 = vunpack.c.l.b16 %v2514
    %v2627 = vunpack.c.l.b16 %v2515
    %v2628 = vunpack.c.l.b16 %v2516
    %v2629 = vunpack.c.l.b16 %v2517
    %v2630 = vunpack.c.l.b16 %v2518
    %v2631 = vunpack.c.l.b16 %v2519
    %v2632 = vunpack.c.l.b16 %v2520
    %v2633 = vunpack.c.l.b16 %v2521
    %v2634 = vunpack.c.l.b16 %v2522
    %v2635 = vunpack.c.l.b16 %v2523
    %v2636 = vunpack.c.l.b16 %v2524
    %v2637 = vunpack.c.l.b16 %v2525
    %v2638 = vunpack.c.l.b16 %v2526
    %v2639 = vunpack.c.l.b16 %v2527
    %v2640 = vunpack.c.l.b16 %v2528
    %v2641 = vunpack.c.l.b16 %v2529
    %v2642 = vunpack.c.l.b16 %v2530
    %v2643 = vunpack.c.l.b16 %v2531
    %v2644 = vunpack.c.l.b16 %v2532
    %v2645 = vunpack.c.l.b16 %v2533
    %v2646 = vunpack.c.l.b16 %v2534
    %v2647 = vunpack.c.l.b16 %v2535
    %v2648 = vunpack.c.l.b16 %v2536
    %v2649 = vpack.c.b16 %v2602, %v2601
    %v2650 = vpack.c.b16 %v2604, %v2603
    %v2651 = vpack.c.b16 %v2606, %v2605
    %v2652 = vpack.c.b16 %v2608, %v2607
    %v2653 = vpack.c.b16 %v2610, %v2609
    %v2654 = vpack.c.b16 %v2612, %v2611
    %v2655 = vpack.c.b16 %v2614, %v2613
    %v2656 = vpack.c.b16 %v2616, %v2615
    %v2657 = vpack.c.b16 %v2618, %v2617
    %v2658 = vpack.c.b16 %v2620, %v2619
    %v2659 = vpack.c.b16 %v2622, %v2621
    %v2660 = vpack.c.b16 %v2624, %v2623
    %v2661 = vpack.c.b16 %v2626, %v2625
    %v2662 = vpack.c.b16 %v2628, %v2627
    %v2663 = vpack.c.b16 %v2630, %v2629
    %v2664 = vpack.c.b16 %v2632, %v2631
    %v2665 = vpack.c.b16 %v2634, %v2633
    %v2666 = vpack.c.b16 %v2636, %v2635
    %v2667 = vpack.c.b16 %v2638, %v2637
    %v2668 = vpack.c.b16 %v2640, %v2639
    %v2669 = vpack.c.b16 %v2642, %v2641
    %v2670 = vpack.c.b16 %v2644, %v2643
    %v2671 = vpack.c.b16 %v2646, %v2645
    %v2672 = vpack.c.b16 %v2648, %v2647
    %2697 = vmatprep.subr.bf16.mxu0 0
    %2698 = vmatpush1.bf16.msra.mxu0 %v2649
    %2699 = vmatprep.subr.bf16.mxu0 0
    %2700 = vmatpush1.bf16.msra.mxu0 %v2650
    %2701 = vmatprep.subr.bf16.mxu0 0
    %2702 = vmatpush1.bf16.msra.mxu0 %v2651
    %2703 = vmatprep.subr.bf16.mxu0 0
    %2704 = vmatpush1.bf16.msra.mxu0 %v2652
    %2705 = vmatprep.subr.bf16.mxu0 0
    %2706 = vmatpush1.bf16.msra.mxu0 %v2653
    %2707 = vmatprep.subr.bf16.mxu0 0
    %2708 = vmatpush1.bf16.msra.mxu0 %v2654
    %2709 = vmatprep.subr.bf16.mxu0 0
    %2710 = vmatpush1.bf16.msra.mxu0 %v2655
    %2711 = vmatprep.subr.bf16.mxu0 0
    %2712 = vmatpush1.bf16.msra.mxu0 %v2656
    %2713 = vmatprep.subr.bf16.mxu0 0
    %2714 = vmatpush1.bf16.msra.mxu0 %v2657
    %2715 = vmatprep.subr.bf16.mxu0 0
    %2716 = vmatpush1.bf16.msra.mxu0 %v2658
    %2717 = vmatprep.subr.bf16.mxu0 0
    %2718 = vmatpush1.bf16.msra.mxu0 %v2659
    %2719 = vmatprep.subr.bf16.mxu0 0
    %2720 = vmatpush1.bf16.msra.mxu0 %v2660
    %2721 = vmatprep.subr.bf16.mxu0 0
    %2722 = vmatpush1.bf16.msra.mxu0 %v2661
    %2723 = vmatprep.subr.bf16.mxu0 0
    %2724 = vmatpush1.bf16.msra.mxu0 %v2662
    %2725 = vmatprep.subr.bf16.mxu0 0
    %2726 = vmatpush1.bf16.msra.mxu0 %v2663
    %2727 = vmatprep.subr.bf16.mxu0 0
    %2728 = vmatpush1.bf16.msra.mxu0 %v2664
    %2729 = vmatprep.mubr.bf16.mxu0 %v2551
    %2730 = vmatmul.mubr.bf16.gmra.mrb[0].mxu0 %v2550
    %v2731 = vpop.f32.mrb[0].mxu0
    %v2732 = vadd.f32 %v2537, %v2731
    %v2733 = vpop.f32.mrb[0].mxu0
    %v2734 = vpop.f32.mrb[0].mxu0
    %v2735 = vadd.f32 %v2537, %v2734
    %v2736 = vpop.f32.mrb[0].mxu0
    %2737 = vdwg.mxu0
    %2738 = vmatprep.subr.bf16.mxu0 0
    %2739 = vmatpush1.bf16.msra.mxu0 %v2665
    %2740 = vmatprep.subr.bf16.mxu0 0
    %2741 = vmatpush1.bf16.msra.mxu0 %v2666
    %2742 = vmatprep.subr.bf16.mxu0 0
    %2743 = vmatpush1.bf16.msra.mxu0 %v2667
    %2744 = vmatprep.subr.bf16.mxu0 0
    %2745 = vmatpush1.bf16.msra.mxu0 %v2668
    %2746 = vmatprep.subr.bf16.mxu0 0
    %2747 = vmatpush1.bf16.msra.mxu0 %v2669
    %2748 = vmatprep.subr.bf16.mxu0 0
    %2749 = vmatpush1.bf16.msra.mxu0 %v2670
    %2750 = vmatprep.subr.bf16.mxu0 0
    %2751 = vmatpush1.bf16.msra.mxu0 %v2671
    %2752 = vmatprep.subr.bf16.mxu0 0
    %2753 = vmatpush1.bf16.msra.mxu0 %v2672
    %2754 = vmatprep.subr.bf16.mxu0 0
    %2755 = vmatpush1.bf16.msra.mxu0 0
    %2756 = vmatprep.subr.bf16.mxu0 0
    %2757 = vmatpush1.bf16.msra.mxu0 0
    %2758 = vmatprep.subr.bf16.mxu0 0
    %2759 = vmatpush1.bf16.msra.mxu0 0
    %2760 = vmatprep.subr.bf16.mxu0 0
    %2761 = vmatpush1.bf16.msra.mxu0 0
    %2762 = vmatprep.subr.bf16.mxu0 0
    %2763 = vmatpush1.bf16.msra.mxu0 0
    %2764 = vmatprep.subr.bf16.mxu0 0
    %2765 = vmatpush1.bf16.msra.mxu0 0
    %2766 = vmatprep.subr.bf16.mxu0 0
    %2767 = vmatpush1.bf16.msra.mxu0 0
    %2768 = vmatprep.subr.bf16.mxu0 0
    %2769 = vmatpush1.bf16.msra.mxu0 0
    %2770 = vmatprep.mubr.bf16.mxu0 0
    %2771 = vmatmul.mubr.bf16.gmra.mrb[0].mxu0 %v2552
    %v2772 = vpop.f32.mrb[0].mxu0
    %v2773 = vadd.f32 %v2732, %v2772
    %v2774 = vpop.f32.mrb[0].mxu0
    %v2775 = vpop.f32.mrb[0].mxu0
    %v2776 = vadd.f32 %v2735, %v2775
    %v2777 = vpop.f32.mrb[0].mxu0
    %2778 = vdwg.mxu0
    %vm2779 = vcmp.ge.f32.partialorder %v2773, 0.0
    %vm2780 = vcmp.ge.f32.partialorder %v2776, 0.0
    %v2781 = vmul.f32 %v2773, 0.05
    %v2782 = vmul.f32 %v2776, 0.05
    %v2783 = vsel %vm2779, %v2773, %v2781
    %v2784 = vsel %vm2780, %v2776, %v2782
    %v2785 = vadd.f32 %v2783, %v2066
    %v2786 = vadd.f32 %v2784, %v2069
    %v2787 = vld [vmem:[#allocation4 + $0x1e0] sm:$0xf]
    %v2788 = vld [vmem:[#allocation4 + $0x1e4] sm:$0xf]
    %v2789 = vld [vmem:[#allocation4 + $0x1e8] sm:$0xf]
    %v2790 = vld [vmem:[#allocation4 + $0x1ec] sm:$0xf]
    %v2791 = vld [vmem:[#allocation4 + $0x1f0] sm:$0xf]
    %v2792 = vld [vmem:[#allocation4 + $0x1f4] sm:$0xf]
    %v2793 = vld [vmem:[#allocation4 + $0x1f8] sm:$0xf]
    %v2794 = vld [vmem:[#allocation4 + $0x1fc] sm:$0xf]
    %v2795 = vld [vmem:[#allocation4 + $0x200] sm:$0xf]
    %v2796 = vld [vmem:[#allocation4 + $0x204] sm:$0xf]
    %v2797 = vld [vmem:[#allocation4 + $0x208] sm:$0xf]
    %v2798 = vld [vmem:[#allocation4 + $0x20c] sm:$0xf]
    %v2799 = vld [vmem:[#allocation4 + $0x210] sm:$0xf]
    %v2800 = vld [vmem:[#allocation4 + $0x214] sm:$0xf]
    %v2801 = vld [vmem:[#allocation4 + $0x218] sm:$0xf]
    %v2802 = vld [vmem:[#allocation4 + $0x21c] sm:$0xf]
    %v2803 = vld [vmem:[#allocation4 + $0x220] sm:$0xf]
    %v2804 = vld [vmem:[#allocation4 + $0x224] sm:$0xf]
    %v2805 = vld [vmem:[#allocation4 + $0x228] sm:$0xf]
    %v2806 = vld [vmem:[#allocation4 + $0x22c] sm:$0xf]
    %v2807 = vld [vmem:[#allocation4 + $0x230] sm:$0xf]
    %v2808 = vld [vmem:[#allocation4 + $0x234] sm:$0xf]
    %v2809 = vld [vmem:[#allocation4 + $0x238] sm:$0xf]
    %v2810 = vld [vmem:[#allocation4 + $0x23c] sm:$0xf]
    %v2811 = vld [vmem:[#allocation4 + $0x240] sm:$0xf]
    %v2812 = vld [vmem:[#allocation4 + $0x244] sm:$0xf]
    %v2813 = vld [vmem:[#allocation4 + $0x248] sm:$0xf]
    %v2814 = vld [vmem:[#allocation4 + $0x24c] sm:$0xf]
    %v2815 = vld [vmem:[#allocation4 + $0x250] sm:$0xf]
    %v2816 = vld [vmem:[#allocation4 + $0x254] sm:$0xf]
    %v2817 = vld [vmem:[#allocation4 + $0x258] sm:$0xf]
    %v2818 = vld [vmem:[#allocation4 + $0x25c] sm:$0xf]
    %v2819 = vld [vmem:[#allocation4 + $0x260] sm:$0xf]
    %v2820 = vld [vmem:[#allocation4 + $0x264] sm:$0xf]
    %v2821 = vld [vmem:[#allocation4 + $0x268] sm:$0xf]
    %v2822 = vld [vmem:[#allocation4 + $0x26c] sm:$0xf]
    %v2823 = vld [vmem:[#allocation4 + $0x270] sm:$0xf]
    %v2824 = vld [vmem:[#allocation4 + $0x274] sm:$0xf]
    %v2825 = vld [vmem:[#allocation4 + $0x278] sm:$0xf]
    %v2826 = vld [vmem:[#allocation4 + $0x27c] sm:$0xf]
    %v2827 = vld [vmem:[#allocation4 + $0x280] sm:$0xf]
    %v2828 = vld [vmem:[#allocation4 + $0x284] sm:$0xf]
    %v2829 = vld [vmem:[#allocation4 + $0x288] sm:$0xf]
    %v2830 = vld [vmem:[#allocation4 + $0x28c] sm:$0xf]
    %v2831 = vld [vmem:[#allocation4 + $0x290] sm:$0xf]
    %v2832 = vld [vmem:[#allocation4 + $0x294] sm:$0xf]
    %v2833 = vld [vmem:[#allocation4 + $0x298] sm:$0xf]
    %v2834 = vld [vmem:[#allocation4 + $0x29c] sm:$0xf]
    %v2835 = vld [vmem:[%s5 + $0x12] ss:$0 sm:$0xff]
    %v2836 = vrot.slane %v2785, 7
    %v2837 = vrot.slane %v2786, 7
    %v2838 = vsel %vm914, %v2836, %v2837
    %v2839 = vsel %vm914, %v2837, %v2836
    %v2840 = vsel %vm2127, %v2839, 0.0
    %v2841 = vsel %vm2128, %v2838, 0.0
    %v2842 = vrot.slane %v2785, 1
    %v2843 = vrot.slane %v2786, 1
    %v2844 = vsel %vm935, %v2842, %v2843
    %v2845 = vsel %vm935, %v2843, %v2842
    %v2846 = vsel %vm2137, %v2844, 0.0
    %v2847 = vsel %vm2138, %v2845, 0.0
    %v2848 = vpack.c.bf16 %v2841, %v2840
    %v2849 = vpack.c.bf16 %v2786, %v2785
    %v2850 = vpack.c.bf16 %v2847, %v2846
    %v2899 = vunpack.c.l.b16 %v2787
    %v2900 = vunpack.c.l.b16 %v2788
    %v2901 = vunpack.c.l.b16 %v2789
    %v2902 = vunpack.c.l.b16 %v2790
    %v2903 = vunpack.c.l.b16 %v2791
    %v2904 = vunpack.c.l.b16 %v2792
    %v2905 = vunpack.c.l.b16 %v2793
    %v2906 = vunpack.c.l.b16 %v2794
    %v2907 = vunpack.c.l.b16 %v2795
    %v2908 = vunpack.c.l.b16 %v2796
    %v2909 = vunpack.c.l.b16 %v2797
    %v2910 = vunpack.c.l.b16 %v2798
    %v2911 = vunpack.c.l.b16 %v2799
    %v2912 = vunpack.c.l.b16 %v2800
    %v2913 = vunpack.c.l.b16 %v2801
    %v2914 = vunpack.c.l.b16 %v2802
    %v2915 = vunpack.c.l.b16 %v2803
    %v2916 = vunpack.c.l.b16 %v2804
    %v2917 = vunpack.c.l.b16 %v2805
    %v2918 = vunpack.c.l.b16 %v2806
    %v2919 = vunpack.c.l.b16 %v2807
    %v2920 = vunpack.c.l.b16 %v2808
    %v2921 = vunpack.c.l.b16 %v2809
    %v2922 = vunpack.c.l.b16 %v2810
    %v2923 = vunpack.c.l.b16 %v2811
    %v2924 = vunpack.c.l.b16 %v2812
    %v2925 = vunpack.c.l.b16 %v2813
    %v2926 = vunpack.c.l.b16 %v2814
    %v2927 = vunpack.c.l.b16 %v2815
    %v2928 = vunpack.c.l.b16 %v2816
    %v2929 = vunpack.c.l.b16 %v2817
    %v2930 = vunpack.c.l.b16 %v2818
    %v2931 = vunpack.c.l.b16 %v2819
    %v2932 = vunpack.c.l.b16 %v2820
    %v2933 = vunpack.c.l.b16 %v2821
    %v2934 = vunpack.c.l.b16 %v2822
    %v2935 = vunpack.c.l.b16 %v2823
    %v2936 = vunpack.c.l.b16 %v2824
    %v2937 = vunpack.c.l.b16 %v2825
    %v2938 = vunpack.c.l.b16 %v2826
    %v2939 = vunpack.c.l.b16 %v2827
    %v2940 = vunpack.c.l.b16 %v2828
    %v2941 = vunpack.c.l.b16 %v2829
    %v2942 = vunpack.c.l.b16 %v2830
    %v2943 = vunpack.c.l.b16 %v2831
    %v2944 = vunpack.c.l.b16 %v2832
    %v2945 = vunpack.c.l.b16 %v2833
    %v2946 = vunpack.c.l.b16 %v2834
    %v2947 = vpack.c.b16 %v2900, %v2899
    %v2948 = vpack.c.b16 %v2902, %v2901
    %v2949 = vpack.c.b16 %v2904, %v2903
    %v2950 = vpack.c.b16 %v2906, %v2905
    %v2951 = vpack.c.b16 %v2908, %v2907
    %v2952 = vpack.c.b16 %v2910, %v2909
    %v2953 = vpack.c.b16 %v2912, %v2911
    %v2954 = vpack.c.b16 %v2914, %v2913
    %v2955 = vpack.c.b16 %v2916, %v2915
    %v2956 = vpack.c.b16 %v2918, %v2917
    %v2957 = vpack.c.b16 %v2920, %v2919
    %v2958 = vpack.c.b16 %v2922, %v2921
    %v2959 = vpack.c.b16 %v2924, %v2923
    %v2960 = vpack.c.b16 %v2926, %v2925
    %v2961 = vpack.c.b16 %v2928, %v2927
    %v2962 = vpack.c.b16 %v2930, %v2929
    %v2963 = vpack.c.b16 %v2932, %v2931
    %v2964 = vpack.c.b16 %v2934, %v2933
    %v2965 = vpack.c.b16 %v2936, %v2935
    %v2966 = vpack.c.b16 %v2938, %v2937
    %v2967 = vpack.c.b16 %v2940, %v2939
    %v2968 = vpack.c.b16 %v2942, %v2941
    %v2969 = vpack.c.b16 %v2944, %v2943
    %v2970 = vpack.c.b16 %v2946, %v2945
    %2995 = vmatprep.subr.bf16.mxu0 0
    %2996 = vmatpush1.bf16.msra.mxu0 %v2947
    %2997 = vmatprep.subr.bf16.mxu0 0
    %2998 = vmatpush1.bf16.msra.mxu0 %v2948
    %2999 = vmatprep.subr.bf16.mxu0 0
    %3000 = vmatpush1.bf16.msra.mxu0 %v2949
    %3001 = vmatprep.subr.bf16.mxu0 0
    %3002 = vmatpush1.bf16.msra.mxu0 %v2950
    %3003 = vmatprep.subr.bf16.mxu0 0
    %3004 = vmatpush1.bf16.msra.mxu0 %v2951
    %3005 = vmatprep.subr.bf16.mxu0 0
    %3006 = vmatpush1.bf16.msra.mxu0 %v2952
    %3007 = vmatprep.subr.bf16.mxu0 0
    %3008 = vmatpush1.bf16.msra.mxu0 %v2953
    %3009 = vmatprep.subr.bf16.mxu0 0
    %3010 = vmatpush1.bf16.msra.mxu0 %v2954
    %3011 = vmatprep.subr.bf16.mxu0 0
    %3012 = vmatpush1.bf16.msra.mxu0 %v2955
    %3013 = vmatprep.subr.bf16.mxu0 0
    %3014 = vmatpush1.bf16.msra.mxu0 %v2956
    %3015 = vmatprep.subr.bf16.mxu0 0
    %3016 = vmatpush1.bf16.msra.mxu0 %v2957
    %3017 = vmatprep.subr.bf16.mxu0 0
    %3018 = vmatpush1.bf16.msra.mxu0 %v2958
    %3019 = vmatprep.subr.bf16.mxu0 0
    %3020 = vmatpush1.bf16.msra.mxu0 %v2959
    %3021 = vmatprep.subr.bf16.mxu0 0
    %3022 = vmatpush1.bf16.msra.mxu0 %v2960
    %3023 = vmatprep.subr.bf16.mxu0 0
    %3024 = vmatpush1.bf16.msra.mxu0 %v2961
    %3025 = vmatprep.subr.bf16.mxu0 0
    %3026 = vmatpush1.bf16.msra.mxu0 %v2962
    %3027 = vmatprep.mubr.bf16.mxu0 %v2849
    %3028 = vmatmul.mubr.bf16.gmra.mrb[0].mxu0 %v2848
    %v3029 = vpop.f32.mrb[0].mxu0
    %v3030 = vadd.f32 %v2835, %v3029
    %v3031 = vpop.f32.mrb[0].mxu0
    %v3032 = vpop.f32.mrb[0].mxu0
    %v3033 = vadd.f32 %v2835, %v3032
    %v3034 = vpop.f32.mrb[0].mxu0
    %3035 = vdwg.mxu0
    %3036 = vmatprep.subr.bf16.mxu0 0
    %3037 = vmatpush1.bf16.msra.mxu0 %v2963
    %3038 = vmatprep.subr.bf16.mxu0 0
    %3039 = vmatpush1.bf16.msra.mxu0 %v2964
    %3040 = vmatprep.subr.bf16.mxu0 0
    %3041 = vmatpush1.bf16.msra.mxu0 %v2965
    %3042 = vmatprep.subr.bf16.mxu0 0
    %3043 = vmatpush1.bf16.msra.mxu0 %v2966
    %3044 = vmatprep.subr.bf16.mxu0 0
    %3045 = vmatpush1.bf16.msra.mxu0 %v2967
    %3046 = vmatprep.subr.bf16.mxu0 0
    %3047 = vmatpush1.bf16.msra.mxu0 %v2968
    %3048 = vmatprep.subr.bf16.mxu0 0
    %3049 = vmatpush1.bf16.msra.mxu0 %v2969
    %3050 = vmatprep.subr.bf16.mxu0 0
    %3051 = vmatpush1.bf16.msra.mxu0 %v2970
    %3052 = vmatprep.subr.bf16.mxu0 0
    %3053 = vmatpush1.bf16.msra.mxu0 0
    %3054 = vmatprep.subr.bf16.mxu0 0
    %3055 = vmatpush1.bf16.msra.mxu0 0
    %3056 = vmatprep.subr.bf16.mxu0 0
    %3057 = vmatpush1.bf16.msra.mxu0 0
    %3058 = vmatprep.subr.bf16.mxu0 0
    %3059 = vmatpush1.bf16.msra.mxu0 0
    %3060 = vmatprep.subr.bf16.mxu0 0
    %3061 = vmatpush1.bf16.msra.mxu0 0
    %3062 = vmatprep.subr.bf16.mxu0 0
    %3063 = vmatpush1.bf16.msra.mxu0 0
    %3064 = vmatprep.subr.bf16.mxu0 0
    %3065 = vmatpush1.bf16.msra.mxu0 0
    %3066 = vmatprep.subr.bf16.mxu0 0
    %3067 = vmatpush1.bf16.msra.mxu0 0
    %3068 = vmatprep.mubr.bf16.mxu0 0
    %3069 = vmatmul.mubr.bf16.gmra.mrb[0].mxu0 %v2850
    %v3070 = vpop.f32.mrb[0].mxu0
    %v3071 = vadd.f32 %v3030, %v3070
    %v3072 = vpop.f32.mrb[0].mxu0
    %v3073 = vpop.f32.mrb[0].mxu0
    %v3074 = vadd.f32 %v3033, %v3073
    %v3075 = vpop.f32.mrb[0].mxu0
    %3076 = vdwg.mxu0
    %vm3077 = vcmp.ge.f32.partialorder %v3071, 0.0
    %vm3078 = vcmp.ge.f32.partialorder %v3074, 0.0
    %v3079 = vmul.f32 %v3071, 0.05
    %v3080 = vmul.f32 %v3074, 0.05
    %v3081 = vsel %vm3077, %v3071, %v3079
    %v3082 = vsel %vm3078, %v3074, %v3080
    %v3083 = vld [vmem:[#allocation4 + $0x2a0] sm:$0xf]
    %v3084 = vld [vmem:[#allocation4 + $0x2a4] sm:$0xf]
    %v3085 = vld [vmem:[#allocation4 + $0x2a8] sm:$0xf]
    %v3086 = vld [vmem:[#allocation4 + $0x2ac] sm:$0xf]
    %v3087 = vld [vmem:[#allocation4 + $0x2b0] sm:$0xf]
    %v3088 = vld [vmem:[#allocation4 + $0x2b4] sm:$0xf]
    %v3089 = vld [vmem:[#allocation4 + $0x2b8] sm:$0xf]
    %v3090 = vld [vmem:[#allocation4 + $0x2bc] sm:$0xf]
    %v3091 = vld [vmem:[#allocation4 + $0x2c0] sm:$0xf]
    %v3092 = vld [vmem:[#allocation4 + $0x2c4] sm:$0xf]
    %v3093 = vld [vmem:[#allocation4 + $0x2c8] sm:$0xf]
    %v3094 = vld [vmem:[#allocation4 + $0x2cc] sm:$0xf]
    %v3095 = vld [vmem:[#allocation4 + $0x2d0] sm:$0xf]
    %v3096 = vld [vmem:[#allocation4 + $0x2d4] sm:$0xf]
    %v3097 = vld [vmem:[#allocation4 + $0x2d8] sm:$0xf]
    %v3098 = vld [vmem:[#allocation4 + $0x2dc] sm:$0xf]
    %v3099 = vpack.c.bf16 %v3082, %v3081
    %v3100 = vld [vmem:[%s5 + $0x13] ss:$0 sm:$0xff]
    %v3117 = vunpack.c.l.b16 %v3083
    %v3118 = vunpack.c.l.b16 %v3084
    %v3119 = vunpack.c.l.b16 %v3085
    %v3120 = vunpack.c.l.b16 %v3086
    %v3121 = vunpack.c.l.b16 %v3087
    %v3122 = vunpack.c.l.b16 %v3088
    %v3123 = vunpack.c.l.b16 %v3089
    %v3124 = vunpack.c.l.b16 %v3090
    %v3125 = vunpack.c.l.b16 %v3091
    %v3126 = vunpack.c.l.b16 %v3092
    %v3127 = vunpack.c.l.b16 %v3093
    %v3128 = vunpack.c.l.b16 %v3094
    %v3129 = vunpack.c.l.b16 %v3095
    %v3130 = vunpack.c.l.b16 %v3096
    %v3131 = vunpack.c.l.b16 %v3097
    %v3132 = vunpack.c.l.b16 %v3098
    %v3133 = vpack.c.b16 %v3118, %v3117
    %v3134 = vpack.c.b16 %v3120, %v3119
    %v3135 = vpack.c.b16 %v3122, %v3121
    %v3136 = vpack.c.b16 %v3124, %v3123
    %v3137 = vpack.c.b16 %v3126, %v3125
    %v3138 = vpack.c.b16 %v3128, %v3127
    %v3139 = vpack.c.b16 %v3130, %v3129
    %v3140 = vpack.c.b16 %v3132, %v3131
    %3149 = vmatprep.subr.bf16.mxu0 0
    %3150 = vmatpush1.bf16.msra.mxu0 %v3133
    %3151 = vmatprep.subr.bf16.mxu0 0
    %3152 = vmatpush1.bf16.msra.mxu0 %v3134
    %3153 = vmatprep.subr.bf16.mxu0 0
    %3154 = vmatpush1.bf16.msra.mxu0 %v3135
    %3155 = vmatprep.subr.bf16.mxu0 0
    %3156 = vmatpush1.bf16.msra.mxu0 %v3136
    %3157 = vmatprep.subr.bf16.mxu0 0
    %3158 = vmatpush1.bf16.msra.mxu0 %v3137
    %3159 = vmatprep.subr.bf16.mxu0 0
    %3160 = vmatpush1.bf16.msra.mxu0 %v3138
    %3161 = vmatprep.subr.bf16.mxu0 0
    %3162 = vmatpush1.bf16.msra.mxu0 %v3139
    %3163 = vmatprep.subr.bf16.mxu0 0
    %3164 = vmatpush1.bf16.msra.mxu0 %v3140
    %3165 = vmatprep.subr.bf16.mxu0 0
    %3166 = vmatpush1.bf16.msra.mxu0 0
    %3167 = vmatprep.subr.bf16.mxu0 0
    %3168 = vmatpush1.bf16.msra.mxu0 0
    %3169 = vmatprep.subr.bf16.mxu0 0
    %3170 = vmatpush1.bf16.msra.mxu0 0
    %3171 = vmatprep.subr.bf16.mxu0 0
    %3172 = vmatpush1.bf16.msra.mxu0 0
    %3173 = vmatprep.subr.bf16.mxu0 0
    %3174 = vmatpush1.bf16.msra.mxu0 0
    %3175 = vmatprep.subr.bf16.mxu0 0
    %3176 = vmatpush1.bf16.msra.mxu0 0
    %3177 = vmatprep.subr.bf16.mxu0 0
    %3178 = vmatpush1.bf16.msra.mxu0 0
    %3179 = vmatprep.subr.bf16.mxu0 0
    %3180 = vmatpush1.bf16.msra.mxu0 0
    %3181 = vmatprep.mubr.bf16.mxu0 0
    %3182 = vmatmul.mubr.bf16.gmra.mrb[0].mxu0 %v3099
    %v3183 = vpop.f32.mrb[0].mxu0
    %v3184 = vadd.f32 %v3100, %v3183
    %v3185 = vpop.f32.mrb[0].mxu0
    %v3186 = vpop.f32.mrb[0].mxu0
    %v3187 = vadd.f32 %v3100, %v3186
    %v3188 = vpop.f32.mrb[0].mxu0
    %3189 = vdwg.mxu0
    %vm3190 = vcmp.ge.f32.partialorder %v3184, 0.0
    %vm3191 = vcmp.ge.f32.partialorder %v3187, 0.0
    %v3192 = vmul.f32 %v3184, 0.05
    %v3193 = vmul.f32 %v3187, 0.05
    %v3194 = vsel %vm3190, %v3184, %v3192
    %v3195 = vsel %vm3191, %v3187, %v3193
    %v3196 = vld [vmem:[#allocation4 + $0x2e0] sm:$0xf]
    %v3197 = vld [vmem:[#allocation4 + $0x2e4] sm:$0xf]
    %v3198 = vld [vmem:[#allocation4 + $0x2e8] sm:$0xf]
    %v3199 = vld [vmem:[#allocation4 + $0x2ec] sm:$0xf]
    %v3200 = vld [vmem:[#allocation4 + $0x2f0] sm:$0xf]
    %v3201 = vld [vmem:[#allocation4 + $0x2f4] sm:$0xf]
    %v3202 = vld [vmem:[#allocation4 + $0x2f8] sm:$0xf]
    %v3203 = vld [vmem:[#allocation4 + $0x2fc] sm:$0xf]
    %v3204 = vld [vmem:[#allocation4 + $0x300] sm:$0xf]
    %v3205 = vld [vmem:[#allocation4 + $0x304] sm:$0xf]
    %v3206 = vld [vmem:[#allocation4 + $0x308] sm:$0xf]
    %v3207 = vld [vmem:[#allocation4 + $0x30c] sm:$0xf]
    %v3208 = vld [vmem:[#allocation4 + $0x310] sm:$0xf]
    %v3209 = vld [vmem:[#allocation4 + $0x314] sm:$0xf]
    %v3210 = vld [vmem:[#allocation4 + $0x318] sm:$0xf]
    %v3211 = vld [vmem:[#allocation4 + $0x31c] sm:$0xf]
    %v3212 = vld [vmem:[#allocation4 + $0x320] sm:$0xf]
    %v3213 = vld [vmem:[#allocation4 + $0x324] sm:$0xf]
    %v3214 = vld [vmem:[#allocation4 + $0x328] sm:$0xf]
    %v3215 = vld [vmem:[#allocation4 + $0x32c] sm:$0xf]
    %v3216 = vld [vmem:[#allocation4 + $0x330] sm:$0xf]
    %v3217 = vld [vmem:[#allocation4 + $0x334] sm:$0xf]
    %v3218 = vld [vmem:[#allocation4 + $0x338] sm:$0xf]
    %v3219 = vld [vmem:[#allocation4 + $0x33c] sm:$0xf]
    %v3220 = vld [vmem:[#allocation4 + $0x340] sm:$0xf]
    %v3221 = vld [vmem:[#allocation4 + $0x344] sm:$0xf]
    %v3222 = vld [vmem:[#allocation4 + $0x348] sm:$0xf]
    %v3223 = vld [vmem:[#allocation4 + $0x34c] sm:$0xf]
    %v3224 = vld [vmem:[#allocation4 + $0x350] sm:$0xf]
    %v3225 = vld [vmem:[#allocation4 + $0x354] sm:$0xf]
    %v3226 = vld [vmem:[#allocation4 + $0x358] sm:$0xf]
    %v3227 = vld [vmem:[#allocation4 + $0x35c] sm:$0xf]
    %v3228 = vld [vmem:[#allocation4 + $0x360] sm:$0xf]
    %v3229 = vld [vmem:[#allocation4 + $0x364] sm:$0xf]
    %v3230 = vld [vmem:[#allocation4 + $0x368] sm:$0xf]
    %v3231 = vld [vmem:[#allocation4 + $0x36c] sm:$0xf]
    %v3232 = vld [vmem:[#allocation4 + $0x370] sm:$0xf]
    %v3233 = vld [vmem:[#allocation4 + $0x374] sm:$0xf]
    %v3234 = vld [vmem:[#allocation4 + $0x378] sm:$0xf]
    %v3235 = vld [vmem:[#allocation4 + $0x37c] sm:$0xf]
    %v3236 = vld [vmem:[#allocation4 + $0x380] sm:$0xf]
    %v3237 = vld [vmem:[#allocation4 + $0x384] sm:$0xf]
    %v3238 = vld [vmem:[#allocation4 + $0x388] sm:$0xf]
    %v3239 = vld [vmem:[#allocation4 + $0x38c] sm:$0xf]
    %v3240 = vld [vmem:[#allocation4 + $0x390] sm:$0xf]
    %v3241 = vld [vmem:[#allocation4 + $0x394] sm:$0xf]
    %v3242 = vld [vmem:[#allocation4 + $0x398] sm:$0xf]
    %v3243 = vld [vmem:[#allocation4 + $0x39c] sm:$0xf]
    %v3244 = vld [vmem:[%s5 + $0x14] ss:$0 sm:$0xff]
    %v3245 = vrot.slane %v3194, 7
    %v3246 = vrot.slane %v3195, 7
    %v3247 = vsel %vm914, %v3245, %v3246
    %v3248 = vsel %vm914, %v3246, %v3245
    %v3249 = vsel %vm2127, %v3248, 0.0
    %v3250 = vsel %vm2128, %v3247, 0.0
    %v3251 = vrot.slane %v3194, 1
    %v3252 = vrot.slane %v3195, 1
    %v3253 = vsel %vm935, %v3251, %v3252
    %v3254 = vsel %vm935, %v3252, %v3251
    %v3255 = vsel %vm2137, %v3253, 0.0
    %v3256 = vsel %vm2138, %v3254, 0.0
    %v3257 = vpack.c.bf16 %v3250, %v3249
    %v3258 = vpack.c.bf16 %v3195, %v3194
    %v3259 = vpack.c.bf16 %v3256, %v3255
    %v3308 = vunpack.c.l.b16 %v3196
    %v3309 = vunpack.c.l.b16 %v3197
    %v3310 = vunpack.c.l.b16 %v3198
    %v3311 = vunpack.c.l.b16 %v3199
    %v3312 = vunpack.c.l.b16 %v3200
    %v3313 = vunpack.c.l.b16 %v3201
    %v3314 = vunpack.c.l.b16 %v3202
    %v3315 = vunpack.c.l.b16 %v3203
    %v3316 = vunpack.c.l.b16 %v3204
    %v3317 = vunpack.c.l.b16 %v3205
    %v3318 = vunpack.c.l.b16 %v3206
    %v3319 = vunpack.c.l.b16 %v3207
    %v3320 = vunpack.c.l.b16 %v3208
    %v3321 = vunpack.c.l.b16 %v3209
    %v3322 = vunpack.c.l.b16 %v3210
    %v3323 = vunpack.c.l.b16 %v3211
    %v3324 = vunpack.c.l.b16 %v3212
    %v3325 = vunpack.c.l.b16 %v3213
    %v3326 = vunpack.c.l.b16 %v3214
    %v3327 = vunpack.c.l.b16 %v3215
    %v3328 = vunpack.c.l.b16 %v3216
    %v3329 = vunpack.c.l.b16 %v3217
    %v3330 = vunpack.c.l.b16 %v3218
    %v3331 = vunpack.c.l.b16 %v3219
    %v3332 = vunpack.c.l.b16 %v3220
    %v3333 = vunpack.c.l.b16 %v3221
    %v3334 = vunpack.c.l.b16 %v3222
    %v3335 = vunpack.c.l.b16 %v3223
    %v3336 = vunpack.c.l.b16 %v3224
    %v3337 = vunpack.c.l.b16 %v3225
    %v3338 = vunpack.c.l.b16 %v3226
    %v3339 = vunpack.c.l.b16 %v3227
    %v3340 = vunpack.c.l.b16 %v3228
    %v3341 = vunpack.c.l.b16 %v3229
    %v3342 = vunpack.c.l.b16 %v3230
    %v3343 = vunpack.c.l.b16 %v3231
    %v3344 = vunpack.c.l.b16 %v3232
    %v3345 = vunpack.c.l.b16 %v3233
    %v3346 = vunpack.c.l.b16 %v3234
    %v3347 = vunpack.c.l.b16 %v3235
    %v3348 = vunpack.c.l.b16 %v3236
    %v3349 = vunpack.c.l.b16 %v3237
    %v3350 = vunpack.c.l.b16 %v3238
    %v3351 = vunpack.c.l.b16 %v3239
    %v3352 = vunpack.c.l.b16 %v3240
    %v3353 = vunpack.c.l.b16 %v3241
    %v3354 = vunpack.c.l.b16 %v3242
    %v3355 = vunpack.c.l.b16 %v3243
    %v3356 = vpack.c.b16 %v3309, %v3308
    %v3357 = vpack.c.b16 %v3311, %v3310
    %v3358 = vpack.c.b16 %v3313, %v3312
    %v3359 = vpack.c.b16 %v3315, %v3314
    %v3360 = vpack.c.b16 %v3317, %v3316
    %v3361 = vpack.c.b16 %v3319, %v3318
    %v3362 = vpack.c.b16 %v3321, %v3320
    %v3363 = vpack.c.b16 %v3323, %v3322
    %v3364 = vpack.c.b16 %v3325, %v3324
    %v3365 = vpack.c.b16 %v3327, %v3326
    %v3366 = vpack.c.b16 %v3329, %v3328
    %v3367 = vpack.c.b16 %v3331, %v3330
    %v3368 = vpack.c.b16 %v3333, %v3332
    %v3369 = vpack.c.b16 %v3335, %v3334
    %v3370 = vpack.c.b16 %v3337, %v3336
    %v3371 = vpack.c.b16 %v3339, %v3338
    %v3372 = vpack.c.b16 %v3341, %v3340
    %v3373 = vpack.c.b16 %v3343, %v3342
    %v3374 = vpack.c.b16 %v3345, %v3344
    %v3375 = vpack.c.b16 %v3347, %v3346
    %v3376 = vpack.c.b16 %v3349, %v3348
    %v3377 = vpack.c.b16 %v3351, %v3350
    %v3378 = vpack.c.b16 %v3353, %v3352
    %v3379 = vpack.c.b16 %v3355, %v3354
    %3404 = vmatprep.subr.bf16.mxu0 0
    %3405 = vmatpush1.bf16.msra.mxu0 %v3356
    %3406 = vmatprep.subr.bf16.mxu0 0
    %3407 = vmatpush1.bf16.msra.mxu0 %v3357
    %3408 = vmatprep.subr.bf16.mxu0 0
    %3409 = vmatpush1.bf16.msra.mxu0 %v3358
    %3410 = vmatprep.subr.bf16.mxu0 0
    %3411 = vmatpush1.bf16.msra.mxu0 %v3359
    %3412 = vmatprep.subr.bf16.mxu0 0
    %3413 = vmatpush1.bf16.msra.mxu0 %v3360
    %3414 = vmatprep.subr.bf16.mxu0 0
    %3415 = vmatpush1.bf16.msra.mxu0 %v3361
    %3416 = vmatprep.subr.bf16.mxu0 0
    %3417 = vmatpush1.bf16.msra.mxu0 %v3362
    %3418 = vmatprep.subr.bf16.mxu0 0
    %3419 = vmatpush1.bf16.msra.mxu0 %v3363
    %3420 = vmatprep.subr.bf16.mxu0 0
    %3421 = vmatpush1.bf16.msra.mxu0 %v3364
    %3422 = vmatprep.subr.bf16.mxu0 0
    %3423 = vmatpush1.bf16.msra.mxu0 %v3365
    %3424 = vmatprep.subr.bf16.mxu0 0
    %3425 = vmatpush1.bf16.msra.mxu0 %v3366
    %3426 = vmatprep.subr.bf16.mxu0 0
    %3427 = vmatpush1.bf16.msra.mxu0 %v3367
    %3428 = vmatprep.subr.bf16.mxu0 0
    %3429 = vmatpush1.bf16.msra.mxu0 %v3368
    %3430 = vmatprep.subr.bf16.mxu0 0
    %3431 = vmatpush1.bf16.msra.mxu0 %v3369
    %3432 = vmatprep.subr.bf16.mxu0 0
    %3433 = vmatpush1.bf16.msra.mxu0 %v3370
    %3434 = vmatprep.subr.bf16.mxu0 0
    %3435 = vmatpush1.bf16.msra.mxu0 %v3371
    %3436 = vmatprep.mubr.bf16.mxu0 %v3258
    %3437 = vmatmul.mubr.bf16.gmra.mrb[0].mxu0 %v3257
    %v3438 = vpop.f32.mrb[0].mxu0
    %v3439 = vadd.f32 %v3244, %v3438
    %v3440 = vpop.f32.mrb[0].mxu0
    %v3441 = vpop.f32.mrb[0].mxu0
    %v3442 = vadd.f32 %v3244, %v3441
    %v3443 = vpop.f32.mrb[0].mxu0
    %3444 = vdwg.mxu0
    %3445 = vmatprep.subr.bf16.mxu0 0
    %3446 = vmatpush1.bf16.msra.mxu0 %v3372
    %3447 = vmatprep.subr.bf16.mxu0 0
    %3448 = vmatpush1.bf16.msra.mxu0 %v3373
    %3449 = vmatprep.subr.bf16.mxu0 0
    %3450 = vmatpush1.bf16.msra.mxu0 %v3374
    %3451 = vmatprep.subr.bf16.mxu0 0
    %3452 = vmatpush1.bf16.msra.mxu0 %v3375
    %3453 = vmatprep.subr.bf16.mxu0 0
    %3454 = vmatpush1.bf16.msra.mxu0 %v3376
    %3455 = vmatprep.subr.bf16.mxu0 0
    %3456 = vmatpush1.bf16.msra.mxu0 %v3377
    %3457 = vmatprep.subr.bf16.mxu0 0
    %3458 = vmatpush1.bf16.msra.mxu0 %v3378
    %3459 = vmatprep.subr.bf16.mxu0 0
    %3460 = vmatpush1.bf16.msra.mxu0 %v3379
    %3461 = vmatprep.subr.bf16.mxu0 0
    %3462 = vmatpush1.bf16.msra.mxu0 0
    %3463 = vmatprep.subr.bf16.mxu0 0
    %3464 = vmatpush1.bf16.msra.mxu0 0
    %3465 = vmatprep.subr.bf16.mxu0 0
    %3466 = vmatpush1.bf16.msra.mxu0 0
    %3467 = vmatprep.subr.bf16.mxu0 0
    %3468 = vmatpush1.bf16.msra.mxu0 0
    %3469 = vmatprep.subr.bf16.mxu0 0
    %3470 = vmatpush1.bf16.msra.mxu0 0
    %3471 = vmatprep.subr.bf16.mxu0 0
    %3472 = vmatpush1.bf16.msra.mxu0 0
    %3473 = vmatprep.subr.bf16.mxu0 0
    %3474 = vmatpush1.bf16.msra.mxu0 0
    %3475 = vmatprep.subr.bf16.mxu0 0
    %3476 = vmatpush1.bf16.msra.mxu0 0
    %3477 = vmatprep.mubr.bf16.mxu0 0
    %3478 = vmatmul.mubr.bf16.gmra.mrb[0].mxu0 %v3259
    %v3479 = vpop.f32.mrb[0].mxu0
    %v3480 = vadd.f32 %v3439, %v3479
    %v3481 = vpop.f32.mrb[0].mxu0
    %v3482 = vpop.f32.mrb[0].mxu0
    %v3483 = vadd.f32 %v3442, %v3482
    %v3484 = vpop.f32.mrb[0].mxu0
    %3485 = vdwg.mxu0
    %vm3486 = vcmp.ge.f32.partialorder %v3480, 0.0
    %vm3487 = vcmp.ge.f32.partialorder %v3483, 0.0
    %v3488 = vmul.f32 %v3480, 0.05
    %v3489 = vmul.f32 %v3483, 0.05
    %v3490 = vsel %vm3486, %v3480, %v3488
    %v3491 = vsel %vm3487, %v3483, %v3489
    %v3492 = vadd.f32 %v3490, %v2785
    %v3493 = vadd.f32 %v3491, %v2786
    %v3494 = vld [vmem:[#allocation4 + $0x3a0] sm:$0xf]
    %v3495 = vld [vmem:[#allocation4 + $0x3a4] sm:$0xf]
    %v3496 = vld [vmem:[#allocation4 + $0x3a8] sm:$0xf]
    %v3497 = vld [vmem:[#allocation4 + $0x3ac] sm:$0xf]
    %v3498 = vld [vmem:[#allocation4 + $0x3b0] sm:$0xf]
    %v3499 = vld [vmem:[#allocation4 + $0x3b4] sm:$0xf]
    %v3500 = vld [vmem:[#allocation4 + $0x3b8] sm:$0xf]
    %v3501 = vld [vmem:[#allocation4 + $0x3bc] sm:$0xf]
    %v3502 = vld [vmem:[#allocation4 + $0x3c0] sm:$0xf]
    %v3503 = vld [vmem:[#allocation4 + $0x3c4] sm:$0xf]
    %v3504 = vld [vmem:[#allocation4 + $0x3c8] sm:$0xf]
    %v3505 = vld [vmem:[#allocation4 + $0x3cc] sm:$0xf]
    %v3506 = vld [vmem:[#allocation4 + $0x3d0] sm:$0xf]
    %v3507 = vld [vmem:[#allocation4 + $0x3d4] sm:$0xf]
    %v3508 = vld [vmem:[#allocation4 + $0x3d8] sm:$0xf]
    %v3509 = vld [vmem:[#allocation4 + $0x3dc] sm:$0xf]
    %v3510 = vpack.c.bf16 %v3493, %v3492
    %v3511 = vld [vmem:[%s5 + $0x16] ss:$0 sm:$0xff]
    %v3528 = vunpack.c.l.b16 %v3494
    %v3529 = vunpack.c.l.b16 %v3495
    %v3530 = vunpack.c.l.b16 %v3496
    %v3531 = vunpack.c.l.b16 %v3497
    %v3532 = vunpack.c.l.b16 %v3498
    %v3533 = vunpack.c.l.b16 %v3499
    %v3534 = vunpack.c.l.b16 %v3500
    %v3535 = vunpack.c.l.b16 %v3501
    %v3536 = vunpack.c.l.b16 %v3502
    %v3537 = vunpack.c.l.b16 %v3503
    %v3538 = vunpack.c.l.b16 %v3504
    %v3539 = vunpack.c.l.b16 %v3505
    %v3540 = vunpack.c.l.b16 %v3506
    %v3541 = vunpack.c.l.b16 %v3507
    %v3542 = vunpack.c.l.b16 %v3508
    %v3543 = vunpack.c.l.b16 %v3509
    %v3544 = vpack.c.b16 %v3529, %v3528
    %v3545 = vpack.c.b16 %v3531, %v3530
    %v3546 = vpack.c.b16 %v3533, %v3532
    %v3547 = vpack.c.b16 %v3535, %v3534
    %v3548 = vpack.c.b16 %v3537, %v3536
    %v3549 = vpack.c.b16 %v3539, %v3538
    %v3550 = vpack.c.b16 %v3541, %v3540
    %v3551 = vpack.c.b16 %v3543, %v3542
    %3560 = vmatprep.subr.bf16.mxu0 0
    %3561 = vmatpush1.bf16.msra.mxu0 %v3544
    %3562 = vmatprep.subr.bf16.mxu0 0
    %3563 = vmatpush1.bf16.msra.mxu0 %v3545
    %3564 = vmatprep.subr.bf16.mxu0 0
    %3565 = vmatpush1.bf16.msra.mxu0 %v3546
    %3566 = vmatprep.subr.bf16.mxu0 0
    %3567 = vmatpush1.bf16.msra.mxu0 %v3547
    %3568 = vmatprep.subr.bf16.mxu0 0
    %3569 = vmatpush1.bf16.msra.mxu0 %v3548
    %3570 = vmatprep.subr.bf16.mxu0 0
    %3571 = vmatpush1.bf16.msra.mxu0 %v3549
    %3572 = vmatprep.subr.bf16.mxu0 0
    %3573 = vmatpush1.bf16.msra.mxu0 %v3550
    %3574 = vmatprep.subr.bf16.mxu0 0
    %3575 = vmatpush1.bf16.msra.mxu0 %v3551
    %3576 = vmatprep.subr.bf16.mxu0 0
    %3577 = vmatpush1.bf16.msra.mxu0 0
    %3578 = vmatprep.subr.bf16.mxu0 0
    %3579 = vmatpush1.bf16.msra.mxu0 0
    %3580 = vmatprep.subr.bf16.mxu0 0
    %3581 = vmatpush1.bf16.msra.mxu0 0
    %3582 = vmatprep.subr.bf16.mxu0 0
    %3583 = vmatpush1.bf16.msra.mxu0 0
    %3584 = vmatprep.subr.bf16.mxu0 0
    %3585 = vmatpush1.bf16.msra.mxu0 0
    %3586 = vmatprep.subr.bf16.mxu0 0
    %3587 = vmatpush1.bf16.msra.mxu0 0
    %3588 = vmatprep.subr.bf16.mxu0 0
    %3589 = vmatpush1.bf16.msra.mxu0 0
    %3590 = vmatprep.subr.bf16.mxu0 0
    %3591 = vmatpush1.bf16.msra.mxu0 0
    %3592 = vmatprep.mubr.bf16.mxu0 0
    %3593 = vmatmul.mubr.bf16.gmra.mrb[0].mxu0 %v3510
    %v3594 = vpop.f32.mrb[0].mxu0
    %v3595 = vadd.f32 %v3511, %v3594
    %v3596 = vpop.f32.mrb[0].mxu0
    %v3597 = vpop.f32.mrb[0].mxu0
    %v3598 = vadd.f32 %v3511, %v3597
    %v3599 = vpop.f32.mrb[0].mxu0
    %3600 = vdwg.mxu0
    %v3601 = vld [vmem:[%s2] sm:$0xf]
    %v3602 = vld [vmem:[%s2 + $0x4] sm:$0xf]
    %v3603 = vld [vmem:[%s2 + $0x8] sm:$0xf]
    %v3604 = vld [vmem:[%s2 + $0xc] sm:$0xf]
    %v3605 = vld [vmem:[%s2 + $0x10] sm:$0xf]
    %v3606 = vpack.c.bf16 %v3598, %v3595
    %v3612 = vunpack.c.l.b16 %v3601
    %v3613 = vunpack.c.l.b16 %v3602
    %v3614 = vunpack.c.l.b16 %v3603
    %v3615 = vunpack.c.l.b16 %v3604
    %v3616 = vunpack.c.l.b16 %v3605
    %v3617 = vpack.c.b16 %v3613, %v3612
    %v3618 = vpack.c.b16 %v3615, %v3614
    %v3619 = vpack.c.b16 %v3616, %v3616
    %vm3620 = vcmask 130048
    %v3622 = vsel %vm3620, %v3617, 0
    %v3625 = vsel %vm3620, %v3618, 0
    %v3628 = vsel %vm3620, %v3619, 0
    %3630 = vmatprep.subr.bf16.mxu0 0
    %3631 = vmatpush1.bf16.msra.mxu0 %v3606
    %3632 = vmatprep.subr.bf16.mxu0 0
    %3633 = vmatpush1.bf16.msra.mxu0 0
    %3634 = vmatprep.subr.bf16.mxu0 0
    %3635 = vmatpush1.bf16.msra.mxu0 0
    %3636 = vmatprep.subr.bf16.mxu0 0
    %3637 = vmatpush1.bf16.msra.mxu0 0
    %3638 = vmatprep.subr.bf16.mxu0 0
    %3639 = vmatpush1.bf16.msra.mxu0 0
    %3640 = vmatprep.subr.bf16.mxu0 0
    %3641 = vmatpush1.bf16.msra.mxu0 0
    %3642 = vmatprep.subr.bf16.mxu0 0
    %3643 = vmatpush1.bf16.msra.mxu0 0
    %3644 = vmatprep.subr.bf16.mxu0 0
    %3645 = vmatpush1.bf16.msra.mxu0 0
    %3646 = vmatprep.subr.bf16.mxu0 0
    %3647 = vmatpush1.bf16.msra.mxu0 0
    %3648 = vmatprep.subr.bf16.mxu0 0
    %3649 = vmatpush1.bf16.msra.mxu0 0
    %3650 = vmatprep.subr.bf16.mxu0 0
    %3651 = vmatpush1.bf16.msra.mxu0 0
    %3652 = vmatprep.subr.bf16.mxu0 0
    %3653 = vmatpush1.bf16.msra.mxu0 0
    %3654 = vmatprep.subr.bf16.mxu0 0
    %3655 = vmatpush1.bf16.msra.mxu0 0
    %3656 = vmatprep.subr.bf16.mxu0 0
    %3657 = vmatpush1.bf16.msra.mxu0 0
    %3658 = vmatprep.subr.bf16.mxu0 0
    %3659 = vmatpush1.bf16.msra.mxu0 0
    %3660 = vmatprep.subr.bf16.mxu0 0
    %3661 = vmatpush1.bf16.msra.mxu0 0
    %3662 = vmatprep.mubr.bf16.mxu0 0
    %3663 = vmatmul.mubr.bf16.gmra.mrb[0].mxu0 %v3622
    %v3664 = vpop.f32.mrb[0].mxu0
    %v3665 = vadd.f32 0.0, %v3664
    %v3666 = vpop.f32.mrb[0].mxu0
    %v3667 = vpop.f32.mrb[0].mxu0
    %v3668 = vadd.f32 0.0, %v3667
    %v3669 = vpop.f32.mrb[0].mxu0
    %3670 = vmatprep.mubr.bf16.mxu0 0
    %3671 = vmatmul.mubr.bf16.gmra.mrb[0].mxu0 %v3625
    %v3672 = vpop.f32.mrb[0].mxu0
    %v3673 = vadd.f32 0.0, %v3672
    %v3674 = vpop.f32.mrb[0].mxu0
    %v3675 = vpop.f32.mrb[0].mxu0
    %v3676 = vadd.f32 0.0, %v3675
    %v3677 = vpop.f32.mrb[0].mxu0
    %3678 = vmatprep.mubr.bf16.mxu0 0
    %3679 = vmatmul.mubr.bf16.gmra.mrb[0].mxu0 %v3628
    %v3680 = vpop.f32.mrb[0].mxu0
    %v3681 = vadd.f32 0.0, %v3680
    %v3682 = vpop.f32.mrb[0].mxu0
    %v3683 = vpop.f32.mrb[0].mxu0
    %v3684 = vpop.f32.mrb[0].mxu0
    %3685 = vdwg.mxu0
    %s3686 = smul.u32 4, 80
    %s3687 = smul.u32 %s3686, 2
    %s3688 = sshll.u32 %s3687, 4
    %3689 = dma.done [#allocation3], %s3688
    %v3690 = vld [vmem:[#allocation2] sm:$0xff]
    %v3691 = vld [vmem:[#allocation2 + $0x8] sm:$0xff]
    %v3692 = vld [vmem:[#allocation2 + $0x10] sm:$0xff]
    %v3693 = vld [vmem:[#allocation2 + $0x18] sm:$0xff]
    %v3694 = vld [vmem:[#allocation2 + $0x20] sm:$0xff]
    %v3695 = vld [vmem:[#allocation2 + $0x28] sm:$0xff]
    %v3696 = vld [vmem:[#allocation2 + $0x30] sm:$0xff]
    %v3697 = vld [vmem:[#allocation2 + $0x38] sm:$0xff]
    %v3698 = vld [vmem:[#allocation2 + $0x40] sm:$0xff]
    %v3699 = vld [vmem:[#allocation2 + $0x48] sm:$0xff]
    %v3700 = vld [vmem:[#allocation2 + $0x50] sm:$0xff]
    %v3701 = vld [vmem:[#allocation2 + $0x58] sm:$0xff]
    %v3702 = vld [vmem:[#allocation2 + $0x60] sm:$0xff]
    %v3703 = vld [vmem:[#allocation2 + $0x68] sm:$0xff]
    %v3704 = vld [vmem:[#allocation2 + $0x70] sm:$0xff]
    %v3705 = vld [vmem:[#allocation2 + $0x78] sm:$0xff]
    %v3706 = vld [vmem:[#allocation2 + $0x80] sm:$0xff]
    %v3707 = vld [vmem:[#allocation2 + $0x88] sm:$0xff]
    %v3708 = vld [vmem:[#allocation2 + $0x90] sm:$0xff]
    %v3709 = vld [vmem:[#allocation2 + $0x98] sm:$0xff]
    %v3710 = vld [vmem:[#allocation2 + $0xa0] sm:$0xff]
    %v3711 = vld [vmem:[#allocation2 + $0xa8] sm:$0xff]
    %v3712 = vld [vmem:[#allocation2 + $0xb0] sm:$0xff]
    %v3713 = vld [vmem:[#allocation2 + $0xb8] sm:$0xff]
    %v3714 = vld [vmem:[#allocation2 + $0xc0] sm:$0xff]
    %v3715 = vld [vmem:[#allocation2 + $0xc8] sm:$0xff]
    %v3716 = vld [vmem:[#allocation2 + $0xd0] sm:$0xff]
    %v3717 = vld [vmem:[#allocation2 + $0xd8] sm:$0xff]
    %v3718 = vld [vmem:[#allocation2 + $0xe0] sm:$0xff]
    %v3719 = vld [vmem:[#allocation2 + $0xe8] sm:$0xff]
    %v3720 = vld [vmem:[#allocation2 + $0xf0] sm:$0xff]
    %v3721 = vld [vmem:[#allocation2 + $0xf8] sm:$0xff]
    %v3722 = vld [vmem:[#allocation2 + $0x100] sm:$0xff]
    %v3723 = vld [vmem:[#allocation2 + $0x108] sm:$0xff]
    %v3724 = vld [vmem:[#allocation2 + $0x110] sm:$0xff]
    %v3725 = vld [vmem:[#allocation2 + $0x118] sm:$0xff]
    %v3726 = vld [vmem:[#allocation2 + $0x120] sm:$0xff]
    %v3727 = vld [vmem:[#allocation2 + $0x128] sm:$0xff]
    %v3728 = vld [vmem:[#allocation2 + $0x130] sm:$0xff]
    %v3729 = vld [vmem:[#allocation2 + $0x138] sm:$0xff]
    %v3730 = vld [vmem:[#allocation2 + $0x140] sm:$0xff]
    %v3731 = vld [vmem:[#allocation2 + $0x148] sm:$0xff]
    %v3732 = vld [vmem:[#allocation2 + $0x150] sm:$0xff]
    %v3733 = vld [vmem:[#allocation2 + $0x158] sm:$0xff]
    %v3734 = vld [vmem:[#allocation2 + $0x160] sm:$0xff]
    %v3735 = vld [vmem:[#allocation2 + $0x168] sm:$0xff]
    %v3736 = vld [vmem:[#allocation2 + $0x170] sm:$0xff]
    %v3737 = vld [vmem:[#allocation2 + $0x178] sm:$0xff]
    %v3738 = vld [vmem:[#allocation2 + $0x180] sm:$0xff]
    %v3739 = vld [vmem:[#allocation2 + $0x188] sm:$0xff]
    %v3740 = vld [vmem:[#allocation2 + $0x190] sm:$0xff]
    %v3741 = vld [vmem:[#allocation2 + $0x198] sm:$0xff]
    %v3742 = vld [vmem:[#allocation2 + $0x1a0] sm:$0xff]
    %v3743 = vld [vmem:[#allocation2 + $0x1a8] sm:$0xff]
    %v3744 = vld [vmem:[#allocation2 + $0x1b0] sm:$0xff]
    %v3745 = vld [vmem:[#allocation2 + $0x1b8] sm:$0xff]
    %v3746 = vld [vmem:[#allocation2 + $0x1c0] sm:$0xff]
    %v3747 = vld [vmem:[#allocation2 + $0x1c8] sm:$0xff]
    %v3748 = vld [vmem:[#allocation2 + $0x1d0] sm:$0xff]
    %v3749 = vld [vmem:[#allocation2 + $0x1d8] sm:$0xff]
    %v3750 = vld [vmem:[#allocation2 + $0x1e0] sm:$0xff]
    %v3751 = vld [vmem:[#allocation2 + $0x1e8] sm:$0xff]
    %v3752 = vld [vmem:[#allocation2 + $0x1f0] sm:$0xff]
    %v3753 = vld [vmem:[#allocation2 + $0x1f8] sm:$0xff]
    %v3754 = vld [vmem:[#allocation2 + $0x200] sm:$0xff]
    %v3755 = vld [vmem:[#allocation2 + $0x208] sm:$0xff]
    %v3756 = vld [vmem:[#allocation2 + $0x210] sm:$0xff]
    %v3757 = vld [vmem:[#allocation2 + $0x218] sm:$0xff]
    %v3758 = vld [vmem:[#allocation2 + $0x220] sm:$0xff]
    %v3759 = vld [vmem:[#allocation2 + $0x228] sm:$0xff]
    %v3760 = vld [vmem:[#allocation2 + $0x230] sm:$0xff]
    %v3761 = vld [vmem:[#allocation2 + $0x238] sm:$0xff]
    %v3762 = vld [vmem:[#allocation2 + $0x240] sm:$0xff]
    %v3763 = vld [vmem:[#allocation2 + $0x248] sm:$0xff]
    %v3764 = vld [vmem:[#allocation2 + $0x250] sm:$0xff]
    %v3765 = vld [vmem:[#allocation2 + $0x258] sm:$0xff]
    %v3766 = vld [vmem:[#allocation2 + $0x260] sm:$0xff]
    %v3767 = vld [vmem:[#allocation2 + $0x268] sm:$0xff]
    %v3768 = vld [vmem:[#allocation2 + $0x270] sm:$0xff]
    %v3769 = vld [vmem:[#allocation2 + $0x278] sm:$0xff]
    %v3770 = vpack.c.bf16 %v3665, %v3665
    %v3771 = vpack.c.bf16 %v3668, %v3668
    %v3772 = vpack.c.bf16 %v3673, %v3673
    %v3773 = vpack.c.bf16 %v3676, %v3676
    %v3774 = vpack.c.bf16 %v3681, %v3681
    %s3775 = scalar_lea.vmem %s5, 23
    %v3776 = vld [vmem:[%s3775] ss:$8 sm:$0x3]
    %v3778 = vlaneseq
    %v3779 = vshrl.u32 %v3778, 7
    %v3780 = vsub.s32 0, %v3779
    %v3781 = vrot.slane %v3776, %v3780
    %v3782 = vlaneseq
    %v3783 = vshrl.u32 %v3782, 7
    %v3784 = vsub.s32 1, %v3783
    %v3785 = vrot.slane %v3776, %v3784
    %3788 = vmatprep.subr.bf16.mxu0 %v3691
    %3789 = vmatpush1.bf16.msra.mxu0 %v3690
    %3790 = vmatprep.subr.bf16.mxu0 %v3693
    %3791 = vmatpush1.bf16.msra.mxu0 %v3692
    %3792 = vmatprep.subr.bf16.mxu0 %v3695
    %3793 = vmatpush1.bf16.msra.mxu0 %v3694
    %3794 = vmatprep.subr.bf16.mxu0 %v3697
    %3795 = vmatpush1.bf16.msra.mxu0 %v3696
    %3796 = vmatprep.subr.bf16.mxu0 %v3699
    %3797 = vmatpush1.bf16.msra.mxu0 %v3698
    %3798 = vmatprep.subr.bf16.mxu0 %v3701
    %3799 = vmatpush1.bf16.msra.mxu0 %v3700
    %3800 = vmatprep.subr.bf16.mxu0 %v3703
    %3801 = vmatpush1.bf16.msra.mxu0 %v3702
    %3802 = vmatprep.subr.bf16.mxu0 %v3705
    %3803 = vmatpush1.bf16.msra.mxu0 %v3704
    %3804 = vmatprep.subr.bf16.mxu0 %v3707
    %3805 = vmatpush1.bf16.msra.mxu0 %v3706
    %3806 = vmatprep.subr.bf16.mxu0 %v3709
    %3807 = vmatpush1.bf16.msra.mxu0 %v3708
    %3808 = vmatprep.subr.bf16.mxu0 %v3711
    %3809 = vmatpush1.bf16.msra.mxu0 %v3710
    %3810 = vmatprep.subr.bf16.mxu0 %v3713
    %3811 = vmatpush1.bf16.msra.mxu0 %v3712
    %3812 = vmatprep.subr.bf16.mxu0 %v3715
    %3813 = vmatpush1.bf16.msra.mxu0 %v3714
    %3814 = vmatprep.subr.bf16.mxu0 %v3717
    %3815 = vmatpush1.bf16.msra.mxu0 %v3716
    %3816 = vmatprep.subr.bf16.mxu0 %v3719
    %3817 = vmatpush1.bf16.msra.mxu0 %v3718
    %3818 = vmatprep.subr.bf16.mxu0 %v3721
    %3819 = vmatpush1.bf16.msra.mxu0 %v3720
    %3820 = vmatprep.mubr.bf16.mxu0 %v3771
    %3821 = vmatmul.mubr.bf16.gmra.mrb[0].mxu0 %v3770
    %v3822 = vpop.f32.mrb[0].mxu0
    %v3823 = vadd.f32 %v3781, %v3822
    %v3824 = vpop.f32.mrb[0].mxu0
    %v3825 = vadd.f32 %v3785, %v3824
    %v3826 = vpop.f32.mrb[0].mxu0
    %v3827 = vpop.f32.mrb[0].mxu0
    %3828 = vdwg.mxu0
    %3829 = vmatprep.subr.bf16.mxu0 %v3723
    %3830 = vmatpush1.bf16.msra.mxu0 %v3722
    %3831 = vmatprep.subr.bf16.mxu0 %v3725
    %3832 = vmatpush1.bf16.msra.mxu0 %v3724
    %3833 = vmatprep.subr.bf16.mxu0 %v3727
    %3834 = vmatpush1.bf16.msra.mxu0 %v3726
    %3835 = vmatprep.subr.bf16.mxu0 %v3729
    %3836 = vmatpush1.bf16.msra.mxu0 %v3728
    %3837 = vmatprep.subr.bf16.mxu0 %v3731
    %3838 = vmatpush1.bf16.msra.mxu0 %v3730
    %3839 = vmatprep.subr.bf16.mxu0 %v3733
    %3840 = vmatpush1.bf16.msra.mxu0 %v3732
    %3841 = vmatprep.subr.bf16.mxu0 %v3735
    %3842 = vmatpush1.bf16.msra.mxu0 %v3734
    %3843 = vmatprep.subr.bf16.mxu0 %v3737
    %3844 = vmatpush1.bf16.msra.mxu0 %v3736
    %3845 = vmatprep.subr.bf16.mxu0 %v3739
    %3846 = vmatpush1.bf16.msra.mxu0 %v3738
    %3847 = vmatprep.subr.bf16.mxu0 %v3741
    %3848 = vmatpush1.bf16.msra.mxu0 %v3740
    %3849 = vmatprep.subr.bf16.mxu0 %v3743
    %3850 = vmatpush1.bf16.msra.mxu0 %v3742
    %3851 = vmatprep.subr.bf16.mxu0 %v3745
    %3852 = vmatpush1.bf16.msra.mxu0 %v3744
    %3853 = vmatprep.subr.bf16.mxu0 %v3747
    %3854 = vmatpush1.bf16.msra.mxu0 %v3746
    %3855 = vmatprep.subr.bf16.mxu0 %v3749
    %3856 = vmatpush1.bf16.msra.mxu0 %v3748
    %3857 = vmatprep.subr.bf16.mxu0 %v3751
    %3858 = vmatpush1.bf16.msra.mxu0 %v3750
    %3859 = vmatprep.subr.bf16.mxu0 %v3753
    %3860 = vmatpush1.bf16.msra.mxu0 %v3752
    %3861 = vmatprep.mubr.bf16.mxu0 %v3773
    %3862 = vmatmul.mubr.bf16.gmra.mrb[0].mxu0 %v3772
    %v3863 = vpop.f32.mrb[0].mxu0
    %v3864 = vadd.f32 %v3823, %v3863
    %v3865 = vpop.f32.mrb[0].mxu0
    %v3866 = vadd.f32 %v3825, %v3865
    %v3867 = vpop.f32.mrb[0].mxu0
    %v3868 = vpop.f32.mrb[0].mxu0
    %3869 = vdwg.mxu0
    %3870 = vmatprep.subr.bf16.mxu0 %v3755
    %3871 = vmatpush1.bf16.msra.mxu0 %v3754
    %3872 = vmatprep.subr.bf16.mxu0 %v3757
    %3873 = vmatpush1.bf16.msra.mxu0 %v3756
    %3874 = vmatprep.subr.bf16.mxu0 %v3759
    %3875 = vmatpush1.bf16.msra.mxu0 %v3758
    %3876 = vmatprep.subr.bf16.mxu0 %v3761
    %3877 = vmatpush1.bf16.msra.mxu0 %v3760
    %3878 = vmatprep.subr.bf16.mxu0 %v3763
    %3879 = vmatpush1.bf16.msra.mxu0 %v3762
    %3880 = vmatprep.subr.bf16.mxu0 %v3765
    %3881 = vmatpush1.bf16.msra.mxu0 %v3764
    %3882 = vmatprep.subr.bf16.mxu0 %v3767
    %3883 = vmatpush1.bf16.msra.mxu0 %v3766
    %3884 = vmatprep.subr.bf16.mxu0 %v3769
    %3885 = vmatpush1.bf16.msra.mxu0 %v3768
    %3886 = vmatprep.subr.bf16.mxu0 0
    %3887 = vmatpush1.bf16.msra.mxu0 0
    %3888 = vmatprep.subr.bf16.mxu0 0
    %3889 = vmatpush1.bf16.msra.mxu0 0
    %3890 = vmatprep.subr.bf16.mxu0 0
    %3891 = vmatpush1.bf16.msra.mxu0 0
    %3892 = vmatprep.subr.bf16.mxu0 0
    %3893 = vmatpush1.bf16.msra.mxu0 0
    %3894 = vmatprep.subr.bf16.mxu0 0
    %3895 = vmatpush1.bf16.msra.mxu0 0
    %3896 = vmatprep.subr.bf16.mxu0 0
    %3897 = vmatpush1.bf16.msra.mxu0 0
    %3898 = vmatprep.subr.bf16.mxu0 0
    %3899 = vmatpush1.bf16.msra.mxu0 0
    %3900 = vmatprep.subr.bf16.mxu0 0
    %3901 = vmatpush1.bf16.msra.mxu0 0
    %3902 = vmatprep.mubr.bf16.mxu0 0
    %3903 = vmatmul.mubr.bf16.gmra.mrb[0].mxu0 %v3774
    %v3904 = vpop.f32.mrb[0].mxu0
    %v3905 = vadd.f32 %v3864, %v3904
    %v3906 = vpop.f32.mrb[0].mxu0
    %v3907 = vadd.f32 %v3866, %v3906
    %v3908 = vpop.f32.mrb[0].mxu0
    %v3909 = vpop.f32.mrb[0].mxu0
    %3910 = vdwg.mxu0
    %vm3911 = vcmp.ge.f32.partialorder %v3905, 0.0
    %vm3912 = vcmp.ge.f32.partialorder %v3907, 0.0
    %v3913 = vmul.f32 %v3905, 0.1
    %v3914 = vmul.f32 %v3907, 0.1
    %v3915 = vsel %vm3911, %v3905, %v3913
    %v3916 = vsel %vm3912, %v3907, %v3914
    %v3917 = vld [vmem:[%s3 + $0x1c4] sm:$0xf]
    %v3918 = vld [vmem:[%s3 + $0x1c8] sm:$0xf]
    %v3919 = vld [vmem:[%s3 + $0x1cc] sm:$0xf]
    %v3920 = vld [vmem:[%s3 + $0x1d0] sm:$0xf]
    %v3921 = vld [vmem:[%s3 + $0x1d4] sm:$0xf]
    %v3922 = vld [vmem:[%s3 + $0x1d8] sm:$0xf]
    %v3923 = vld [vmem:[%s3 + $0x1dc] sm:$0xf]
    %v3924 = vld [vmem:[%s3 + $0x1e0] sm:$0xf]
    %v3925 = vld [vmem:[%s3 + $0x1e4] sm:$0xf]
    %v3926 = vld [vmem:[%s3 + $0x1e8] sm:$0xf]
    %v3927 = vld [vmem:[%s3 + $0x1ec] sm:$0xf]
    %v3928 = vld [vmem:[%s3 + $0x1f0] sm:$0xf]
    %v3929 = vld [vmem:[%s3 + $0x1f4] sm:$0xf]
    %v3930 = vld [vmem:[%s3 + $0x1f8] sm:$0xf]
    %v3931 = vld [vmem:[%s3 + $0x1fc] sm:$0xf]
    %v3932 = vld [vmem:[%s3 + $0x200] sm:$0xf]
    %v3933 = vld [vmem:[%s3 + $0x204] sm:$0xf]
    %v3934 = vld [vmem:[%s3 + $0x208] sm:$0xf]
    %v3935 = vld [vmem:[%s3 + $0x20c] sm:$0xf]
    %v3936 = vld [vmem:[%s3 + $0x210] sm:$0xf]
    %v3937 = vld [vmem:[%s3 + $0x214] sm:$0xf]
    %v3938 = vld [vmem:[%s3 + $0x218] sm:$0xf]
    %v3939 = vld [vmem:[%s3 + $0x21c] sm:$0xf]
    %v3940 = vld [vmem:[%s3 + $0x220] sm:$0xf]
    %v3941 = vld [vmem:[%s3 + $0x224] sm:$0xf]
    %v3942 = vld [vmem:[%s3 + $0x228] sm:$0xf]
    %v3943 = vld [vmem:[%s3 + $0x22c] sm:$0xf]
    %v3944 = vld [vmem:[%s3 + $0x230] sm:$0xf]
    %v3945 = vld [vmem:[%s3 + $0x234] sm:$0xf]
    %v3946 = vld [vmem:[%s3 + $0x238] sm:$0xf]
    %v3947 = vld [vmem:[%s3 + $0x23c] sm:$0xf]
    %v3948 = vld [vmem:[%s3 + $0x240] sm:$0xf]
    %v3949 = vpack.c.bf16 %v3915, %v3915
    %v3950 = vpack.c.bf16 %v3916, %v3916
    %v3951 = vld [vmem:[%s5 + $0x20] ss:$0 sm:$0xff]
    %v3984 = vunpack.c.l.b16 %v3917
    %v3985 = vunpack.c.l.b16 %v3918
    %v3986 = vunpack.c.l.b16 %v3919
    %v3987 = vunpack.c.l.b16 %v3920
    %v3988 = vunpack.c.l.b16 %v3921
    %v3989 = vunpack.c.l.b16 %v3922
    %v3990 = vunpack.c.l.b16 %v3923
    %v3991 = vunpack.c.l.b16 %v3924
    %v3992 = vunpack.c.l.b16 %v3925
    %v3993 = vunpack.c.l.b16 %v3926
    %v3994 = vunpack.c.l.b16 %v3927
    %v3995 = vunpack.c.l.b16 %v3928
    %v3996 = vunpack.c.l.b16 %v3929
    %v3997 = vunpack.c.l.b16 %v3930
    %v3998 = vunpack.c.l.b16 %v3931
    %v3999 = vunpack.c.l.b16 %v3932
    %v4000 = vunpack.c.l.b16 %v3933
    %v4001 = vunpack.c.l.b16 %v3934
    %v4002 = vunpack.c.l.b16 %v3935
    %v4003 = vunpack.c.l.b16 %v3936
    %v4004 = vunpack.c.l.b16 %v3937
    %v4005 = vunpack.c.l.b16 %v3938
    %v4006 = vunpack.c.l.b16 %v3939
    %v4007 = vunpack.c.l.b16 %v3940
    %v4008 = vunpack.c.l.b16 %v3941
    %v4009 = vunpack.c.l.b16 %v3942
    %v4010 = vunpack.c.l.b16 %v3943
    %v4011 = vunpack.c.l.b16 %v3944
    %v4012 = vunpack.c.l.b16 %v3945
    %v4013 = vunpack.c.l.b16 %v3946
    %v4014 = vunpack.c.l.b16 %v3947
    %v4015 = vunpack.c.l.b16 %v3948
    %v4016 = vpack.c.b16 %v3985, %v3984
    %v4017 = vpack.c.b16 %v3987, %v3986
    %v4018 = vpack.c.b16 %v3989, %v3988
    %v4019 = vpack.c.b16 %v3991, %v3990
    %v4020 = vpack.c.b16 %v3993, %v3992
    %v4021 = vpack.c.b16 %v3995, %v3994
    %v4022 = vpack.c.b16 %v3997, %v3996
    %v4023 = vpack.c.b16 %v3999, %v3998
    %v4024 = vpack.c.b16 %v4001, %v4000
    %v4025 = vpack.c.b16 %v4003, %v4002
    %v4026 = vpack.c.b16 %v4005, %v4004
    %v4027 = vpack.c.b16 %v4007, %v4006
    %v4028 = vpack.c.b16 %v4009, %v4008
    %v4029 = vpack.c.b16 %v4011, %v4010
    %v4030 = vpack.c.b16 %v4013, %v4012
    %v4031 = vpack.c.b16 %v4015, %v4014
    %4048 = vmatprep.subr.bf16.mxu0 0
    %4049 = vmatpush1.bf16.msra.mxu0 %v4016
    %4050 = vmatprep.subr.bf16.mxu0 0
    %4051 = vmatpush1.bf16.msra.mxu0 %v4017
    %4052 = vmatprep.subr.bf16.mxu0 0
    %4053 = vmatpush1.bf16.msra.mxu0 %v4018
    %4054 = vmatprep.subr.bf16.mxu0 0
    %4055 = vmatpush1.bf16.msra.mxu0 %v4019
    %4056 = vmatprep.subr.bf16.mxu0 0
    %4057 = vmatpush1.bf16.msra.mxu0 %v4020
    %4058 = vmatprep.subr.bf16.mxu0 0
    %4059 = vmatpush1.bf16.msra.mxu0 %v4021
    %4060 = vmatprep.subr.bf16.mxu0 0
    %4061 = vmatpush1.bf16.msra.mxu0 %v4022
    %4062 = vmatprep.subr.bf16.mxu0 0
    %4063 = vmatpush1.bf16.msra.mxu0 %v4023
    %4064 = vmatprep.subr.bf16.mxu0 0
    %4065 = vmatpush1.bf16.msra.mxu0 %v4024
    %4066 = vmatprep.subr.bf16.mxu0 0
    %4067 = vmatpush1.bf16.msra.mxu0 %v4025
    %4068 = vmatprep.subr.bf16.mxu0 0
    %4069 = vmatpush1.bf16.msra.mxu0 %v4026
    %4070 = vmatprep.subr.bf16.mxu0 0
    %4071 = vmatpush1.bf16.msra.mxu0 %v4027
    %4072 = vmatprep.subr.bf16.mxu0 0
    %4073 = vmatpush1.bf16.msra.mxu0 %v4028
    %4074 = vmatprep.subr.bf16.mxu0 0
    %4075 = vmatpush1.bf16.msra.mxu0 %v4029
    %4076 = vmatprep.subr.bf16.mxu0 0
    %4077 = vmatpush1.bf16.msra.mxu0 %v4030
    %4078 = vmatprep.subr.bf16.mxu0 0
    %4079 = vmatpush1.bf16.msra.mxu0 %v4031
    %4080 = vmatprep.mubr.bf16.mxu0 %v3950
    %4081 = vmatmul.mubr.bf16.gmra.mrb[0].mxu0 %v3949
    %v4082 = vpop.f32.mrb[0].mxu0
    %v4083 = vadd.f32 %v3951, %v4082
    %v4084 = vpop.f32.mrb[0].mxu0
    %v4085 = vpop.f32.mrb[0].mxu0
    %v4086 = vpop.f32.mrb[0].mxu0
    %4087 = vdwg.mxu0
    %v4088 = vld [vmem:[#allocation4 + $0x3e0] sm:$0xf]
    %v4089 = vld [vmem:[#allocation4 + $0x3e4] sm:$0xf]
    %v4090 = vld [vmem:[#allocation4 + $0x3e8] sm:$0xf]
    %v4091 = vld [vmem:[#allocation4 + $0x3ec] sm:$0xf]
    %v4092 = vld [vmem:[#allocation4 + $0x3f0] sm:$0xf]
    %v4093 = vld [vmem:[#allocation4 + $0x3f4] sm:$0xf]
    %v4094 = vld [vmem:[#allocation4 + $0x3f8] sm:$0xf]
    %v4095 = vld [vmem:[#allocation4 + $0x3fc] sm:$0xf]
    %v4096 = vpack.c.bf16 %v4083, %v4083
    %v4097 = vld [vmem:[%s5 + $0x21] ss:$0 sm:$0xff]
    %v4106 = vunpack.c.l.b16 %v4088
    %v4107 = vunpack.c.l.b16 %v4089
    %v4108 = vunpack.c.l.b16 %v4090
    %v4109 = vunpack.c.l.b16 %v4091
    %v4110 = vunpack.c.l.b16 %v4092
    %v4111 = vunpack.c.l.b16 %v4093
    %v4112 = vunpack.c.l.b16 %v4094
    %v4113 = vunpack.c.l.b16 %v4095
    %v4114 = vpack.c.b16 %v4107, %v4106
    %v4115 = vpack.c.b16 %v4109, %v4108
    %v4116 = vpack.c.b16 %v4111, %v4110
    %v4117 = vpack.c.b16 %v4113, %v4112
    %v4123 = vsel %vm968, %v4096, 0
    %4125 = vmatprep.subr.bf16.mxu0 0
    %4126 = vmatpush1.bf16.msra.mxu0 %v4114
    %4127 = vmatprep.subr.bf16.mxu0 0
    %4128 = vmatpush1.bf16.msra.mxu0 %v4115
    %4129 = vmatprep.subr.bf16.mxu0 0
    %4130 = vmatpush1.bf16.msra.mxu0 %v4116
    %4131 = vmatprep.subr.bf16.mxu0 0
    %4132 = vmatpush1.bf16.msra.mxu0 %v4117
    %4133 = vmatprep.subr.bf16.mxu0 0
    %4134 = vmatpush1.bf16.msra.mxu0 0
    %4135 = vmatprep.subr.bf16.mxu0 0
    %4136 = vmatpush1.bf16.msra.mxu0 0
    %4137 = vmatprep.subr.bf16.mxu0 0
    %4138 = vmatpush1.bf16.msra.mxu0 0
    %4139 = vmatprep.subr.bf16.mxu0 0
    %4140 = vmatpush1.bf16.msra.mxu0 0
    %4141 = vmatprep.subr.bf16.mxu0 0
    %4142 = vmatpush1.bf16.msra.mxu0 0
    %4143 = vmatprep.subr.bf16.mxu0 0
    %4144 = vmatpush1.bf16.msra.mxu0 0
    %4145 = vmatprep.subr.bf16.mxu0 0
    %4146 = vmatpush1.bf16.msra.mxu0 0
    %4147 = vmatprep.subr.bf16.mxu0 0
    %4148 = vmatpush1.bf16.msra.mxu0 0
    %4149 = vmatprep.subr.bf16.mxu0 0
    %4150 = vmatpush1.bf16.msra.mxu0 0
    %4151 = vmatprep.subr.bf16.mxu0 0
    %4152 = vmatpush1.bf16.msra.mxu0 0
    %4153 = vmatprep.subr.bf16.mxu0 0
    %4154 = vmatpush1.bf16.msra.mxu0 0
    %4155 = vmatprep.subr.bf16.mxu0 0
    %4156 = vmatpush1.bf16.msra.mxu0 0
    %4157 = vmatprep.mubr.bf16.mxu0 0
    %4158 = vmatmul.mubr.bf16.gmra.mrb[0].mxu0 %v4123
    %v4159 = vpop.f32.mrb[0].mxu0
    %v4160 = vadd.f32 %v4097, %v4159
    %v4161 = vpop.f32.mrb[0].mxu0
    %v4162 = vpop.f32.mrb[0].mxu0
    %v4163 = vpop.f32.mrb[0].mxu0
    %4164 = vdwg.mxu0
    %4165 = vst [vmem:[#allocation7] sm:$0xff] %v4160
    // Predicated region
    $region67: #{tpu_custom_call.1} parent=1 // pred_check
      _
    $region68: #{tpu_custom_call.1} parent=1 // pred_check_branch
      %4167 = sbr.rel (0) target = $region70
    $region69: #{tpu_custom_call.1} parent=1 // pred_region
      %s4169 = ssub.s32 128, 128
      %4170 = vsyncadd [#allocation6], %s4169
      %s4172 = sshll.u32 [#allocation7], 4
      %s4173 = int_to_ptr.vmem [resolvable:$true] %s4172
      %4175 = dma.vmem_to_hbm [thread:$0]  %s4173, 128, %s7, [#allocation6]
    $region70: #{tpu_custom_call.1} parent=1 // pred_fallthru
      _
    // Predicated region
    $region71: #{tpu_custom_call.1} parent=1 // pred_check
      _
    $region72: #{tpu_custom_call.1} parent=1 // pred_check_branch
      %4177 = sbr.rel (0) target = $region74
    $region73: #{tpu_custom_call.1} parent=1 // pred_region
      %4178 = dma.done [#allocation6], 128
    $region74: #{tpu_custom_call.1} parent=1 // pred_fallthru
      _
    %4179 = vsyncpa [#allocation5], 1
    %4180 = vsyncpa [#allocation6], 1
  %4181 = vsyncmov [#allocation3]
  %s4182 = vpop.sfrf %4181
  %p4183 = scmp.eq.s32.totalorder %s4182, 0
  %p4184 = pneg %p4183
  %4186 = shalt.err (%p4184)

</llo_original>
